<compile_context>
chip_gen: v5e
topology: v5e:2x2
jax: 0.10.0
libtpu: 0.0.40
codegen_flags: <defaults>
</compile_context>

<pallas_src>
import functools
import math

import numpy as np
import jax
import jax.numpy as jnp
from jax import lax
from jax.experimental import pallas as pl
from jax.experimental.pallas import tpu as pltpu


# --------------------------------------------------------------------------
# Fused BasicBlock kernel
# --------------------------------------------------------------------------
def _basic_block_kernel(
    x_ref, mask_ref, w1_ref, w2_ref,
    g1_ref, b1_ref, g2_ref, b2_ref, g3_ref, b3_ref,
    o_ref,
    xpad1_ref, xpad2_ref, patch1_ref, patch2_ref, out1_ref, out2_ref,
    *, B, Cin, O, H, W, eps):
  """Layouts (channel-major, flattened spatial on the lane axis):
       x_ref    : (B, Cin, H*W)        f32   raw input (NCHW flattened, free)
       mask_ref : (1, H*Wp)            f32   1.0 where flat column < W
       w1_ref   : (O, 9*Cin)           bf16  conv1 weights, K = (dy*3+dx)*Cin+c
       w2_ref   : (O, 9*O)             bf16  conv2 weights
       g*/b*    : (C, 1)               f32   BN gamma/beta
       o_ref    : (B, O, H*W)          f32   final output (lane-dense)
       xpad*    : (C, (H+3)*Wp)        bf16  zero-padded, row-flattened image
       patch*   : (9*C, H*Wp)          bf16  implicit-im2col patch tile
       out1/2   : (B, O, H*Wp)         f32   conv outputs (junk cols at x>=W)
  """
  Wp = W + 2
  M0 = H * W                    # valid spatial positions per image
  M = H * Wp                    # window-trick output columns (junk at x >= W)
  inv_n = 1.0 / float(B * M0)
  taps = [dy * Wp + dx for dy in range(3) for dx in range(3)]

  # Padded-image scratches: zero once; only interior positions are rewritten.
  xpad1_ref[...] = jnp.zeros_like(xpad1_ref)
  xpad2_ref[...] = jnp.zeros_like(xpad2_ref)

  mask = mask_ref[...]                                   # (1, M)

  # ---------------- BN1: batch statistics over the raw input ----------------
  s = jnp.zeros((Cin, 1), jnp.float32)
  ss = jnp.zeros((Cin, 1), jnp.float32)
  for b in range(B):
    xb = x_ref[b]                                        # (Cin, M0) f32
    s = s + jnp.sum(xb, axis=1, keepdims=True)
    ss = ss + jnp.sum(xb * xb, axis=1, keepdims=True)
  mean1 = s * inv_n
  var1 = ss * inv_n - mean1 * mean1                      # biased (train-mode BN)
  scale1 = g1_ref[...] * lax.rsqrt(var1 + eps)
  shift1 = b1_ref[...] - mean1 * scale1

  # ------------- conv1: BN1 fused into the in-VMEM zero-pad -----------------
  w1 = w1_ref[...]                                       # (O, 9*Cin) bf16
  s = jnp.zeros((O, 1), jnp.float32)
  ss = jnp.zeros((O, 1), jnp.float32)
  for b in range(B):
    # Scatter BN1-normalized interior rows into the padded image (bf16).
    for y in range(H):
      row = x_ref[b, :, pl.ds(y * W, W)]                 # (Cin, W) f32
      xpad1_ref[:, pl.ds((1 + y) * Wp + 1, W)] = (
          row * scale1 + shift1).astype(jnp.bfloat16)
    # Implicit im2col: 9 shifted VMEM->VMEM copies build the (9*Cin, M) tile.
    for kp, off in enumerate(taps):
      patch1_ref[pl.ds(kp * Cin, Cin), :] = xpad1_ref[:, pl.ds(off, M)]
    # One MXU dot with K = 9*Cin, lane-dense (O, M) f32 result.
    o1 = jnp.dot(w1, patch1_ref[...], preferred_element_type=jnp.float32)
    out1_ref[b] = o1
    o1m = o1 * mask                                      # junk columns -> 0
    s = s + jnp.sum(o1m, axis=1, keepdims=True)
    ss = ss + jnp.sum(o1m * o1m, axis=1, keepdims=True)
  mean2 = s * inv_n
  var2 = ss * inv_n - mean2 * mean2
  scale2 = g2_ref[...] * lax.rsqrt(var2 + eps)
  shift2 = b2_ref[...] - mean2 * scale2

  # ---------------- BN2 + ReLU + conv2 ---------------------------------------
  w2 = w2_ref[...]                                       # (O, 9*O) bf16
  s = jnp.zeros((O, 1), jnp.float32)
  ss = jnp.zeros((O, 1), jnp.float32)
  for b in range(B):
    a = jnp.maximum(out1_ref[b] * scale2 + shift2, 0.0) * mask    # (O, M) f32
    # out1 rows are already Wp wide: one shifted store fills the whole
    # interior of the conv2 padded image (mask already zeroed the positions
    # that land on pad columns; the border stays zero from the init).
    xpad2_ref[:, pl.ds(Wp + 1, M)] = a.astype(jnp.bfloat16)
    for kp, off in enumerate(taps):
      patch2_ref[pl.ds(kp * O, O), :] = xpad2_ref[:, pl.ds(off, M)]
    o2 = jnp.dot(w2, patch2_ref[...], preferred_element_type=jnp.float32)
    out2_ref[b] = o2
    o2m = o2 * mask
    s = s + jnp.sum(o2m, axis=1, keepdims=True)
    ss = ss + jnp.sum(o2m * o2m, axis=1, keepdims=True)
  mean3 = s * inv_n
  var3 = ss * inv_n - mean3 * mean3
  scale3 = g3_ref[...] * lax.rsqrt(var3 + eps)
  shift3 = b3_ref[...] - mean3 * scale3

  # -------- BN3, drop junk columns, channel-padded residual, store ----------
  for b in range(B):
    for y in range(H):
      row = out2_ref[b, :, pl.ds(y * Wp, W)] * scale3 + shift3    # (O, W)
      o_ref[b, :, pl.ds(y * W, W)] = row
    # Residual: first Cin channels get the (un-downsampled) input added;
    # extra channels keep the implicit zero padding of the shortcut.
    o_ref[b, pl.ds(0, Cin), :] = o_ref[b, pl.ds(0, Cin), :] + x_ref[b]


# --------------------------------------------------------------------------
# Wrapper: one pallas_call per BasicBlock forward
# --------------------------------------------------------------------------
def basic_block_forward(params, x_nchw, stride=1, downsample=None):
  """BasicBlock.forward: NCHW in, NCHW out, one fused Pallas kernel."""
  if stride != 1 or downsample is not None:
    # TODO(synk): strided conv / caller-provided downsample module not
    # implemented (PyTorch relies on `downsample` for the residual there).
    raise NotImplementedError("only stride=1, downsample=None is supported")

  B, Cin, H, W = x_nchw.shape
  O = params['conv1_w'].shape[0]
  Wp, M0, M = W + 2, H * W, H * (W + 2)
  Lp = (H + 3) * Wp            # extra bottom rows keep every shifted slice in-bounds

  # Free metadata reshape: NCHW -> (B, C, H*W); spatial lands on the lane axis.
  x_flat = x_nchw.reshape(B, Cin, M0)

  # (O, C, 3, 3) OIHW -> (O, 3, 3, C) -> (O, 9C); K index = (dy*3+dx)*C + c.
  w1r = jnp.transpose(params['conv1_w'], (0, 2, 3, 1)).reshape(O, 9 * Cin)
  w2r = jnp.transpose(params['conv2_w'], (0, 2, 3, 1)).reshape(O, 9 * O)
  w1r = w1r.astype(jnp.bfloat16)
  w2r = w2r.astype(jnp.bfloat16)

  g1 = params['bn1_g'].reshape(Cin, 1)
  b1 = params['bn1_b'].reshape(Cin, 1)
  g2 = params['bn2_g'].reshape(O, 1)
  b2 = params['bn2_b'].reshape(O, 1)
  g3 = params['bn3_g'].reshape(O, 1)
  b3 = params['bn3_b'].reshape(O, 1)

  # Valid-column mask for the row-flattened (width Wp) conv output.
  mask_np = np.zeros((1, H, Wp), np.float32)
  mask_np[:, :, :W] = 1.0
  mask = jnp.asarray(mask_np.reshape(1, M))

  kernel = functools.partial(_basic_block_kernel,
                             B=B, Cin=Cin, O=O, H=H, W=W, eps=1e-5)

  def full(shape):
    return pl.BlockSpec(shape, lambda *_: (0,) * len(shape))

  flops = 2 * B * M * (9 * Cin * O + 9 * O * O)
  bytes_accessed = ((x_flat.size + B * O * M0) * 4
                    + (w1r.size + w2r.size) * 2
                    + (2 * Cin + 4 * O) * 4 + M * 4)

  out = pl.pallas_call(
      kernel,
      out_shape=jax.ShapeDtypeStruct((B, O, M0), jnp.float32),
      grid=(1,),
      in_specs=[
          full((B, Cin, M0)), full((1, M)),
          full((O, 9 * Cin)), full((O, 9 * O)),
          full((Cin, 1)), full((Cin, 1)),
          full((O, 1)), full((O, 1)), full((O, 1)), full((O, 1)),
      ],
      out_specs=full((B, O, M0)),
      scratch_shapes=[
          pltpu.VMEM((Cin, Lp), jnp.bfloat16),      # conv1 padded image
          pltpu.VMEM((O, Lp), jnp.bfloat16),        # conv2 padded image
          pltpu.VMEM((9 * Cin, M), jnp.bfloat16),   # conv1 patch tile
          pltpu.VMEM((9 * O, M), jnp.bfloat16),     # conv2 patch tile
          pltpu.VMEM((B, O, M), jnp.float32),       # conv1 output
          pltpu.VMEM((B, O, M), jnp.float32),       # conv2 output
      ],
      compiler_params=pltpu.CompilerParams(
          dimension_semantics=("arbitrary",)),
      cost_estimate=pl.CostEstimate(
          flops=flops, transcendentals=Cin + 2 * O,
          bytes_accessed=bytes_accessed),
  )(x_flat, mask, w1r, w2r, g1, b1, g2, b2, g3, b3)

  return out.reshape(B, O, H, W)     # free reshape back to NCHW


# --------------------------------------------------------------------------
# Parameter init (mirrors the PyTorch module's fresh-module state)
# --------------------------------------------------------------------------
def init_basic_block(key, inplanes, planes):
  k1, k2 = jax.random.split(key)

  def conv_init(k, shape):                      # fan-in scaled init
    fan_in = shape[1] * shape[2] * shape[3]
    return jax.random.normal(k, shape, jnp.float32) * math.sqrt(2.0 / fan_in)

  return dict(
      bn1_g=jnp.ones((inplanes,), jnp.float32),
      bn1_b=jnp.zeros((inplanes,), jnp.float32),
      conv1_w=conv_init(k1, (planes, inplanes, 3, 3)),
      bn2_g=jnp.ones((planes,), jnp.float32),
      bn2_b=jnp.zeros((planes,), jnp.float32),
      conv2_w=conv_init(k2, (planes, planes, 3, 3)),
      bn3_g=jnp.ones((planes,), jnp.float32),
      bn3_b=jnp.zeros((planes,), jnp.float32),
  )


# --------------------------------------------------------------------------
# Pure-XLA f32 reference (numerical sanity check)
# --------------------------------------------------------------------------
def _reference_forward(p, x_nchw):
  def conv(x, w):
    return lax.conv_general_dilated(
        x, w, (1, 1), ((1, 1), (1, 1)),
        dimension_numbers=('NCHW', 'OIHW', 'NCHW'),
        precision=lax.Precision.HIGHEST)

  def bn(x, g, b, eps=1e-5):
    mean = jnp.mean(x, axis=(0, 2, 3), keepdims=True)
    var = jnp.mean(jnp.square(x - mean), axis=(0, 2, 3), keepdims=True)
    return ((x - mean) * lax.rsqrt(var + eps) * g.reshape(1, -1, 1, 1)
            + b.reshape(1, -1, 1, 1))

  out = bn(x_nchw, p['bn1_g'], p['bn1_b'])
  out = conv(out, p['conv1_w'])
  out = jax.nn.relu(bn(out, p['bn2_g'], p['bn2_b']))
  out = conv(out, p['conv2_w'])
  out = bn(out, p['bn3_g'], p['bn3_b'])
  sc = x_nchw
  if out.shape[1] != sc.shape[1]:
    padz = jnp.zeros((sc.shape[0], out.shape[1] - sc.shape[1]) + sc.shape[2:],
                     sc.dtype)
    sc = jnp.concatenate([sc, padz], axis=1)
  return out + sc


if __name__ == "__main__":
  B, INPLANES, PLANES, HW = 2, 4, 8, 16     # planes != inplanes exercises the
                                            # channel-padded residual path
  key = jax.random.PRNGKey(0)
  kparam, kx = jax.random.split(key)
  params = init_basic_block(kparam, INPLANES, PLANES)
  x = jax.random.normal(kx, (B, INPLANES, HW, HW), jnp.float32)

  fwd = jax.jit(functools.partial(basic_block_forward, stride=1, downsample=None))
  out = fwd(params, x)
  jax.block_until_ready(out)

  assert out.shape == (B, PLANES, HW, HW)
  assert bool(jnp.all(jnp.isfinite(out)))

  ref = _reference_forward(params, x)
  max_err = float(jnp.max(jnp.abs(out - ref)))
  assert max_err < 0.1, f"max abs error vs f32 reference too large: {max_err}"

  print("KERNEL_OK")
</pallas_src>

<mosaic_0001>
module attributes {stable_mosaic.version = 11 : i64} {
  func.func @_basic_block_kernel(%arg0: i32, %arg1: memref<2x4x256xf32, #tpu.memory_space<vmem>>, %arg2: memref<1x288xf32, #tpu.memory_space<vmem>>, %arg3: memref<8x36xbf16, #tpu.memory_space<vmem>>, %arg4: memref<8x72xbf16, #tpu.memory_space<vmem>>, %arg5: memref<4x1xf32, #tpu.memory_space<vmem>>, %arg6: memref<4x1xf32, #tpu.memory_space<vmem>>, %arg7: memref<8x1xf32, #tpu.memory_space<vmem>>, %arg8: memref<8x1xf32, #tpu.memory_space<vmem>>, %arg9: memref<8x1xf32, #tpu.memory_space<vmem>>, %arg10: memref<8x1xf32, #tpu.memory_space<vmem>>, %arg11: memref<2x8x256xf32, #tpu.memory_space<vmem>>, %arg12: memref<4x342xbf16, #tpu.memory_space<vmem>>, %arg13: memref<8x342xbf16, #tpu.memory_space<vmem>>, %arg14: memref<36x288xbf16, #tpu.memory_space<vmem>>, %arg15: memref<72x288xbf16, #tpu.memory_space<vmem>>, %arg16: memref<2x8x288xf32, #tpu.memory_space<vmem>>, %arg17: memref<2x8x288xf32, #tpu.memory_space<vmem>>) attributes {dimension_semantics = [#tpu.dimension_semantics<arbitrary>], iteration_bounds = array<i64: 1>, scalar_prefetch = 0 : i64, scratch_operands = 6 : i64, tpu.core_type = #tpu.core_type<tc>, window_params = [{pipeline_mode = #tpu.pipeline_mode<synchronous>, transform_indices = @transform_0, window_bounds = array<i64: 2, 4, 256>}, {pipeline_mode = #tpu.pipeline_mode<synchronous>, transform_indices = @transform_1, window_bounds = array<i64: 1, 288>}, {pipeline_mode = #tpu.pipeline_mode<synchronous>, transform_indices = @transform_2, window_bounds = array<i64: 8, 36>}, {pipeline_mode = #tpu.pipeline_mode<synchronous>, transform_indices = @transform_3, window_bounds = array<i64: 8, 72>}, {pipeline_mode = #tpu.pipeline_mode<synchronous>, transform_indices = @transform_4, window_bounds = array<i64: 4, 1>}, {pipeline_mode = #tpu.pipeline_mode<synchronous>, transform_indices = @transform_5, window_bounds = array<i64: 4, 1>}, {pipeline_mode = #tpu.pipeline_mode<synchronous>, transform_indices = @transform_6, window_bounds = array<i64: 8, 1>}, {pipeline_mode = #tpu.pipeline_mode<synchronous>, transform_indices = @transform_7, window_bounds = array<i64: 8, 1>}, {pipeline_mode = #tpu.pipeline_mode<synchronous>, transform_indices = @transform_8, window_bounds = array<i64: 8, 1>}, {pipeline_mode = #tpu.pipeline_mode<synchronous>, transform_indices = @transform_9, window_bounds = array<i64: 8, 1>}, {pipeline_mode = #tpu.pipeline_mode<synchronous>, transform_indices = @transform_10, window_bounds = array<i64: 2, 8, 256>}]} {
    %cst = arith.constant 0.000000e+00 : bf16
    %0 = vector.broadcast %cst : bf16 to vector<4x342xbf16>
    %c0 = arith.constant 0 : index
    %c0_0 = arith.constant 0 : index
    %1 = vector.load %arg12[%c0, %c0_0] : memref<4x342xbf16, #tpu.memory_space<vmem>>, vector<4x342xbf16>
    tpu.vector_store %arg12[%c0, %c0_0], %0 {strides = array<i32>} : memref<4x342xbf16, #tpu.memory_space<vmem>>, vector<4x342xbf16>,
    %cst_1 = arith.constant 0.000000e+00 : bf16
    %2 = vector.broadcast %cst_1 : bf16 to vector<8x342xbf16>
    %c0_2 = arith.constant 0 : index
    %c0_3 = arith.constant 0 : index
    %3 = vector.load %arg13[%c0_2, %c0_3] : memref<8x342xbf16, #tpu.memory_space<vmem>>, vector<8x342xbf16>
    tpu.vector_store %arg13[%c0_2, %c0_3], %2 {strides = array<i32>} : memref<8x342xbf16, #tpu.memory_space<vmem>>, vector<8x342xbf16>,
    %c0_4 = arith.constant 0 : index
    %c0_5 = arith.constant 0 : index
    %4 = vector.load %arg2[%c0_4, %c0_5] : memref<1x288xf32, #tpu.memory_space<vmem>>, vector<1x288xf32>
    %cst_6 = arith.constant 0.000000e+00 : f32
    %5 = vector.broadcast %cst_6 : f32 to vector<4x1xf32>
    %cst_7 = arith.constant 0.000000e+00 : f32
    %6 = vector.broadcast %cst_7 : f32 to vector<4x1xf32>
    %c0_8 = arith.constant 0 : index
    %c0_9 = arith.constant 0 : index
    %c0_10 = arith.constant 0 : index
    %7 = vector.load %arg1[%c0_8, %c0_9, %c0_10] : memref<2x4x256xf32, #tpu.memory_space<vmem>>, vector<1x4x256xf32>
    %8 = vector.shape_cast %7 : vector<1x4x256xf32> to vector<4x256xf32>
    %cst_11 = arith.constant dense<0.000000e+00> : vector<4xf32>
    %9 = vector.multi_reduction <add>, %8, %cst_11 [1] : vector<4x256xf32> to vector<4xf32>
    %10 = vector.shape_cast %9 : vector<4xf32> to vector<4x1xf32>
    %11 = arith.addf %5, %10 : vector<4x1xf32>
    %12 = arith.mulf %8, %8 : vector<4x256xf32>
    %cst_12 = arith.constant dense<0.000000e+00> : vector<4xf32>
    %13 = vector.multi_reduction <add>, %12, %cst_12 [1] : vector<4x256xf32> to vector<4xf32>
    %14 = vector.shape_cast %13 : vector<4xf32> to vector<4x1xf32>
    %15 = arith.addf %6, %14 : vector<4x1xf32>
    %c1 = arith.constant 1 : index
    %c0_13 = arith.constant 0 : index
    %c0_14 = arith.constant 0 : index
    %16 = vector.load %arg1[%c1, %c0_13, %c0_14] : memref<2x4x256xf32, #tpu.memory_space<vmem>>, vector<1x4x256xf32>
    %17 = vector.shape_cast %16 : vector<1x4x256xf32> to vector<4x256xf32>
    %cst_15 = arith.constant dense<0.000000e+00> : vector<4xf32>
    %18 = vector.multi_reduction <add>, %17, %cst_15 [1] : vector<4x256xf32> to vector<4xf32>
    %19 = vector.shape_cast %18 : vector<4xf32> to vector<4x1xf32>
    %20 = arith.addf %11, %19 : vector<4x1xf32>
    %21 = arith.mulf %17, %17 : vector<4x256xf32>
    %cst_16 = arith.constant dense<0.000000e+00> : vector<4xf32>
    %22 = vector.multi_reduction <add>, %21, %cst_16 [1] : vector<4x256xf32> to vector<4xf32>
    %23 = vector.shape_cast %22 : vector<4xf32> to vector<4x1xf32>
    %24 = arith.addf %15, %23 : vector<4x1xf32>
    %cst_17 = arith.constant 0.001953125 : f32
    %25 = vector.broadcast %cst_17 : f32 to vector<4x1xf32>
    %26 = arith.mulf %20, %25 : vector<4x1xf32>
    %cst_18 = arith.constant 0.001953125 : f32
    %27 = vector.broadcast %cst_18 : f32 to vector<4x1xf32>
    %28 = arith.mulf %24, %27 : vector<4x1xf32>
    %29 = arith.mulf %26, %26 : vector<4x1xf32>
    %30 = arith.subf %28, %29 : vector<4x1xf32>
    %c0_19 = arith.constant 0 : index
    %c0_20 = arith.constant 0 : index
    %31 = vector.load %arg5[%c0_19, %c0_20] : memref<4x1xf32, #tpu.memory_space<vmem>>, vector<4x1xf32>
    %cst_21 = arith.constant 9.99999974E-6 : f32
    %32 = vector.broadcast %cst_21 : f32 to vector<4x1xf32>
    %33 = arith.addf %30, %32 : vector<4x1xf32>
    %34 = math.rsqrt %33 : vector<4x1xf32>
    %35 = arith.mulf %31, %34 : vector<4x1xf32>
    %c0_22 = arith.constant 0 : index
    %c0_23 = arith.constant 0 : index
    %36 = vector.load %arg6[%c0_22, %c0_23] : memref<4x1xf32, #tpu.memory_space<vmem>>, vector<4x1xf32>
    %37 = arith.mulf %26, %35 : vector<4x1xf32>
    %38 = arith.subf %36, %37 : vector<4x1xf32>
    %c0_24 = arith.constant 0 : index
    %c0_25 = arith.constant 0 : index
    %39 = vector.load %arg3[%c0_24, %c0_25] : memref<8x36xbf16, #tpu.memory_space<vmem>>, vector<8x36xbf16>
    %cst_26 = arith.constant 0.000000e+00 : f32
    %40 = vector.broadcast %cst_26 : f32 to vector<8x1xf32>
    %cst_27 = arith.constant 0.000000e+00 : f32
    %41 = vector.broadcast %cst_27 : f32 to vector<8x1xf32>
    %c0_28 = arith.constant 0 : index
    %c0_29 = arith.constant 0 : index
    %c0_30 = arith.constant 0 : index
    %42 = vector.load %arg1[%c0_28, %c0_29, %c0_30] : memref<2x4x256xf32, #tpu.memory_space<vmem>>, vector<1x4x16xf32>
    %43 = vector.shape_cast %42 : vector<1x4x16xf32> to vector<4x16xf32>
    %44 = vector.broadcast %35 : vector<4x1xf32> to vector<4x16xf32>
    %45 = arith.mulf %43, %44 : vector<4x16xf32>
    %46 = vector.broadcast %38 : vector<4x1xf32> to vector<4x16xf32>
    %47 = arith.addf %45, %46 : vector<4x16xf32>
    %48 = arith.truncf %47 : vector<4x16xf32> to vector<4x16xbf16>
    %c0_31 = arith.constant 0 : index
    %c19 = arith.constant 19 : index
    %49 = vector.load %arg12[%c0_31, %c19] : memref<4x342xbf16, #tpu.memory_space<vmem>>, vector<4x16xbf16>
    tpu.vector_store %arg12[%c0_31, %c19], %48 {strides = array<i32>} : memref<4x342xbf16, #tpu.memory_space<vmem>>, vector<4x16xbf16>,
    %c0_32 = arith.constant 0 : index
    %c0_33 = arith.constant 0 : index
    %c16 = arith.constant 16 : index
    %50 = vector.load %arg1[%c0_32, %c0_33, %c16] : memref<2x4x256xf32, #tpu.memory_space<vmem>>, vector<1x4x16xf32>
    %51 = vector.shape_cast %50 : vector<1x4x16xf32> to vector<4x16xf32>
    %52 = vector.broadcast %35 : vector<4x1xf32> to vector<4x16xf32>
    %53 = arith.mulf %51, %52 : vector<4x16xf32>
    %54 = vector.broadcast %38 : vector<4x1xf32> to vector<4x16xf32>
    %55 = arith.addf %53, %54 : vector<4x16xf32>
    %56 = arith.truncf %55 : vector<4x16xf32> to vector<4x16xbf16>
    %c0_34 = arith.constant 0 : index
    %c37 = arith.constant 37 : index
    %57 = vector.load %arg12[%c0_34, %c37] : memref<4x342xbf16, #tpu.memory_space<vmem>>, vector<4x16xbf16>
    tpu.vector_store %arg12[%c0_34, %c37], %56 {strides = array<i32>} : memref<4x342xbf16, #tpu.memory_space<vmem>>, vector<4x16xbf16>,
    %c0_35 = arith.constant 0 : index
    %c0_36 = arith.constant 0 : index
    %c32 = arith.constant 32 : index
    %58 = vector.load %arg1[%c0_35, %c0_36, %c32] : memref<2x4x256xf32, #tpu.memory_space<vmem>>, vector<1x4x16xf32>
    %59 = vector.shape_cast %58 : vector<1x4x16xf32> to vector<4x16xf32>
    %60 = vector.broadcast %35 : vector<4x1xf32> to vector<4x16xf32>
    %61 = arith.mulf %59, %60 : vector<4x16xf32>
    %62 = vector.broadcast %38 : vector<4x1xf32> to vector<4x16xf32>
    %63 = arith.addf %61, %62 : vector<4x16xf32>
    %64 = arith.truncf %63 : vector<4x16xf32> to vector<4x16xbf16>
    %c0_37 = arith.constant 0 : index
    %c55 = arith.constant 55 : index
    %65 = vector.load %arg12[%c0_37, %c55] : memref<4x342xbf16, #tpu.memory_space<vmem>>, vector<4x16xbf16>
    tpu.vector_store %arg12[%c0_37, %c55], %64 {strides = array<i32>} : memref<4x342xbf16, #tpu.memory_space<vmem>>, vector<4x16xbf16>,
    %c0_38 = arith.constant 0 : index
    %c0_39 = arith.constant 0 : index
    %c48 = arith.constant 48 : index
    %66 = vector.load %arg1[%c0_38, %c0_39, %c48] : memref<2x4x256xf32, #tpu.memory_space<vmem>>, vector<1x4x16xf32>
    %67 = vector.shape_cast %66 : vector<1x4x16xf32> to vector<4x16xf32>
    %68 = vector.broadcast %35 : vector<4x1xf32> to vector<4x16xf32>
    %69 = arith.mulf %67, %68 : vector<4x16xf32>
    %70 = vector.broadcast %38 : vector<4x1xf32> to vector<4x16xf32>
    %71 = arith.addf %69, %70 : vector<4x16xf32>
    %72 = arith.truncf %71 : vector<4x16xf32> to vector<4x16xbf16>
    %c0_40 = arith.constant 0 : index
    %c73 = arith.constant 73 : index
    %73 = vector.load %arg12[%c0_40, %c73] : memref<4x342xbf16, #tpu.memory_space<vmem>>, vector<4x16xbf16>
    tpu.vector_store %arg12[%c0_40, %c73], %72 {strides = array<i32>} : memref<4x342xbf16, #tpu.memory_space<vmem>>, vector<4x16xbf16>,
    %c0_41 = arith.constant 0 : index
    %c0_42 = arith.constant 0 : index
    %c64 = arith.constant 64 : index
    %74 = vector.load %arg1[%c0_41, %c0_42, %c64] : memref<2x4x256xf32, #tpu.memory_space<vmem>>, vector<1x4x16xf32>
    %75 = vector.shape_cast %74 : vector<1x4x16xf32> to vector<4x16xf32>
    %76 = vector.broadcast %35 : vector<4x1xf32> to vector<4x16xf32>
    %77 = arith.mulf %75, %76 : vector<4x16xf32>
    %78 = vector.broadcast %38 : vector<4x1xf32> to vector<4x16xf32>
    %79 = arith.addf %77, %78 : vector<4x16xf32>
    %80 = arith.truncf %79 : vector<4x16xf32> to vector<4x16xbf16>
    %c0_43 = arith.constant 0 : index
    %c91 = arith.constant 91 : index
    %81 = vector.load %arg12[%c0_43, %c91] : memref<4x342xbf16, #tpu.memory_space<vmem>>, vector<4x16xbf16>
    tpu.vector_store %arg12[%c0_43, %c91], %80 {strides = array<i32>} : memref<4x342xbf16, #tpu.memory_space<vmem>>, vector<4x16xbf16>,
    %c0_44 = arith.constant 0 : index
    %c0_45 = arith.constant 0 : index
    %c80 = arith.constant 80 : index
    %82 = vector.load %arg1[%c0_44, %c0_45, %c80] : memref<2x4x256xf32, #tpu.memory_space<vmem>>, vector<1x4x16xf32>
    %83 = vector.shape_cast %82 : vector<1x4x16xf32> to vector<4x16xf32>
    %84 = vector.broadcast %35 : vector<4x1xf32> to vector<4x16xf32>
    %85 = arith.mulf %83, %84 : vector<4x16xf32>
    %86 = vector.broadcast %38 : vector<4x1xf32> to vector<4x16xf32>
    %87 = arith.addf %85, %86 : vector<4x16xf32>
    %88 = arith.truncf %87 : vector<4x16xf32> to vector<4x16xbf16>
    %c0_46 = arith.constant 0 : index
    %c109 = arith.constant 109 : index
    %89 = vector.load %arg12[%c0_46, %c109] : memref<4x342xbf16, #tpu.memory_space<vmem>>, vector<4x16xbf16>
    tpu.vector_store %arg12[%c0_46, %c109], %88 {strides = array<i32>} : memref<4x342xbf16, #tpu.memory_space<vmem>>, vector<4x16xbf16>,
    %c0_47 = arith.constant 0 : index
    %c0_48 = arith.constant 0 : index
    %c96 = arith.constant 96 : index
    %90 = vector.load %arg1[%c0_47, %c0_48, %c96] : memref<2x4x256xf32, #tpu.memory_space<vmem>>, vector<1x4x16xf32>
    %91 = vector.shape_cast %90 : vector<1x4x16xf32> to vector<4x16xf32>
    %92 = vector.broadcast %35 : vector<4x1xf32> to vector<4x16xf32>
    %93 = arith.mulf %91, %92 : vector<4x16xf32>
    %94 = vector.broadcast %38 : vector<4x1xf32> to vector<4x16xf32>
    %95 = arith.addf %93, %94 : vector<4x16xf32>
    %96 = arith.truncf %95 : vector<4x16xf32> to vector<4x16xbf16>
    %c0_49 = arith.constant 0 : index
    %c127 = arith.constant 127 : index
    %97 = vector.load %arg12[%c0_49, %c127] : memref<4x342xbf16, #tpu.memory_space<vmem>>, vector<4x16xbf16>
    tpu.vector_store %arg12[%c0_49, %c127], %96 {strides = array<i32>} : memref<4x342xbf16, #tpu.memory_space<vmem>>, vector<4x16xbf16>,
    %c0_50 = arith.constant 0 : index
    %c0_51 = arith.constant 0 : index
    %c112 = arith.constant 112 : index
    %98 = vector.load %arg1[%c0_50, %c0_51, %c112] : memref<2x4x256xf32, #tpu.memory_space<vmem>>, vector<1x4x16xf32>
    %99 = vector.shape_cast %98 : vector<1x4x16xf32> to vector<4x16xf32>
    %100 = vector.broadcast %35 : vector<4x1xf32> to vector<4x16xf32>
    %101 = arith.mulf %99, %100 : vector<4x16xf32>
    %102 = vector.broadcast %38 : vector<4x1xf32> to vector<4x16xf32>
    %103 = arith.addf %101, %102 : vector<4x16xf32>
    %104 = arith.truncf %103 : vector<4x16xf32> to vector<4x16xbf16>
    %c0_52 = arith.constant 0 : index
    %c145 = arith.constant 145 : index
    %105 = vector.load %arg12[%c0_52, %c145] : memref<4x342xbf16, #tpu.memory_space<vmem>>, vector<4x16xbf16>
    tpu.vector_store %arg12[%c0_52, %c145], %104 {strides = array<i32>} : memref<4x342xbf16, #tpu.memory_space<vmem>>, vector<4x16xbf16>,
    %c0_53 = arith.constant 0 : index
    %c0_54 = arith.constant 0 : index
    %c128 = arith.constant 128 : index
    %106 = vector.load %arg1[%c0_53, %c0_54, %c128] : memref<2x4x256xf32, #tpu.memory_space<vmem>>, vector<1x4x16xf32>
    %107 = vector.shape_cast %106 : vector<1x4x16xf32> to vector<4x16xf32>
    %108 = vector.broadcast %35 : vector<4x1xf32> to vector<4x16xf32>
    %109 = arith.mulf %107, %108 : vector<4x16xf32>
    %110 = vector.broadcast %38 : vector<4x1xf32> to vector<4x16xf32>
    %111 = arith.addf %109, %110 : vector<4x16xf32>
    %112 = arith.truncf %111 : vector<4x16xf32> to vector<4x16xbf16>
    %c0_55 = arith.constant 0 : index
    %c163 = arith.constant 163 : index
    %113 = vector.load %arg12[%c0_55, %c163] : memref<4x342xbf16, #tpu.memory_space<vmem>>, vector<4x16xbf16>
    tpu.vector_store %arg12[%c0_55, %c163], %112 {strides = array<i32>} : memref<4x342xbf16, #tpu.memory_space<vmem>>, vector<4x16xbf16>,
    %c0_56 = arith.constant 0 : index
    %c0_57 = arith.constant 0 : index
    %c144 = arith.constant 144 : index
    %114 = vector.load %arg1[%c0_56, %c0_57, %c144] : memref<2x4x256xf32, #tpu.memory_space<vmem>>, vector<1x4x16xf32>
    %115 = vector.shape_cast %114 : vector<1x4x16xf32> to vector<4x16xf32>
    %116 = vector.broadcast %35 : vector<4x1xf32> to vector<4x16xf32>
    %117 = arith.mulf %115, %116 : vector<4x16xf32>
    %118 = vector.broadcast %38 : vector<4x1xf32> to vector<4x16xf32>
    %119 = arith.addf %117, %118 : vector<4x16xf32>
    %120 = arith.truncf %119 : vector<4x16xf32> to vector<4x16xbf16>
    %c0_58 = arith.constant 0 : index
    %c181 = arith.constant 181 : index
    %121 = vector.load %arg12[%c0_58, %c181] : memref<4x342xbf16, #tpu.memory_space<vmem>>, vector<4x16xbf16>
    tpu.vector_store %arg12[%c0_58, %c181], %120 {strides = array<i32>} : memref<4x342xbf16, #tpu.memory_space<vmem>>, vector<4x16xbf16>,
    %c0_59 = arith.constant 0 : index
    %c0_60 = arith.constant 0 : index
    %c160 = arith.constant 160 : index
    %122 = vector.load %arg1[%c0_59, %c0_60, %c160] : memref<2x4x256xf32, #tpu.memory_space<vmem>>, vector<1x4x16xf32>
    %123 = vector.shape_cast %122 : vector<1x4x16xf32> to vector<4x16xf32>
    %124 = vector.broadcast %35 : vector<4x1xf32> to vector<4x16xf32>
    %125 = arith.mulf %123, %124 : vector<4x16xf32>
    %126 = vector.broadcast %38 : vector<4x1xf32> to vector<4x16xf32>
    %127 = arith.addf %125, %126 : vector<4x16xf32>
    %128 = arith.truncf %127 : vector<4x16xf32> to vector<4x16xbf16>
    %c0_61 = arith.constant 0 : index
    %c199 = arith.constant 199 : index
    %129 = vector.load %arg12[%c0_61, %c199] : memref<4x342xbf16, #tpu.memory_space<vmem>>, vector<4x16xbf16>
    tpu.vector_store %arg12[%c0_61, %c199], %128 {strides = array<i32>} : memref<4x342xbf16, #tpu.memory_space<vmem>>, vector<4x16xbf16>,
    %c0_62 = arith.constant 0 : index
    %c0_63 = arith.constant 0 : index
    %c176 = arith.constant 176 : index
    %130 = vector.load %arg1[%c0_62, %c0_63, %c176] : memref<2x4x256xf32, #tpu.memory_space<vmem>>, vector<1x4x16xf32>
    %131 = vector.shape_cast %130 : vector<1x4x16xf32> to vector<4x16xf32>
    %132 = vector.broadcast %35 : vector<4x1xf32> to vector<4x16xf32>
    %133 = arith.mulf %131, %132 : vector<4x16xf32>
    %134 = vector.broadcast %38 : vector<4x1xf32> to vector<4x16xf32>
    %135 = arith.addf %133, %134 : vector<4x16xf32>
    %136 = arith.truncf %135 : vector<4x16xf32> to vector<4x16xbf16>
    %c0_64 = arith.constant 0 : index
    %c217 = arith.constant 217 : index
    %137 = vector.load %arg12[%c0_64, %c217] : memref<4x342xbf16, #tpu.memory_space<vmem>>, vector<4x16xbf16>
    tpu.vector_store %arg12[%c0_64, %c217], %136 {strides = array<i32>} : memref<4x342xbf16, #tpu.memory_space<vmem>>, vector<4x16xbf16>,
    %c0_65 = arith.constant 0 : index
    %c0_66 = arith.constant 0 : index
    %c192 = arith.constant 192 : index
    %138 = vector.load %arg1[%c0_65, %c0_66, %c192] : memref<2x4x256xf32, #tpu.memory_space<vmem>>, vector<1x4x16xf32>
    %139 = vector.shape_cast %138 : vector<1x4x16xf32> to vector<4x16xf32>
    %140 = vector.broadcast %35 : vector<4x1xf32> to vector<4x16xf32>
    %141 = arith.mulf %139, %140 : vector<4x16xf32>
    %142 = vector.broadcast %38 : vector<4x1xf32> to vector<4x16xf32>
    %143 = arith.addf %141, %142 : vector<4x16xf32>
    %144 = arith.truncf %143 : vector<4x16xf32> to vector<4x16xbf16>
    %c0_67 = arith.constant 0 : index
    %c235 = arith.constant 235 : index
    %145 = vector.load %arg12[%c0_67, %c235] : memref<4x342xbf16, #tpu.memory_space<vmem>>, vector<4x16xbf16>
    tpu.vector_store %arg12[%c0_67, %c235], %144 {strides = array<i32>} : memref<4x342xbf16, #tpu.memory_space<vmem>>, vector<4x16xbf16>,
    %c0_68 = arith.constant 0 : index
    %c0_69 = arith.constant 0 : index
    %c208 = arith.constant 208 : index
    %146 = vector.load %arg1[%c0_68, %c0_69, %c208] : memref<2x4x256xf32, #tpu.memory_space<vmem>>, vector<1x4x16xf32>
    %147 = vector.shape_cast %146 : vector<1x4x16xf32> to vector<4x16xf32>
    %148 = vector.broadcast %35 : vector<4x1xf32> to vector<4x16xf32>
    %149 = arith.mulf %147, %148 : vector<4x16xf32>
    %150 = vector.broadcast %38 : vector<4x1xf32> to vector<4x16xf32>
    %151 = arith.addf %149, %150 : vector<4x16xf32>
    %152 = arith.truncf %151 : vector<4x16xf32> to vector<4x16xbf16>
    %c0_70 = arith.constant 0 : index
    %c253 = arith.constant 253 : index
    %153 = vector.load %arg12[%c0_70, %c253] : memref<4x342xbf16, #tpu.memory_space<vmem>>, vector<4x16xbf16>
    tpu.vector_store %arg12[%c0_70, %c253], %152 {strides = array<i32>} : memref<4x342xbf16, #tpu.memory_space<vmem>>, vector<4x16xbf16>,
    %c0_71 = arith.constant 0 : index
    %c0_72 = arith.constant 0 : index
    %c224 = arith.constant 224 : index
    %154 = vector.load %arg1[%c0_71, %c0_72, %c224] : memref<2x4x256xf32, #tpu.memory_space<vmem>>, vector<1x4x16xf32>
    %155 = vector.shape_cast %154 : vector<1x4x16xf32> to vector<4x16xf32>
    %156 = vector.broadcast %35 : vector<4x1xf32> to vector<4x16xf32>
    %157 = arith.mulf %155, %156 : vector<4x16xf32>
    %158 = vector.broadcast %38 : vector<4x1xf32> to vector<4x16xf32>
    %159 = arith.addf %157, %158 : vector<4x16xf32>
    %160 = arith.truncf %159 : vector<4x16xf32> to vector<4x16xbf16>
    %c0_73 = arith.constant 0 : index
    %c271 = arith.constant 271 : index
    %161 = vector.load %arg12[%c0_73, %c271] : memref<4x342xbf16, #tpu.memory_space<vmem>>, vector<4x16xbf16>
    tpu.vector_store %arg12[%c0_73, %c271], %160 {strides = array<i32>} : memref<4x342xbf16, #tpu.memory_space<vmem>>, vector<4x16xbf16>,
    %c0_74 = arith.constant 0 : index
    %c0_75 = arith.constant 0 : index
    %c240 = arith.constant 240 : index
    %162 = vector.load %arg1[%c0_74, %c0_75, %c240] : memref<2x4x256xf32, #tpu.memory_space<vmem>>, vector<1x4x16xf32>
    %163 = vector.shape_cast %162 : vector<1x4x16xf32> to vector<4x16xf32>
    %164 = vector.broadcast %35 : vector<4x1xf32> to vector<4x16xf32>
    %165 = arith.mulf %163, %164 : vector<4x16xf32>
    %166 = vector.broadcast %38 : vector<4x1xf32> to vector<4x16xf32>
    %167 = arith.addf %165, %166 : vector<4x16xf32>
    %168 = arith.truncf %167 : vector<4x16xf32> to vector<4x16xbf16>
    %c0_76 = arith.constant 0 : index
    %c289 = arith.constant 289 : index
    %169 = vector.load %arg12[%c0_76, %c289] : memref<4x342xbf16, #tpu.memory_space<vmem>>, vector<4x16xbf16>
    tpu.vector_store %arg12[%c0_76, %c289], %168 {strides = array<i32>} : memref<4x342xbf16, #tpu.memory_space<vmem>>, vector<4x16xbf16>,
    %c0_77 = arith.constant 0 : index
    %c0_78 = arith.constant 0 : index
    %170 = vector.load %arg12[%c0_77, %c0_78] : memref<4x342xbf16, #tpu.memory_space<vmem>>, vector<4x288xbf16>
    %c0_79 = arith.constant 0 : index
    %c0_80 = arith.constant 0 : index
    %171 = vector.load %arg14[%c0_79, %c0_80] : memref<36x288xbf16, #tpu.memory_space<vmem>>, vector<4x288xbf16>
    tpu.vector_store %arg14[%c0_79, %c0_80], %170 {strides = array<i32>} : memref<36x288xbf16, #tpu.memory_space<vmem>>, vector<4x288xbf16>,
    %c0_81 = arith.constant 0 : index
    %c1_82 = arith.constant 1 : index
    %172 = vector.load %arg12[%c0_81, %c1_82] : memref<4x342xbf16, #tpu.memory_space<vmem>>, vector<4x288xbf16>
    %c4 = arith.constant 4 : index
    %c0_83 = arith.constant 0 : index
    %173 = vector.load %arg14[%c4, %c0_83] : memref<36x288xbf16, #tpu.memory_space<vmem>>, vector<4x288xbf16>
    tpu.vector_store %arg14[%c4, %c0_83], %172 {strides = array<i32>} : memref<36x288xbf16, #tpu.memory_space<vmem>>, vector<4x288xbf16>,
    %c0_84 = arith.constant 0 : index
    %c2 = arith.constant 2 : index
    %174 = vector.load %arg12[%c0_84, %c2] : memref<4x342xbf16, #tpu.memory_space<vmem>>, vector<4x288xbf16>
    %c8 = arith.constant 8 : index
    %c0_85 = arith.constant 0 : index
    %175 = vector.load %arg14[%c8, %c0_85] : memref<36x288xbf16, #tpu.memory_space<vmem>>, vector<4x288xbf16>
    tpu.vector_store %arg14[%c8, %c0_85], %174 {strides = array<i32>} : memref<36x288xbf16, #tpu.memory_space<vmem>>, vector<4x288xbf16>,
    %c0_86 = arith.constant 0 : index
    %c18 = arith.constant 18 : index
    %176 = vector.load %arg12[%c0_86, %c18] : memref<4x342xbf16, #tpu.memory_space<vmem>>, vector<4x288xbf16>
    %c12 = arith.constant 12 : index
    %c0_87 = arith.constant 0 : index
    %177 = vector.load %arg14[%c12, %c0_87] : memref<36x288xbf16, #tpu.memory_space<vmem>>, vector<4x288xbf16>
    tpu.vector_store %arg14[%c12, %c0_87], %176 {strides = array<i32>} : memref<36x288xbf16, #tpu.memory_space<vmem>>, vector<4x288xbf16>,
    %c0_88 = arith.constant 0 : index
    %c19_89 = arith.constant 19 : index
    %178 = vector.load %arg12[%c0_88, %c19_89] : memref<4x342xbf16, #tpu.memory_space<vmem>>, vector<4x288xbf16>
    %c16_90 = arith.constant 16 : index
    %c0_91 = arith.constant 0 : index
    %179 = vector.load %arg14[%c16_90, %c0_91] : memref<36x288xbf16, #tpu.memory_space<vmem>>, vector<4x288xbf16>
    tpu.vector_store %arg14[%c16_90, %c0_91], %178 {strides = array<i32>} : memref<36x288xbf16, #tpu.memory_space<vmem>>, vector<4x288xbf16>,
    %c0_92 = arith.constant 0 : index
    %c20 = arith.constant 20 : index
    %180 = vector.load %arg12[%c0_92, %c20] : memref<4x342xbf16, #tpu.memory_space<vmem>>, vector<4x288xbf16>
    %c20_93 = arith.constant 20 : index
    %c0_94 = arith.constant 0 : index
    %181 = vector.load %arg14[%c20_93, %c0_94] : memref<36x288xbf16, #tpu.memory_space<vmem>>, vector<4x288xbf16>
    tpu.vector_store %arg14[%c20_93, %c0_94], %180 {strides = array<i32>} : memref<36x288xbf16, #tpu.memory_space<vmem>>, vector<4x288xbf16>,
    %c0_95 = arith.constant 0 : index
    %c36 = arith.constant 36 : index
    %182 = vector.load %arg12[%c0_95, %c36] : memref<4x342xbf16, #tpu.memory_space<vmem>>, vector<4x288xbf16>
    %c24 = arith.constant 24 : index
    %c0_96 = arith.constant 0 : index
    %183 = vector.load %arg14[%c24, %c0_96] : memref<36x288xbf16, #tpu.memory_space<vmem>>, vector<4x288xbf16>
    tpu.vector_store %arg14[%c24, %c0_96], %182 {strides = array<i32>} : memref<36x288xbf16, #tpu.memory_space<vmem>>, vector<4x288xbf16>,
    %c0_97 = arith.constant 0 : index
    %c37_98 = arith.constant 37 : index
    %184 = vector.load %arg12[%c0_97, %c37_98] : memref<4x342xbf16, #tpu.memory_space<vmem>>, vector<4x288xbf16>
    %c28 = arith.constant 28 : index
    %c0_99 = arith.constant 0 : index
    %185 = vector.load %arg14[%c28, %c0_99] : memref<36x288xbf16, #tpu.memory_space<vmem>>, vector<4x288xbf16>
    tpu.vector_store %arg14[%c28, %c0_99], %184 {strides = array<i32>} : memref<36x288xbf16, #tpu.memory_space<vmem>>, vector<4x288xbf16>,
    %c0_100 = arith.constant 0 : index
    %c38 = arith.constant 38 : index
    %186 = vector.load %arg12[%c0_100, %c38] : memref<4x342xbf16, #tpu.memory_space<vmem>>, vector<4x288xbf16>
    %c32_101 = arith.constant 32 : index
    %c0_102 = arith.constant 0 : index
    %187 = vector.load %arg14[%c32_101, %c0_102] : memref<36x288xbf16, #tpu.memory_space<vmem>>, vector<4x288xbf16>
    tpu.vector_store %arg14[%c32_101, %c0_102], %186 {strides = array<i32>} : memref<36x288xbf16, #tpu.memory_space<vmem>>, vector<4x288xbf16>,
    %c0_103 = arith.constant 0 : index
    %c0_104 = arith.constant 0 : index
    %188 = vector.load %arg14[%c0_103, %c0_104] : memref<36x288xbf16, #tpu.memory_space<vmem>>, vector<36x288xbf16>
    %cst_105 = arith.constant dense<0.000000e+00> : vector<8x288xf32>
    %189 = tpu.matmul %39, %188, %cst_105 {dimension_numbers = #tpu.dot_dimension_numbers<[1], [0], [0], [1], [0, 0, 1, 1], [], []>} : vector<8x36xbf16>, vector<36x288xbf16>, vector<8x288xf32> -> vector<8x288xf32>
    %c0_106 = arith.constant 0 : index
    %c0_107 = arith.constant 0 : index
    %c0_108 = arith.constant 0 : index
    %190 = vector.load %arg16[%c0_106, %c0_107, %c0_108] : memref<2x8x288xf32, #tpu.memory_space<vmem>>, vector<1x8x288xf32>
    %191 = vector.shape_cast %190 : vector<1x8x288xf32> to vector<8x288xf32>
    %192 = vector.shape_cast %189 : vector<8x288xf32> to vector<1x8x288xf32>
    tpu.vector_store %arg16[%c0_106, %c0_107, %c0_108], %192 {strides = array<i32>} : memref<2x8x288xf32, #tpu.memory_space<vmem>>, vector<1x8x288xf32>,
    %193 = vector.broadcast %4 : vector<1x288xf32> to vector<8x288xf32>
    %194 = arith.mulf %189, %193 : vector<8x288xf32>
    %cst_109 = arith.constant dense<0.000000e+00> : vector<8xf32>
    %195 = vector.multi_reduction <add>, %194, %cst_109 [1] : vector<8x288xf32> to vector<8xf32>
    %196 = vector.shape_cast %195 : vector<8xf32> to vector<8x1xf32>
    %197 = arith.addf %40, %196 : vector<8x1xf32>
    %198 = arith.mulf %194, %194 : vector<8x288xf32>
    %cst_110 = arith.constant dense<0.000000e+00> : vector<8xf32>
    %199 = vector.multi_reduction <add>, %198, %cst_110 [1] : vector<8x288xf32> to vector<8xf32>
    %200 = vector.shape_cast %199 : vector<8xf32> to vector<8x1xf32>
    %201 = arith.addf %41, %200 : vector<8x1xf32>
    %c1_111 = arith.constant 1 : index
    %c0_112 = arith.constant 0 : index
    %c0_113 = arith.constant 0 : index
    %202 = vector.load %arg1[%c1_111, %c0_112, %c0_113] : memref<2x4x256xf32, #tpu.memory_space<vmem>>, vector<1x4x16xf32>
    %203 = vector.shape_cast %202 : vector<1x4x16xf32> to vector<4x16xf32>
    %204 = vector.broadcast %35 : vector<4x1xf32> to vector<4x16xf32>
    %205 = arith.mulf %203, %204 : vector<4x16xf32>
    %206 = vector.broadcast %38 : vector<4x1xf32> to vector<4x16xf32>
    %207 = arith.addf %205, %206 : vector<4x16xf32>
    %208 = arith.truncf %207 : vector<4x16xf32> to vector<4x16xbf16>
    %c0_114 = arith.constant 0 : index
    %c19_115 = arith.constant 19 : index
    %209 = vector.load %arg12[%c0_114, %c19_115] : memref<4x342xbf16, #tpu.memory_space<vmem>>, vector<4x16xbf16>
    tpu.vector_store %arg12[%c0_114, %c19_115], %208 {strides = array<i32>} : memref<4x342xbf16, #tpu.memory_space<vmem>>, vector<4x16xbf16>,
    %c1_116 = arith.constant 1 : index
    %c0_117 = arith.constant 0 : index
    %c16_118 = arith.constant 16 : index
    %210 = vector.load %arg1[%c1_116, %c0_117, %c16_118] : memref<2x4x256xf32, #tpu.memory_space<vmem>>, vector<1x4x16xf32>
    %211 = vector.shape_cast %210 : vector<1x4x16xf32> to vector<4x16xf32>
    %212 = vector.broadcast %35 : vector<4x1xf32> to vector<4x16xf32>
    %213 = arith.mulf %211, %212 : vector<4x16xf32>
    %214 = vector.broadcast %38 : vector<4x1xf32> to vector<4x16xf32>
    %215 = arith.addf %213, %214 : vector<4x16xf32>
    %216 = arith.truncf %215 : vector<4x16xf32> to vector<4x16xbf16>
    %c0_119 = arith.constant 0 : index
    %c37_120 = arith.constant 37 : index
    %217 = vector.load %arg12[%c0_119, %c37_120] : memref<4x342xbf16, #tpu.memory_space<vmem>>, vector<4x16xbf16>
    tpu.vector_store %arg12[%c0_119, %c37_120], %216 {strides = array<i32>} : memref<4x342xbf16, #tpu.memory_space<vmem>>, vector<4x16xbf16>,
    %c1_121 = arith.constant 1 : index
    %c0_122 = arith.constant 0 : index
    %c32_123 = arith.constant 32 : index
    %218 = vector.load %arg1[%c1_121, %c0_122, %c32_123] : memref<2x4x256xf32, #tpu.memory_space<vmem>>, vector<1x4x16xf32>
    %219 = vector.shape_cast %218 : vector<1x4x16xf32> to vector<4x16xf32>
    %220 = vector.broadcast %35 : vector<4x1xf32> to vector<4x16xf32>
    %221 = arith.mulf %219, %220 : vector<4x16xf32>
    %222 = vector.broadcast %38 : vector<4x1xf32> to vector<4x16xf32>
    %223 = arith.addf %221, %222 : vector<4x16xf32>
    %224 = arith.truncf %223 : vector<4x16xf32> to vector<4x16xbf16>
    %c0_124 = arith.constant 0 : index
    %c55_125 = arith.constant 55 : index
    %225 = vector.load %arg12[%c0_124, %c55_125] : memref<4x342xbf16, #tpu.memory_space<vmem>>, vector<4x16xbf16>
    tpu.vector_store %arg12[%c0_124, %c55_125], %224 {strides = array<i32>} : memref<4x342xbf16, #tpu.memory_space<vmem>>, vector<4x16xbf16>,
    %c1_126 = arith.constant 1 : index
    %c0_127 = arith.constant 0 : index
    %c48_128 = arith.constant 48 : index
    %226 = vector.load %arg1[%c1_126, %c0_127, %c48_128] : memref<2x4x256xf32, #tpu.memory_space<vmem>>, vector<1x4x16xf32>
    %227 = vector.shape_cast %226 : vector<1x4x16xf32> to vector<4x16xf32>
    %228 = vector.broadcast %35 : vector<4x1xf32> to vector<4x16xf32>
    %229 = arith.mulf %227, %228 : vector<4x16xf32>
    %230 = vector.broadcast %38 : vector<4x1xf32> to vector<4x16xf32>
    %231 = arith.addf %229, %230 : vector<4x16xf32>
    %232 = arith.truncf %231 : vector<4x16xf32> to vector<4x16xbf16>
    %c0_129 = arith.constant 0 : index
    %c73_130 = arith.constant 73 : index
    %233 = vector.load %arg12[%c0_129, %c73_130] : memref<4x342xbf16, #tpu.memory_space<vmem>>, vector<4x16xbf16>
    tpu.vector_store %arg12[%c0_129, %c73_130], %232 {strides = array<i32>} : memref<4x342xbf16, #tpu.memory_space<vmem>>, vector<4x16xbf16>,
    %c1_131 = arith.constant 1 : index
    %c0_132 = arith.constant 0 : index
    %c64_133 = arith.constant 64 : index
    %234 = vector.load %arg1[%c1_131, %c0_132, %c64_133] : memref<2x4x256xf32, #tpu.memory_space<vmem>>, vector<1x4x16xf32>
    %235 = vector.shape_cast %234 : vector<1x4x16xf32> to vector<4x16xf32>
    %236 = vector.broadcast %35 : vector<4x1xf32> to vector<4x16xf32>
    %237 = arith.mulf %235, %236 : vector<4x16xf32>
    %238 = vector.broadcast %38 : vector<4x1xf32> to vector<4x16xf32>
    %239 = arith.addf %237, %238 : vector<4x16xf32>
    %240 = arith.truncf %239 : vector<4x16xf32> to vector<4x16xbf16>
    %c0_134 = arith.constant 0 : index
    %c91_135 = arith.constant 91 : index
    %241 = vector.load %arg12[%c0_134, %c91_135] : memref<4x342xbf16, #tpu.memory_space<vmem>>, vector<4x16xbf16>
    tpu.vector_store %arg12[%c0_134, %c91_135], %240 {strides = array<i32>} : memref<4x342xbf16, #tpu.memory_space<vmem>>, vector<4x16xbf16>,
    %c1_136 = arith.constant 1 : index
    %c0_137 = arith.constant 0 : index
    %c80_138 = arith.constant 80 : index
    %242 = vector.load %arg1[%c1_136, %c0_137, %c80_138] : memref<2x4x256xf32, #tpu.memory_space<vmem>>, vector<1x4x16xf32>
    %243 = vector.shape_cast %242 : vector<1x4x16xf32> to vector<4x16xf32>
    %244 = vector.broadcast %35 : vector<4x1xf32> to vector<4x16xf32>
    %245 = arith.mulf %243, %244 : vector<4x16xf32>
    %246 = vector.broadcast %38 : vector<4x1xf32> to vector<4x16xf32>
    %247 = arith.addf %245, %246 : vector<4x16xf32>
    %248 = arith.truncf %247 : vector<4x16xf32> to vector<4x16xbf16>
    %c0_139 = arith.constant 0 : index
    %c109_140 = arith.constant 109 : index
    %249 = vector.load %arg12[%c0_139, %c109_140] : memref<4x342xbf16, #tpu.memory_space<vmem>>, vector<4x16xbf16>
    tpu.vector_store %arg12[%c0_139, %c109_140], %248 {strides = array<i32>} : memref<4x342xbf16, #tpu.memory_space<vmem>>, vector<4x16xbf16>,
    %c1_141 = arith.constant 1 : index
    %c0_142 = arith.constant 0 : index
    %c96_143 = arith.constant 96 : index
    %250 = vector.load %arg1[%c1_141, %c0_142, %c96_143] : memref<2x4x256xf32, #tpu.memory_space<vmem>>, vector<1x4x16xf32>
    %251 = vector.shape_cast %250 : vector<1x4x16xf32> to vector<4x16xf32>
    %252 = vector.broadcast %35 : vector<4x1xf32> to vector<4x16xf32>
    %253 = arith.mulf %251, %252 : vector<4x16xf32>
    %254 = vector.broadcast %38 : vector<4x1xf32> to vector<4x16xf32>
    %255 = arith.addf %253, %254 : vector<4x16xf32>
    %256 = arith.truncf %255 : vector<4x16xf32> to vector<4x16xbf16>
    %c0_144 = arith.constant 0 : index
    %c127_145 = arith.constant 127 : index
    %257 = vector.load %arg12[%c0_144, %c127_145] : memref<4x342xbf16, #tpu.memory_space<vmem>>, vector<4x16xbf16>
    tpu.vector_store %arg12[%c0_144, %c127_145], %256 {strides = array<i32>} : memref<4x342xbf16, #tpu.memory_space<vmem>>, vector<4x16xbf16>,
    %c1_146 = arith.constant 1 : index
    %c0_147 = arith.constant 0 : index
    %c112_148 = arith.constant 112 : index
    %258 = vector.load %arg1[%c1_146, %c0_147, %c112_148] : memref<2x4x256xf32, #tpu.memory_space<vmem>>, vector<1x4x16xf32>
    %259 = vector.shape_cast %258 : vector<1x4x16xf32> to vector<4x16xf32>
    %260 = vector.broadcast %35 : vector<4x1xf32> to vector<4x16xf32>
    %261 = arith.mulf %259, %260 : vector<4x16xf32>
    %262 = vector.broadcast %38 : vector<4x1xf32> to vector<4x16xf32>
    %263 = arith.addf %261, %262 : vector<4x16xf32>
    %264 = arith.truncf %263 : vector<4x16xf32> to vector<4x16xbf16>
    %c0_149 = arith.constant 0 : index
    %c145_150 = arith.constant 145 : index
    %265 = vector.load %arg12[%c0_149, %c145_150] : memref<4x342xbf16, #tpu.memory_space<vmem>>, vector<4x16xbf16>
    tpu.vector_store %arg12[%c0_149, %c145_150], %264 {strides = array<i32>} : memref<4x342xbf16, #tpu.memory_space<vmem>>, vector<4x16xbf16>,
    %c1_151 = arith.constant 1 : index
    %c0_152 = arith.constant 0 : index
    %c128_153 = arith.constant 128 : index
    %266 = vector.load %arg1[%c1_151, %c0_152, %c128_153] : memref<2x4x256xf32, #tpu.memory_space<vmem>>, vector<1x4x16xf32>
    %267 = vector.shape_cast %266 : vector<1x4x16xf32> to vector<4x16xf32>
    %268 = vector.broadcast %35 : vector<4x1xf32> to vector<4x16xf32>
    %269 = arith.mulf %267, %268 : vector<4x16xf32>
    %270 = vector.broadcast %38 : vector<4x1xf32> to vector<4x16xf32>
    %271 = arith.addf %269, %270 : vector<4x16xf32>
    %272 = arith.truncf %271 : vector<4x16xf32> to vector<4x16xbf16>
    %c0_154 = arith.constant 0 : index
    %c163_155 = arith.constant 163 : index
    %273 = vector.load %arg12[%c0_154, %c163_155] : memref<4x342xbf16, #tpu.memory_space<vmem>>, vector<4x16xbf16>
    tpu.vector_store %arg12[%c0_154, %c163_155], %272 {strides = array<i32>} : memref<4x342xbf16, #tpu.memory_space<vmem>>, vector<4x16xbf16>,
    %c1_156 = arith.constant 1 : index
    %c0_157 = arith.constant 0 : index
    %c144_158 = arith.constant 144 : index
    %274 = vector.load %arg1[%c1_156, %c0_157, %c144_158] : memref<2x4x256xf32, #tpu.memory_space<vmem>>, vector<1x4x16xf32>
    %275 = vector.shape_cast %274 : vector<1x4x16xf32> to vector<4x16xf32>
    %276 = vector.broadcast %35 : vector<4x1xf32> to vector<4x16xf32>
    %277 = arith.mulf %275, %276 : vector<4x16xf32>
    %278 = vector.broadcast %38 : vector<4x1xf32> to vector<4x16xf32>
    %279 = arith.addf %277, %278 : vector<4x16xf32>
    %280 = arith.truncf %279 : vector<4x16xf32> to vector<4x16xbf16>
    %c0_159 = arith.constant 0 : index
    %c181_160 = arith.constant 181 : index
    %281 = vector.load %arg12[%c0_159, %c181_160] : memref<4x342xbf16, #tpu.memory_space<vmem>>, vector<4x16xbf16>
    tpu.vector_store %arg12[%c0_159, %c181_160], %280 {strides = array<i32>} : memref<4x342xbf16, #tpu.memory_space<vmem>>, vector<4x16xbf16>,
    %c1_161 = arith.constant 1 : index
    %c0_162 = arith.constant 0 : index
    %c160_163 = arith.constant 160 : index
    %282 = vector.load %arg1[%c1_161, %c0_162, %c160_163] : memref<2x4x256xf32, #tpu.memory_space<vmem>>, vector<1x4x16xf32>
    %283 = vector.shape_cast %282 : vector<1x4x16xf32> to vector<4x16xf32>
    %284 = vector.broadcast %35 : vector<4x1xf32> to vector<4x16xf32>
    %285 = arith.mulf %283, %284 : vector<4x16xf32>
    %286 = vector.broadcast %38 : vector<4x1xf32> to vector<4x16xf32>
    %287 = arith.addf %285, %286 : vector<4x16xf32>
    %288 = arith.truncf %287 : vector<4x16xf32> to vector<4x16xbf16>
    %c0_164 = arith.constant 0 : index
    %c199_165 = arith.constant 199 : index
    %289 = vector.load %arg12[%c0_164, %c199_165] : memref<4x342xbf16, #tpu.memory_space<vmem>>, vector<4x16xbf16>
    tpu.vector_store %arg12[%c0_164, %c199_165], %288 {strides = array<i32>} : memref<4x342xbf16, #tpu.memory_space<vmem>>, vector<4x16xbf16>,
    %c1_166 = arith.constant 1 : index
    %c0_167 = arith.constant 0 : index
    %c176_168 = arith.constant 176 : index
    %290 = vector.load %arg1[%c1_166, %c0_167, %c176_168] : memref<2x4x256xf32, #tpu.memory_space<vmem>>, vector<1x4x16xf32>
    %291 = vector.shape_cast %290 : vector<1x4x16xf32> to vector<4x16xf32>
    %292 = vector.broadcast %35 : vector<4x1xf32> to vector<4x16xf32>
    %293 = arith.mulf %291, %292 : vector<4x16xf32>
    %294 = vector.broadcast %38 : vector<4x1xf32> to vector<4x16xf32>
    %295 = arith.addf %293, %294 : vector<4x16xf32>
    %296 = arith.truncf %295 : vector<4x16xf32> to vector<4x16xbf16>
    %c0_169 = arith.constant 0 : index
    %c217_170 = arith.constant 217 : index
    %297 = vector.load %arg12[%c0_169, %c217_170] : memref<4x342xbf16, #tpu.memory_space<vmem>>, vector<4x16xbf16>
    tpu.vector_store %arg12[%c0_169, %c217_170], %296 {strides = array<i32>} : memref<4x342xbf16, #tpu.memory_space<vmem>>, vector<4x16xbf16>,
    %c1_171 = arith.constant 1 : index
    %c0_172 = arith.constant 0 : index
    %c192_173 = arith.constant 192 : index
    %298 = vector.load %arg1[%c1_171, %c0_172, %c192_173] : memref<2x4x256xf32, #tpu.memory_space<vmem>>, vector<1x4x16xf32>
    %299 = vector.shape_cast %298 : vector<1x4x16xf32> to vector<4x16xf32>
    %300 = vector.broadcast %35 : vector<4x1xf32> to vector<4x16xf32>
    %301 = arith.mulf %299, %300 : vector<4x16xf32>
    %302 = vector.broadcast %38 : vector<4x1xf32> to vector<4x16xf32>
    %303 = arith.addf %301, %302 : vector<4x16xf32>
    %304 = arith.truncf %303 : vector<4x16xf32> to vector<4x16xbf16>
    %c0_174 = arith.constant 0 : index
    %c235_175 = arith.constant 235 : index
    %305 = vector.load %arg12[%c0_174, %c235_175] : memref<4x342xbf16, #tpu.memory_space<vmem>>, vector<4x16xbf16>
    tpu.vector_store %arg12[%c0_174, %c235_175], %304 {strides = array<i32>} : memref<4x342xbf16, #tpu.memory_space<vmem>>, vector<4x16xbf16>,
    %c1_176 = arith.constant 1 : index
    %c0_177 = arith.constant 0 : index
    %c208_178 = arith.constant 208 : index
    %306 = vector.load %arg1[%c1_176, %c0_177, %c208_178] : memref<2x4x256xf32, #tpu.memory_space<vmem>>, vector<1x4x16xf32>
    %307 = vector.shape_cast %306 : vector<1x4x16xf32> to vector<4x16xf32>
    %308 = vector.broadcast %35 : vector<4x1xf32> to vector<4x16xf32>
    %309 = arith.mulf %307, %308 : vector<4x16xf32>
    %310 = vector.broadcast %38 : vector<4x1xf32> to vector<4x16xf32>
    %311 = arith.addf %309, %310 : vector<4x16xf32>
    %312 = arith.truncf %311 : vector<4x16xf32> to vector<4x16xbf16>
    %c0_179 = arith.constant 0 : index
    %c253_180 = arith.constant 253 : index
    %313 = vector.load %arg12[%c0_179, %c253_180] : memref<4x342xbf16, #tpu.memory_space<vmem>>, vector<4x16xbf16>
    tpu.vector_store %arg12[%c0_179, %c253_180], %312 {strides = array<i32>} : memref<4x342xbf16, #tpu.memory_space<vmem>>, vector<4x16xbf16>,
    %c1_181 = arith.constant 1 : index
    %c0_182 = arith.constant 0 : index
    %c224_183 = arith.constant 224 : index
    %314 = vector.load %arg1[%c1_181, %c0_182, %c224_183] : memref<2x4x256xf32, #tpu.memory_space<vmem>>, vector<1x4x16xf32>
    %315 = vector.shape_cast %314 : vector<1x4x16xf32> to vector<4x16xf32>
    %316 = vector.broadcast %35 : vector<4x1xf32> to vector<4x16xf32>
    %317 = arith.mulf %315, %316 : vector<4x16xf32>
    %318 = vector.broadcast %38 : vector<4x1xf32> to vector<4x16xf32>
    %319 = arith.addf %317, %318 : vector<4x16xf32>
    %320 = arith.truncf %319 : vector<4x16xf32> to vector<4x16xbf16>
    %c0_184 = arith.constant 0 : index
    %c271_185 = arith.constant 271 : index
    %321 = vector.load %arg12[%c0_184, %c271_185] : memref<4x342xbf16, #tpu.memory_space<vmem>>, vector<4x16xbf16>
    tpu.vector_store %arg12[%c0_184, %c271_185], %320 {strides = array<i32>} : memref<4x342xbf16, #tpu.memory_space<vmem>>, vector<4x16xbf16>,
    %c1_186 = arith.constant 1 : index
    %c0_187 = arith.constant 0 : index
    %c240_188 = arith.constant 240 : index
    %322 = vector.load %arg1[%c1_186, %c0_187, %c240_188] : memref<2x4x256xf32, #tpu.memory_space<vmem>>, vector<1x4x16xf32>
    %323 = vector.shape_cast %322 : vector<1x4x16xf32> to vector<4x16xf32>
    %324 = vector.broadcast %35 : vector<4x1xf32> to vector<4x16xf32>
    %325 = arith.mulf %323, %324 : vector<4x16xf32>
    %326 = vector.broadcast %38 : vector<4x1xf32> to vector<4x16xf32>
    %327 = arith.addf %325, %326 : vector<4x16xf32>
    %328 = arith.truncf %327 : vector<4x16xf32> to vector<4x16xbf16>
    %c0_189 = arith.constant 0 : index
    %c289_190 = arith.constant 289 : index
    %329 = vector.load %arg12[%c0_189, %c289_190] : memref<4x342xbf16, #tpu.memory_space<vmem>>, vector<4x16xbf16>
    tpu.vector_store %arg12[%c0_189, %c289_190], %328 {strides = array<i32>} : memref<4x342xbf16, #tpu.memory_space<vmem>>, vector<4x16xbf16>,
    %c0_191 = arith.constant 0 : index
    %c0_192 = arith.constant 0 : index
    %330 = vector.load %arg12[%c0_191, %c0_192] : memref<4x342xbf16, #tpu.memory_space<vmem>>, vector<4x288xbf16>
    %c0_193 = arith.constant 0 : index
    %c0_194 = arith.constant 0 : index
    %331 = vector.load %arg14[%c0_193, %c0_194] : memref<36x288xbf16, #tpu.memory_space<vmem>>, vector<4x288xbf16>
    tpu.vector_store %arg14[%c0_193, %c0_194], %330 {strides = array<i32>} : memref<36x288xbf16, #tpu.memory_space<vmem>>, vector<4x288xbf16>,
    %c0_195 = arith.constant 0 : index
    %c1_196 = arith.constant 1 : index
    %332 = vector.load %arg12[%c0_195, %c1_196] : memref<4x342xbf16, #tpu.memory_space<vmem>>, vector<4x288xbf16>
    %c4_197 = arith.constant 4 : index
    %c0_198 = arith.constant 0 : index
    %333 = vector.load %arg14[%c4_197, %c0_198] : memref<36x288xbf16, #tpu.memory_space<vmem>>, vector<4x288xbf16>
    tpu.vector_store %arg14[%c4_197, %c0_198], %332 {strides = array<i32>} : memref<36x288xbf16, #tpu.memory_space<vmem>>, vector<4x288xbf16>,
    %c0_199 = arith.constant 0 : index
    %c2_200 = arith.constant 2 : index
    %334 = vector.load %arg12[%c0_199, %c2_200] : memref<4x342xbf16, #tpu.memory_space<vmem>>, vector<4x288xbf16>
    %c8_201 = arith.constant 8 : index
    %c0_202 = arith.constant 0 : index
    %335 = vector.load %arg14[%c8_201, %c0_202] : memref<36x288xbf16, #tpu.memory_space<vmem>>, vector<4x288xbf16>
    tpu.vector_store %arg14[%c8_201, %c0_202], %334 {strides = array<i32>} : memref<36x288xbf16, #tpu.memory_space<vmem>>, vector<4x288xbf16>,
    %c0_203 = arith.constant 0 : index
    %c18_204 = arith.constant 18 : index
    %336 = vector.load %arg12[%c0_203, %c18_204] : memref<4x342xbf16, #tpu.memory_space<vmem>>, vector<4x288xbf16>
    %c12_205 = arith.constant 12 : index
    %c0_206 = arith.constant 0 : index
    %337 = vector.load %arg14[%c12_205, %c0_206] : memref<36x288xbf16, #tpu.memory_space<vmem>>, vector<4x288xbf16>
    tpu.vector_store %arg14[%c12_205, %c0_206], %336 {strides = array<i32>} : memref<36x288xbf16, #tpu.memory_space<vmem>>, vector<4x288xbf16>,
    %c0_207 = arith.constant 0 : index
    %c19_208 = arith.constant 19 : index
    %338 = vector.load %arg12[%c0_207, %c19_208] : memref<4x342xbf16, #tpu.memory_space<vmem>>, vector<4x288xbf16>
    %c16_209 = arith.constant 16 : index
    %c0_210 = arith.constant 0 : index
    %339 = vector.load %arg14[%c16_209, %c0_210] : memref<36x288xbf16, #tpu.memory_space<vmem>>, vector<4x288xbf16>
    tpu.vector_store %arg14[%c16_209, %c0_210], %338 {strides = array<i32>} : memref<36x288xbf16, #tpu.memory_space<vmem>>, vector<4x288xbf16>,
    %c0_211 = arith.constant 0 : index
    %c20_212 = arith.constant 20 : index
    %340 = vector.load %arg12[%c0_211, %c20_212] : memref<4x342xbf16, #tpu.memory_space<vmem>>, vector<4x288xbf16>
    %c20_213 = arith.constant 20 : index
    %c0_214 = arith.constant 0 : index
    %341 = vector.load %arg14[%c20_213, %c0_214] : memref<36x288xbf16, #tpu.memory_space<vmem>>, vector<4x288xbf16>
    tpu.vector_store %arg14[%c20_213, %c0_214], %340 {strides = array<i32>} : memref<36x288xbf16, #tpu.memory_space<vmem>>, vector<4x288xbf16>,
    %c0_215 = arith.constant 0 : index
    %c36_216 = arith.constant 36 : index
    %342 = vector.load %arg12[%c0_215, %c36_216] : memref<4x342xbf16, #tpu.memory_space<vmem>>, vector<4x288xbf16>
    %c24_217 = arith.constant 24 : index
    %c0_218 = arith.constant 0 : index
    %343 = vector.load %arg14[%c24_217, %c0_218] : memref<36x288xbf16, #tpu.memory_space<vmem>>, vector<4x288xbf16>
    tpu.vector_store %arg14[%c24_217, %c0_218], %342 {strides = array<i32>} : memref<36x288xbf16, #tpu.memory_space<vmem>>, vector<4x288xbf16>,
    %c0_219 = arith.constant 0 : index
    %c37_220 = arith.constant 37 : index
    %344 = vector.load %arg12[%c0_219, %c37_220] : memref<4x342xbf16, #tpu.memory_space<vmem>>, vector<4x288xbf16>
    %c28_221 = arith.constant 28 : index
    %c0_222 = arith.constant 0 : index
    %345 = vector.load %arg14[%c28_221, %c0_222] : memref<36x288xbf16, #tpu.memory_space<vmem>>, vector<4x288xbf16>
    tpu.vector_store %arg14[%c28_221, %c0_222], %344 {strides = array<i32>} : memref<36x288xbf16, #tpu.memory_space<vmem>>, vector<4x288xbf16>,
    %c0_223 = arith.constant 0 : index
    %c38_224 = arith.constant 38 : index
    %346 = vector.load %arg12[%c0_223, %c38_224] : memref<4x342xbf16, #tpu.memory_space<vmem>>, vector<4x288xbf16>
    %c32_225 = arith.constant 32 : index
    %c0_226 = arith.constant 0 : index
    %347 = vector.load %arg14[%c32_225, %c0_226] : memref<36x288xbf16, #tpu.memory_space<vmem>>, vector<4x288xbf16>
    tpu.vector_store %arg14[%c32_225, %c0_226], %346 {strides = array<i32>} : memref<36x288xbf16, #tpu.memory_space<vmem>>, vector<4x288xbf16>,
    %c0_227 = arith.constant 0 : index
    %c0_228 = arith.constant 0 : index
    %348 = vector.load %arg14[%c0_227, %c0_228] : memref<36x288xbf16, #tpu.memory_space<vmem>>, vector<36x288xbf16>
    %cst_229 = arith.constant dense<0.000000e+00> : vector<8x288xf32>
    %349 = tpu.matmul %39, %348, %cst_229 {dimension_numbers = #tpu.dot_dimension_numbers<[1], [0], [0], [1], [0, 0, 1, 1], [], []>} : vector<8x36xbf16>, vector<36x288xbf16>, vector<8x288xf32> -> vector<8x288xf32>
    %c1_230 = arith.constant 1 : index
    %c0_231 = arith.constant 0 : index
    %c0_232 = arith.constant 0 : index
    %350 = vector.load %arg16[%c1_230, %c0_231, %c0_232] : memref<2x8x288xf32, #tpu.memory_space<vmem>>, vector<1x8x288xf32>
    %351 = vector.shape_cast %350 : vector<1x8x288xf32> to vector<8x288xf32>
    %352 = vector.shape_cast %349 : vector<8x288xf32> to vector<1x8x288xf32>
    tpu.vector_store %arg16[%c1_230, %c0_231, %c0_232], %352 {strides = array<i32>} : memref<2x8x288xf32, #tpu.memory_space<vmem>>, vector<1x8x288xf32>,
    %353 = vector.broadcast %4 : vector<1x288xf32> to vector<8x288xf32>
    %354 = arith.mulf %349, %353 : vector<8x288xf32>
    %cst_233 = arith.constant dense<0.000000e+00> : vector<8xf32>
    %355 = vector.multi_reduction <add>, %354, %cst_233 [1] : vector<8x288xf32> to vector<8xf32>
    %356 = vector.shape_cast %355 : vector<8xf32> to vector<8x1xf32>
    %357 = arith.addf %197, %356 : vector<8x1xf32>
    %358 = arith.mulf %354, %354 : vector<8x288xf32>
    %cst_234 = arith.constant dense<0.000000e+00> : vector<8xf32>
    %359 = vector.multi_reduction <add>, %358, %cst_234 [1] : vector<8x288xf32> to vector<8xf32>
    %360 = vector.shape_cast %359 : vector<8xf32> to vector<8x1xf32>
    %361 = arith.addf %201, %360 : vector<8x1xf32>
    %cst_235 = arith.constant 0.001953125 : f32
    %362 = vector.broadcast %cst_235 : f32 to vector<8x1xf32>
    %363 = arith.mulf %357, %362 : vector<8x1xf32>
    %cst_236 = arith.constant 0.001953125 : f32
    %364 = vector.broadcast %cst_236 : f32 to vector<8x1xf32>
    %365 = arith.mulf %361, %364 : vector<8x1xf32>
    %366 = arith.mulf %363, %363 : vector<8x1xf32>
    %367 = arith.subf %365, %366 : vector<8x1xf32>
    %c0_237 = arith.constant 0 : index
    %c0_238 = arith.constant 0 : index
    %368 = vector.load %arg7[%c0_237, %c0_238] : memref<8x1xf32, #tpu.memory_space<vmem>>, vector<8x1xf32>
    %cst_239 = arith.constant 9.99999974E-6 : f32
    %369 = vector.broadcast %cst_239 : f32 to vector<8x1xf32>
    %370 = arith.addf %367, %369 : vector<8x1xf32>
    %371 = math.rsqrt %370 : vector<8x1xf32>
    %372 = arith.mulf %368, %371 : vector<8x1xf32>
    %c0_240 = arith.constant 0 : index
    %c0_241 = arith.constant 0 : index
    %373 = vector.load %arg8[%c0_240, %c0_241] : memref<8x1xf32, #tpu.memory_space<vmem>>, vector<8x1xf32>
    %374 = arith.mulf %363, %372 : vector<8x1xf32>
    %375 = arith.subf %373, %374 : vector<8x1xf32>
    %c0_242 = arith.constant 0 : index
    %c0_243 = arith.constant 0 : index
    %376 = vector.load %arg4[%c0_242, %c0_243] : memref<8x72xbf16, #tpu.memory_space<vmem>>, vector<8x72xbf16>
    %cst_244 = arith.constant 0.000000e+00 : f32
    %377 = vector.broadcast %cst_244 : f32 to vector<8x1xf32>
    %cst_245 = arith.constant 0.000000e+00 : f32
    %378 = vector.broadcast %cst_245 : f32 to vector<8x1xf32>
    %c0_246 = arith.constant 0 : index
    %c0_247 = arith.constant 0 : index
    %c0_248 = arith.constant 0 : index
    %379 = vector.load %arg16[%c0_246, %c0_247, %c0_248] : memref<2x8x288xf32, #tpu.memory_space<vmem>>, vector<1x8x288xf32>
    %380 = vector.shape_cast %379 : vector<1x8x288xf32> to vector<8x288xf32>
    %381 = vector.broadcast %372 : vector<8x1xf32> to vector<8x288xf32>
    %382 = arith.mulf %380, %381 : vector<8x288xf32>
    %383 = vector.broadcast %375 : vector<8x1xf32> to vector<8x288xf32>
    %384 = arith.addf %382, %383 : vector<8x288xf32>
    %cst_249 = arith.constant 0.000000e+00 : f32
    %385 = vector.broadcast %cst_249 : f32 to vector<8x288xf32>
    %386 = arith.maximumf %384, %385 : vector<8x288xf32>
    %387 = vector.broadcast %4 : vector<1x288xf32> to vector<8x288xf32>
    %388 = arith.mulf %386, %387 : vector<8x288xf32>
    %389 = arith.truncf %388 : vector<8x288xf32> to vector<8x288xbf16>
    %c0_250 = arith.constant 0 : index
    %c19_251 = arith.constant 19 : index
    %390 = vector.load %arg13[%c0_250, %c19_251] : memref<8x342xbf16, #tpu.memory_space<vmem>>, vector<8x288xbf16>
    tpu.vector_store %arg13[%c0_250, %c19_251], %389 {strides = array<i32>} : memref<8x342xbf16, #tpu.memory_space<vmem>>, vector<8x288xbf16>,
    %c0_252 = arith.constant 0 : index
    %c0_253 = arith.constant 0 : index
    %391 = vector.load %arg13[%c0_252, %c0_253] : memref<8x342xbf16, #tpu.memory_space<vmem>>, vector<8x288xbf16>
    %c0_254 = arith.constant 0 : index
    %c0_255 = arith.constant 0 : index
    %392 = vector.load %arg15[%c0_254, %c0_255] : memref<72x288xbf16, #tpu.memory_space<vmem>>, vector<8x288xbf16>
    tpu.vector_store %arg15[%c0_254, %c0_255], %391 {strides = array<i32>} : memref<72x288xbf16, #tpu.memory_space<vmem>>, vector<8x288xbf16>,
    %c0_256 = arith.constant 0 : index
    %c1_257 = arith.constant 1 : index
    %393 = vector.load %arg13[%c0_256, %c1_257] : memref<8x342xbf16, #tpu.memory_space<vmem>>, vector<8x288xbf16>
    %c8_258 = arith.constant 8 : index
    %c0_259 = arith.constant 0 : index
    %394 = vector.load %arg15[%c8_258, %c0_259] : memref<72x288xbf16, #tpu.memory_space<vmem>>, vector<8x288xbf16>
    tpu.vector_store %arg15[%c8_258, %c0_259], %393 {strides = array<i32>} : memref<72x288xbf16, #tpu.memory_space<vmem>>, vector<8x288xbf16>,
    %c0_260 = arith.constant 0 : index
    %c2_261 = arith.constant 2 : index
    %395 = vector.load %arg13[%c0_260, %c2_261] : memref<8x342xbf16, #tpu.memory_space<vmem>>, vector<8x288xbf16>
    %c16_262 = arith.constant 16 : index
    %c0_263 = arith.constant 0 : index
    %396 = vector.load %arg15[%c16_262, %c0_263] : memref<72x288xbf16, #tpu.memory_space<vmem>>, vector<8x288xbf16>
    tpu.vector_store %arg15[%c16_262, %c0_263], %395 {strides = array<i32>} : memref<72x288xbf16, #tpu.memory_space<vmem>>, vector<8x288xbf16>,
    %c0_264 = arith.constant 0 : index
    %c18_265 = arith.constant 18 : index
    %397 = vector.load %arg13[%c0_264, %c18_265] : memref<8x342xbf16, #tpu.memory_space<vmem>>, vector<8x288xbf16>
    %c24_266 = arith.constant 24 : index
    %c0_267 = arith.constant 0 : index
    %398 = vector.load %arg15[%c24_266, %c0_267] : memref<72x288xbf16, #tpu.memory_space<vmem>>, vector<8x288xbf16>
    tpu.vector_store %arg15[%c24_266, %c0_267], %397 {strides = array<i32>} : memref<72x288xbf16, #tpu.memory_space<vmem>>, vector<8x288xbf16>,
    %c0_268 = arith.constant 0 : index
    %c19_269 = arith.constant 19 : index
    %399 = vector.load %arg13[%c0_268, %c19_269] : memref<8x342xbf16, #tpu.memory_space<vmem>>, vector<8x288xbf16>
    %c32_270 = arith.constant 32 : index
    %c0_271 = arith.constant 0 : index
    %400 = vector.load %arg15[%c32_270, %c0_271] : memref<72x288xbf16, #tpu.memory_space<vmem>>, vector<8x288xbf16>
    tpu.vector_store %arg15[%c32_270, %c0_271], %399 {strides = array<i32>} : memref<72x288xbf16, #tpu.memory_space<vmem>>, vector<8x288xbf16>,
    %c0_272 = arith.constant 0 : index
    %c20_273 = arith.constant 20 : index
    %401 = vector.load %arg13[%c0_272, %c20_273] : memref<8x342xbf16, #tpu.memory_space<vmem>>, vector<8x288xbf16>
    %c40 = arith.constant 40 : index
    %c0_274 = arith.constant 0 : index
    %402 = vector.load %arg15[%c40, %c0_274] : memref<72x288xbf16, #tpu.memory_space<vmem>>, vector<8x288xbf16>
    tpu.vector_store %arg15[%c40, %c0_274], %401 {strides = array<i32>} : memref<72x288xbf16, #tpu.memory_space<vmem>>, vector<8x288xbf16>,
    %c0_275 = arith.constant 0 : index
    %c36_276 = arith.constant 36 : index
    %403 = vector.load %arg13[%c0_275, %c36_276] : memref<8x342xbf16, #tpu.memory_space<vmem>>, vector<8x288xbf16>
    %c48_277 = arith.constant 48 : index
    %c0_278 = arith.constant 0 : index
    %404 = vector.load %arg15[%c48_277, %c0_278] : memref<72x288xbf16, #tpu.memory_space<vmem>>, vector<8x288xbf16>
    tpu.vector_store %arg15[%c48_277, %c0_278], %403 {strides = array<i32>} : memref<72x288xbf16, #tpu.memory_space<vmem>>, vector<8x288xbf16>,
    %c0_279 = arith.constant 0 : index
    %c37_280 = arith.constant 37 : index
    %405 = vector.load %arg13[%c0_279, %c37_280] : memref<8x342xbf16, #tpu.memory_space<vmem>>, vector<8x288xbf16>
    %c56 = arith.constant 56 : index
    %c0_281 = arith.constant 0 : index
    %406 = vector.load %arg15[%c56, %c0_281] : memref<72x288xbf16, #tpu.memory_space<vmem>>, vector<8x288xbf16>
    tpu.vector_store %arg15[%c56, %c0_281], %405 {strides = array<i32>} : memref<72x288xbf16, #tpu.memory_space<vmem>>, vector<8x288xbf16>,
    %c0_282 = arith.constant 0 : index
    %c38_283 = arith.constant 38 : index
    %407 = vector.load %arg13[%c0_282, %c38_283] : memref<8x342xbf16, #tpu.memory_space<vmem>>, vector<8x288xbf16>
    %c64_284 = arith.constant 64 : index
    %c0_285 = arith.constant 0 : index
    %408 = vector.load %arg15[%c64_284, %c0_285] : memref<72x288xbf16, #tpu.memory_space<vmem>>, vector<8x288xbf16>
    tpu.vector_store %arg15[%c64_284, %c0_285], %407 {strides = array<i32>} : memref<72x288xbf16, #tpu.memory_space<vmem>>, vector<8x288xbf16>,
    %c0_286 = arith.constant 0 : index
    %c0_287 = arith.constant 0 : index
    %409 = vector.load %arg15[%c0_286, %c0_287] : memref<72x288xbf16, #tpu.memory_space<vmem>>, vector<72x288xbf16>
    %cst_288 = arith.constant dense<0.000000e+00> : vector<8x288xf32>
    %410 = tpu.matmul %376, %409, %cst_288 {dimension_numbers = #tpu.dot_dimension_numbers<[1], [0], [0], [1], [0, 0, 1, 1], [], []>} : vector<8x72xbf16>, vector<72x288xbf16>, vector<8x288xf32> -> vector<8x288xf32>
    %c0_289 = arith.constant 0 : index
    %c0_290 = arith.constant 0 : index
    %c0_291 = arith.constant 0 : index
    %411 = vector.load %arg17[%c0_289, %c0_290, %c0_291] : memref<2x8x288xf32, #tpu.memory_space<vmem>>, vector<1x8x288xf32>
    %412 = vector.shape_cast %411 : vector<1x8x288xf32> to vector<8x288xf32>
    %413 = vector.shape_cast %410 : vector<8x288xf32> to vector<1x8x288xf32>
    tpu.vector_store %arg17[%c0_289, %c0_290, %c0_291], %413 {strides = array<i32>} : memref<2x8x288xf32, #tpu.memory_space<vmem>>, vector<1x8x288xf32>,
    %414 = vector.broadcast %4 : vector<1x288xf32> to vector<8x288xf32>
    %415 = arith.mulf %410, %414 : vector<8x288xf32>
    %cst_292 = arith.constant dense<0.000000e+00> : vector<8xf32>
    %416 = vector.multi_reduction <add>, %415, %cst_292 [1] : vector<8x288xf32> to vector<8xf32>
    %417 = vector.shape_cast %416 : vector<8xf32> to vector<8x1xf32>
    %418 = arith.addf %377, %417 : vector<8x1xf32>
    %419 = arith.mulf %415, %415 : vector<8x288xf32>
    %cst_293 = arith.constant dense<0.000000e+00> : vector<8xf32>
    %420 = vector.multi_reduction <add>, %419, %cst_293 [1] : vector<8x288xf32> to vector<8xf32>
    %421 = vector.shape_cast %420 : vector<8xf32> to vector<8x1xf32>
    %422 = arith.addf %378, %421 : vector<8x1xf32>
    %c1_294 = arith.constant 1 : index
    %c0_295 = arith.constant 0 : index
    %c0_296 = arith.constant 0 : index
    %423 = vector.load %arg16[%c1_294, %c0_295, %c0_296] : memref<2x8x288xf32, #tpu.memory_space<vmem>>, vector<1x8x288xf32>
    %424 = vector.shape_cast %423 : vector<1x8x288xf32> to vector<8x288xf32>
    %425 = vector.broadcast %372 : vector<8x1xf32> to vector<8x288xf32>
    %426 = arith.mulf %424, %425 : vector<8x288xf32>
    %427 = vector.broadcast %375 : vector<8x1xf32> to vector<8x288xf32>
    %428 = arith.addf %426, %427 : vector<8x288xf32>
    %cst_297 = arith.constant 0.000000e+00 : f32
    %429 = vector.broadcast %cst_297 : f32 to vector<8x288xf32>
    %430 = arith.maximumf %428, %429 : vector<8x288xf32>
    %431 = vector.broadcast %4 : vector<1x288xf32> to vector<8x288xf32>
    %432 = arith.mulf %430, %431 : vector<8x288xf32>
    %433 = arith.truncf %432 : vector<8x288xf32> to vector<8x288xbf16>
    %c0_298 = arith.constant 0 : index
    %c19_299 = arith.constant 19 : index
    %434 = vector.load %arg13[%c0_298, %c19_299] : memref<8x342xbf16, #tpu.memory_space<vmem>>, vector<8x288xbf16>
    tpu.vector_store %arg13[%c0_298, %c19_299], %433 {strides = array<i32>} : memref<8x342xbf16, #tpu.memory_space<vmem>>, vector<8x288xbf16>,
    %c0_300 = arith.constant 0 : index
    %c0_301 = arith.constant 0 : index
    %435 = vector.load %arg13[%c0_300, %c0_301] : memref<8x342xbf16, #tpu.memory_space<vmem>>, vector<8x288xbf16>
    %c0_302 = arith.constant 0 : index
    %c0_303 = arith.constant 0 : index
    %436 = vector.load %arg15[%c0_302, %c0_303] : memref<72x288xbf16, #tpu.memory_space<vmem>>, vector<8x288xbf16>
    tpu.vector_store %arg15[%c0_302, %c0_303], %435 {strides = array<i32>} : memref<72x288xbf16, #tpu.memory_space<vmem>>, vector<8x288xbf16>,
    %c0_304 = arith.constant 0 : index
    %c1_305 = arith.constant 1 : index
    %437 = vector.load %arg13[%c0_304, %c1_305] : memref<8x342xbf16, #tpu.memory_space<vmem>>, vector<8x288xbf16>
    %c8_306 = arith.constant 8 : index
    %c0_307 = arith.constant 0 : index
    %438 = vector.load %arg15[%c8_306, %c0_307] : memref<72x288xbf16, #tpu.memory_space<vmem>>, vector<8x288xbf16>
    tpu.vector_store %arg15[%c8_306, %c0_307], %437 {strides = array<i32>} : memref<72x288xbf16, #tpu.memory_space<vmem>>, vector<8x288xbf16>,
    %c0_308 = arith.constant 0 : index
    %c2_309 = arith.constant 2 : index
    %439 = vector.load %arg13[%c0_308, %c2_309] : memref<8x342xbf16, #tpu.memory_space<vmem>>, vector<8x288xbf16>
    %c16_310 = arith.constant 16 : index
    %c0_311 = arith.constant 0 : index
    %440 = vector.load %arg15[%c16_310, %c0_311] : memref<72x288xbf16, #tpu.memory_space<vmem>>, vector<8x288xbf16>
    tpu.vector_store %arg15[%c16_310, %c0_311], %439 {strides = array<i32>} : memref<72x288xbf16, #tpu.memory_space<vmem>>, vector<8x288xbf16>,
    %c0_312 = arith.constant 0 : index
    %c18_313 = arith.constant 18 : index
    %441 = vector.load %arg13[%c0_312, %c18_313] : memref<8x342xbf16, #tpu.memory_space<vmem>>, vector<8x288xbf16>
    %c24_314 = arith.constant 24 : index
    %c0_315 = arith.constant 0 : index
    %442 = vector.load %arg15[%c24_314, %c0_315] : memref<72x288xbf16, #tpu.memory_space<vmem>>, vector<8x288xbf16>
    tpu.vector_store %arg15[%c24_314, %c0_315], %441 {strides = array<i32>} : memref<72x288xbf16, #tpu.memory_space<vmem>>, vector<8x288xbf16>,
    %c0_316 = arith.constant 0 : index
    %c19_317 = arith.constant 19 : index
    %443 = vector.load %arg13[%c0_316, %c19_317] : memref<8x342xbf16, #tpu.memory_space<vmem>>, vector<8x288xbf16>
    %c32_318 = arith.constant 32 : index
    %c0_319 = arith.constant 0 : index
    %444 = vector.load %arg15[%c32_318, %c0_319] : memref<72x288xbf16, #tpu.memory_space<vmem>>, vector<8x288xbf16>
    tpu.vector_store %arg15[%c32_318, %c0_319], %443 {strides = array<i32>} : memref<72x288xbf16, #tpu.memory_space<vmem>>, vector<8x288xbf16>,
    %c0_320 = arith.constant 0 : index
    %c20_321 = arith.constant 20 : index
    %445 = vector.load %arg13[%c0_320, %c20_321] : memref<8x342xbf16, #tpu.memory_space<vmem>>, vector<8x288xbf16>
    %c40_322 = arith.constant 40 : index
    %c0_323 = arith.constant 0 : index
    %446 = vector.load %arg15[%c40_322, %c0_323] : memref<72x288xbf16, #tpu.memory_space<vmem>>, vector<8x288xbf16>
    tpu.vector_store %arg15[%c40_322, %c0_323], %445 {strides = array<i32>} : memref<72x288xbf16, #tpu.memory_space<vmem>>, vector<8x288xbf16>,
    %c0_324 = arith.constant 0 : index
    %c36_325 = arith.constant 36 : index
    %447 = vector.load %arg13[%c0_324, %c36_325] : memref<8x342xbf16, #tpu.memory_space<vmem>>, vector<8x288xbf16>
    %c48_326 = arith.constant 48 : index
    %c0_327 = arith.constant 0 : index
    %448 = vector.load %arg15[%c48_326, %c0_327] : memref<72x288xbf16, #tpu.memory_space<vmem>>, vector<8x288xbf16>
    tpu.vector_store %arg15[%c48_326, %c0_327], %447 {strides = array<i32>} : memref<72x288xbf16, #tpu.memory_space<vmem>>, vector<8x288xbf16>,
    %c0_328 = arith.constant 0 : index
    %c37_329 = arith.constant 37 : index
    %449 = vector.load %arg13[%c0_328, %c37_329] : memref<8x342xbf16, #tpu.memory_space<vmem>>, vector<8x288xbf16>
    %c56_330 = arith.constant 56 : index
    %c0_331 = arith.constant 0 : index
    %450 = vector.load %arg15[%c56_330, %c0_331] : memref<72x288xbf16, #tpu.memory_space<vmem>>, vector<8x288xbf16>
    tpu.vector_store %arg15[%c56_330, %c0_331], %449 {strides = array<i32>} : memref<72x288xbf16, #tpu.memory_space<vmem>>, vector<8x288xbf16>,
    %c0_332 = arith.constant 0 : index
    %c38_333 = arith.constant 38 : index
    %451 = vector.load %arg13[%c0_332, %c38_333] : memref<8x342xbf16, #tpu.memory_space<vmem>>, vector<8x288xbf16>
    %c64_334 = arith.constant 64 : index
    %c0_335 = arith.constant 0 : index
    %452 = vector.load %arg15[%c64_334, %c0_335] : memref<72x288xbf16, #tpu.memory_space<vmem>>, vector<8x288xbf16>
    tpu.vector_store %arg15[%c64_334, %c0_335], %451 {strides = array<i32>} : memref<72x288xbf16, #tpu.memory_space<vmem>>, vector<8x288xbf16>,
    %c0_336 = arith.constant 0 : index
    %c0_337 = arith.constant 0 : index
    %453 = vector.load %arg15[%c0_336, %c0_337] : memref<72x288xbf16, #tpu.memory_space<vmem>>, vector<72x288xbf16>
    %cst_338 = arith.constant dense<0.000000e+00> : vector<8x288xf32>
    %454 = tpu.matmul %376, %453, %cst_338 {dimension_numbers = #tpu.dot_dimension_numbers<[1], [0], [0], [1], [0, 0, 1, 1], [], []>} : vector<8x72xbf16>, vector<72x288xbf16>, vector<8x288xf32> -> vector<8x288xf32>
    %c1_339 = arith.constant 1 : index
    %c0_340 = arith.constant 0 : index
    %c0_341 = arith.constant 0 : index
    %455 = vector.load %arg17[%c1_339, %c0_340, %c0_341] : memref<2x8x288xf32, #tpu.memory_space<vmem>>, vector<1x8x288xf32>
    %456 = vector.shape_cast %455 : vector<1x8x288xf32> to vector<8x288xf32>
    %457 = vector.shape_cast %454 : vector<8x288xf32> to vector<1x8x288xf32>
    tpu.vector_store %arg17[%c1_339, %c0_340, %c0_341], %457 {strides = array<i32>} : memref<2x8x288xf32, #tpu.memory_space<vmem>>, vector<1x8x288xf32>,
    %458 = vector.broadcast %4 : vector<1x288xf32> to vector<8x288xf32>
    %459 = arith.mulf %454, %458 : vector<8x288xf32>
    %cst_342 = arith.constant dense<0.000000e+00> : vector<8xf32>
    %460 = vector.multi_reduction <add>, %459, %cst_342 [1] : vector<8x288xf32> to vector<8xf32>
    %461 = vector.shape_cast %460 : vector<8xf32> to vector<8x1xf32>
    %462 = arith.addf %418, %461 : vector<8x1xf32>
    %463 = arith.mulf %459, %459 : vector<8x288xf32>
    %cst_343 = arith.constant dense<0.000000e+00> : vector<8xf32>
    %464 = vector.multi_reduction <add>, %463, %cst_343 [1] : vector<8x288xf32> to vector<8xf32>
    %465 = vector.shape_cast %464 : vector<8xf32> to vector<8x1xf32>
    %466 = arith.addf %422, %465 : vector<8x1xf32>
    %cst_344 = arith.constant 0.001953125 : f32
    %467 = vector.broadcast %cst_344 : f32 to vector<8x1xf32>
    %468 = arith.mulf %462, %467 : vector<8x1xf32>
    %cst_345 = arith.constant 0.001953125 : f32
    %469 = vector.broadcast %cst_345 : f32 to vector<8x1xf32>
    %470 = arith.mulf %466, %469 : vector<8x1xf32>
    %471 = arith.mulf %468, %468 : vector<8x1xf32>
    %472 = arith.subf %470, %471 : vector<8x1xf32>
    %c0_346 = arith.constant 0 : index
    %c0_347 = arith.constant 0 : index
    %473 = vector.load %arg9[%c0_346, %c0_347] : memref<8x1xf32, #tpu.memory_space<vmem>>, vector<8x1xf32>
    %cst_348 = arith.constant 9.99999974E-6 : f32
    %474 = vector.broadcast %cst_348 : f32 to vector<8x1xf32>
    %475 = arith.addf %472, %474 : vector<8x1xf32>
    %476 = math.rsqrt %475 : vector<8x1xf32>
    %477 = arith.mulf %473, %476 : vector<8x1xf32>
    %c0_349 = arith.constant 0 : index
    %c0_350 = arith.constant 0 : index
    %478 = vector.load %arg10[%c0_349, %c0_350] : memref<8x1xf32, #tpu.memory_space<vmem>>, vector<8x1xf32>
    %479 = arith.mulf %468, %477 : vector<8x1xf32>
    %480 = arith.subf %478, %479 : vector<8x1xf32>
    %c0_351 = arith.constant 0 : index
    %c0_352 = arith.constant 0 : index
    %c0_353 = arith.constant 0 : index
    %481 = vector.load %arg17[%c0_351, %c0_352, %c0_353] : memref<2x8x288xf32, #tpu.memory_space<vmem>>, vector<1x8x16xf32>
    %482 = vector.shape_cast %481 : vector<1x8x16xf32> to vector<8x16xf32>
    %483 = vector.broadcast %477 : vector<8x1xf32> to vector<8x16xf32>
    %484 = arith.mulf %482, %483 : vector<8x16xf32>
    %485 = vector.broadcast %480 : vector<8x1xf32> to vector<8x16xf32>
    %486 = arith.addf %484, %485 : vector<8x16xf32>
    %c0_354 = arith.constant 0 : index
    %c0_355 = arith.constant 0 : index
    %c0_356 = arith.constant 0 : index
    %487 = vector.load %arg11[%c0_354, %c0_355, %c0_356] : memref<2x8x256xf32, #tpu.memory_space<vmem>>, vector<1x8x16xf32>
    %488 = vector.shape_cast %487 : vector<1x8x16xf32> to vector<8x16xf32>
    %489 = vector.shape_cast %486 : vector<8x16xf32> to vector<1x8x16xf32>
    tpu.vector_store %arg11[%c0_354, %c0_355, %c0_356], %489 {strides = array<i32>} : memref<2x8x256xf32, #tpu.memory_space<vmem>>, vector<1x8x16xf32>,
    %c0_357 = arith.constant 0 : index
    %c0_358 = arith.constant 0 : index
    %c18_359 = arith.constant 18 : index
    %490 = vector.load %arg17[%c0_357, %c0_358, %c18_359] : memref<2x8x288xf32, #tpu.memory_space<vmem>>, vector<1x8x16xf32>
    %491 = vector.shape_cast %490 : vector<1x8x16xf32> to vector<8x16xf32>
    %492 = vector.broadcast %477 : vector<8x1xf32> to vector<8x16xf32>
    %493 = arith.mulf %491, %492 : vector<8x16xf32>
    %494 = vector.broadcast %480 : vector<8x1xf32> to vector<8x16xf32>
    %495 = arith.addf %493, %494 : vector<8x16xf32>
    %c0_360 = arith.constant 0 : index
    %c0_361 = arith.constant 0 : index
    %c16_362 = arith.constant 16 : index
    %496 = vector.load %arg11[%c0_360, %c0_361, %c16_362] : memref<2x8x256xf32, #tpu.memory_space<vmem>>, vector<1x8x16xf32>
    %497 = vector.shape_cast %496 : vector<1x8x16xf32> to vector<8x16xf32>
    %498 = vector.shape_cast %495 : vector<8x16xf32> to vector<1x8x16xf32>
    tpu.vector_store %arg11[%c0_360, %c0_361, %c16_362], %498 {strides = array<i32>} : memref<2x8x256xf32, #tpu.memory_space<vmem>>, vector<1x8x16xf32>,
    %c0_363 = arith.constant 0 : index
    %c0_364 = arith.constant 0 : index
    %c36_365 = arith.constant 36 : index
    %499 = vector.load %arg17[%c0_363, %c0_364, %c36_365] : memref<2x8x288xf32, #tpu.memory_space<vmem>>, vector<1x8x16xf32>
    %500 = vector.shape_cast %499 : vector<1x8x16xf32> to vector<8x16xf32>
    %501 = vector.broadcast %477 : vector<8x1xf32> to vector<8x16xf32>
    %502 = arith.mulf %500, %501 : vector<8x16xf32>
    %503 = vector.broadcast %480 : vector<8x1xf32> to vector<8x16xf32>
    %504 = arith.addf %502, %503 : vector<8x16xf32>
    %c0_366 = arith.constant 0 : index
    %c0_367 = arith.constant 0 : index
    %c32_368 = arith.constant 32 : index
    %505 = vector.load %arg11[%c0_366, %c0_367, %c32_368] : memref<2x8x256xf32, #tpu.memory_space<vmem>>, vector<1x8x16xf32>
    %506 = vector.shape_cast %505 : vector<1x8x16xf32> to vector<8x16xf32>
    %507 = vector.shape_cast %504 : vector<8x16xf32> to vector<1x8x16xf32>
    tpu.vector_store %arg11[%c0_366, %c0_367, %c32_368], %507 {strides = array<i32>} : memref<2x8x256xf32, #tpu.memory_space<vmem>>, vector<1x8x16xf32>,
    %c0_369 = arith.constant 0 : index
    %c0_370 = arith.constant 0 : index
    %c54 = arith.constant 54 : index
    %508 = vector.load %arg17[%c0_369, %c0_370, %c54] : memref<2x8x288xf32, #tpu.memory_space<vmem>>, vector<1x8x16xf32>
    %509 = vector.shape_cast %508 : vector<1x8x16xf32> to vector<8x16xf32>
    %510 = vector.broadcast %477 : vector<8x1xf32> to vector<8x16xf32>
    %511 = arith.mulf %509, %510 : vector<8x16xf32>
    %512 = vector.broadcast %480 : vector<8x1xf32> to vector<8x16xf32>
    %513 = arith.addf %511, %512 : vector<8x16xf32>
    %c0_371 = arith.constant 0 : index
    %c0_372 = arith.constant 0 : index
    %c48_373 = arith.constant 48 : index
    %514 = vector.load %arg11[%c0_371, %c0_372, %c48_373] : memref<2x8x256xf32, #tpu.memory_space<vmem>>, vector<1x8x16xf32>
    %515 = vector.shape_cast %514 : vector<1x8x16xf32> to vector<8x16xf32>
    %516 = vector.shape_cast %513 : vector<8x16xf32> to vector<1x8x16xf32>
    tpu.vector_store %arg11[%c0_371, %c0_372, %c48_373], %516 {strides = array<i32>} : memref<2x8x256xf32, #tpu.memory_space<vmem>>, vector<1x8x16xf32>,
    %c0_374 = arith.constant 0 : index
    %c0_375 = arith.constant 0 : index
    %c72 = arith.constant 72 : index
    %517 = vector.load %arg17[%c0_374, %c0_375, %c72] : memref<2x8x288xf32, #tpu.memory_space<vmem>>, vector<1x8x16xf32>
    %518 = vector.shape_cast %517 : vector<1x8x16xf32> to vector<8x16xf32>
    %519 = vector.broadcast %477 : vector<8x1xf32> to vector<8x16xf32>
    %520 = arith.mulf %518, %519 : vector<8x16xf32>
    %521 = vector.broadcast %480 : vector<8x1xf32> to vector<8x16xf32>
    %522 = arith.addf %520, %521 : vector<8x16xf32>
    %c0_376 = arith.constant 0 : index
    %c0_377 = arith.constant 0 : index
    %c64_378 = arith.constant 64 : index
    %523 = vector.load %arg11[%c0_376, %c0_377, %c64_378] : memref<2x8x256xf32, #tpu.memory_space<vmem>>, vector<1x8x16xf32>
    %524 = vector.shape_cast %523 : vector<1x8x16xf32> to vector<8x16xf32>
    %525 = vector.shape_cast %522 : vector<8x16xf32> to vector<1x8x16xf32>
    tpu.vector_store %arg11[%c0_376, %c0_377, %c64_378], %525 {strides = array<i32>} : memref<2x8x256xf32, #tpu.memory_space<vmem>>, vector<1x8x16xf32>,
    %c0_379 = arith.constant 0 : index
    %c0_380 = arith.constant 0 : index
    %c90 = arith.constant 90 : index
    %526 = vector.load %arg17[%c0_379, %c0_380, %c90] : memref<2x8x288xf32, #tpu.memory_space<vmem>>, vector<1x8x16xf32>
    %527 = vector.shape_cast %526 : vector<1x8x16xf32> to vector<8x16xf32>
    %528 = vector.broadcast %477 : vector<8x1xf32> to vector<8x16xf32>
    %529 = arith.mulf %527, %528 : vector<8x16xf32>
    %530 = vector.broadcast %480 : vector<8x1xf32> to vector<8x16xf32>
    %531 = arith.addf %529, %530 : vector<8x16xf32>
    %c0_381 = arith.constant 0 : index
    %c0_382 = arith.constant 0 : index
    %c80_383 = arith.constant 80 : index
    %532 = vector.load %arg11[%c0_381, %c0_382, %c80_383] : memref<2x8x256xf32, #tpu.memory_space<vmem>>, vector<1x8x16xf32>
    %533 = vector.shape_cast %532 : vector<1x8x16xf32> to vector<8x16xf32>
    %534 = vector.shape_cast %531 : vector<8x16xf32> to vector<1x8x16xf32>
    tpu.vector_store %arg11[%c0_381, %c0_382, %c80_383], %534 {strides = array<i32>} : memref<2x8x256xf32, #tpu.memory_space<vmem>>, vector<1x8x16xf32>,
    %c0_384 = arith.constant 0 : index
    %c0_385 = arith.constant 0 : index
    %c108 = arith.constant 108 : index
    %535 = vector.load %arg17[%c0_384, %c0_385, %c108] : memref<2x8x288xf32, #tpu.memory_space<vmem>>, vector<1x8x16xf32>
    %536 = vector.shape_cast %535 : vector<1x8x16xf32> to vector<8x16xf32>
    %537 = vector.broadcast %477 : vector<8x1xf32> to vector<8x16xf32>
    %538 = arith.mulf %536, %537 : vector<8x16xf32>
    %539 = vector.broadcast %480 : vector<8x1xf32> to vector<8x16xf32>
    %540 = arith.addf %538, %539 : vector<8x16xf32>
    %c0_386 = arith.constant 0 : index
    %c0_387 = arith.constant 0 : index
    %c96_388 = arith.constant 96 : index
    %541 = vector.load %arg11[%c0_386, %c0_387, %c96_388] : memref<2x8x256xf32, #tpu.memory_space<vmem>>, vector<1x8x16xf32>
    %542 = vector.shape_cast %541 : vector<1x8x16xf32> to vector<8x16xf32>
    %543 = vector.shape_cast %540 : vector<8x16xf32> to vector<1x8x16xf32>
    tpu.vector_store %arg11[%c0_386, %c0_387, %c96_388], %543 {strides = array<i32>} : memref<2x8x256xf32, #tpu.memory_space<vmem>>, vector<1x8x16xf32>,
    %c0_389 = arith.constant 0 : index
    %c0_390 = arith.constant 0 : index
    %c126 = arith.constant 126 : index
    %544 = vector.load %arg17[%c0_389, %c0_390, %c126] : memref<2x8x288xf32, #tpu.memory_space<vmem>>, vector<1x8x16xf32>
    %545 = vector.shape_cast %544 : vector<1x8x16xf32> to vector<8x16xf32>
    %546 = vector.broadcast %477 : vector<8x1xf32> to vector<8x16xf32>
    %547 = arith.mulf %545, %546 : vector<8x16xf32>
    %548 = vector.broadcast %480 : vector<8x1xf32> to vector<8x16xf32>
    %549 = arith.addf %547, %548 : vector<8x16xf32>
    %c0_391 = arith.constant 0 : index
    %c0_392 = arith.constant 0 : index
    %c112_393 = arith.constant 112 : index
    %550 = vector.load %arg11[%c0_391, %c0_392, %c112_393] : memref<2x8x256xf32, #tpu.memory_space<vmem>>, vector<1x8x16xf32>
    %551 = vector.shape_cast %550 : vector<1x8x16xf32> to vector<8x16xf32>
    %552 = vector.shape_cast %549 : vector<8x16xf32> to vector<1x8x16xf32>
    tpu.vector_store %arg11[%c0_391, %c0_392, %c112_393], %552 {strides = array<i32>} : memref<2x8x256xf32, #tpu.memory_space<vmem>>, vector<1x8x16xf32>,
    %c0_394 = arith.constant 0 : index
    %c0_395 = arith.constant 0 : index
    %c144_396 = arith.constant 144 : index
    %553 = vector.load %arg17[%c0_394, %c0_395, %c144_396] : memref<2x8x288xf32, #tpu.memory_space<vmem>>, vector<1x8x16xf32>
    %554 = vector.shape_cast %553 : vector<1x8x16xf32> to vector<8x16xf32>
    %555 = vector.broadcast %477 : vector<8x1xf32> to vector<8x16xf32>
    %556 = arith.mulf %554, %555 : vector<8x16xf32>
    %557 = vector.broadcast %480 : vector<8x1xf32> to vector<8x16xf32>
    %558 = arith.addf %556, %557 : vector<8x16xf32>
    %c0_397 = arith.constant 0 : index
    %c0_398 = arith.constant 0 : index
    %c128_399 = arith.constant 128 : index
    %559 = vector.load %arg11[%c0_397, %c0_398, %c128_399] : memref<2x8x256xf32, #tpu.memory_space<vmem>>, vector<1x8x16xf32>
    %560 = vector.shape_cast %559 : vector<1x8x16xf32> to vector<8x16xf32>
    %561 = vector.shape_cast %558 : vector<8x16xf32> to vector<1x8x16xf32>
    tpu.vector_store %arg11[%c0_397, %c0_398, %c128_399], %561 {strides = array<i32>} : memref<2x8x256xf32, #tpu.memory_space<vmem>>, vector<1x8x16xf32>,
    %c0_400 = arith.constant 0 : index
    %c0_401 = arith.constant 0 : index
    %c162 = arith.constant 162 : index
    %562 = vector.load %arg17[%c0_400, %c0_401, %c162] : memref<2x8x288xf32, #tpu.memory_space<vmem>>, vector<1x8x16xf32>
    %563 = vector.shape_cast %562 : vector<1x8x16xf32> to vector<8x16xf32>
    %564 = vector.broadcast %477 : vector<8x1xf32> to vector<8x16xf32>
    %565 = arith.mulf %563, %564 : vector<8x16xf32>
    %566 = vector.broadcast %480 : vector<8x1xf32> to vector<8x16xf32>
    %567 = arith.addf %565, %566 : vector<8x16xf32>
    %c0_402 = arith.constant 0 : index
    %c0_403 = arith.constant 0 : index
    %c144_404 = arith.constant 144 : index
    %568 = vector.load %arg11[%c0_402, %c0_403, %c144_404] : memref<2x8x256xf32, #tpu.memory_space<vmem>>, vector<1x8x16xf32>
    %569 = vector.shape_cast %568 : vector<1x8x16xf32> to vector<8x16xf32>
    %570 = vector.shape_cast %567 : vector<8x16xf32> to vector<1x8x16xf32>
    tpu.vector_store %arg11[%c0_402, %c0_403, %c144_404], %570 {strides = array<i32>} : memref<2x8x256xf32, #tpu.memory_space<vmem>>, vector<1x8x16xf32>,
    %c0_405 = arith.constant 0 : index
    %c0_406 = arith.constant 0 : index
    %c180 = arith.constant 180 : index
    %571 = vector.load %arg17[%c0_405, %c0_406, %c180] : memref<2x8x288xf32, #tpu.memory_space<vmem>>, vector<1x8x16xf32>
    %572 = vector.shape_cast %571 : vector<1x8x16xf32> to vector<8x16xf32>
    %573 = vector.broadcast %477 : vector<8x1xf32> to vector<8x16xf32>
    %574 = arith.mulf %572, %573 : vector<8x16xf32>
    %575 = vector.broadcast %480 : vector<8x1xf32> to vector<8x16xf32>
    %576 = arith.addf %574, %575 : vector<8x16xf32>
    %c0_407 = arith.constant 0 : index
    %c0_408 = arith.constant 0 : index
    %c160_409 = arith.constant 160 : index
    %577 = vector.load %arg11[%c0_407, %c0_408, %c160_409] : memref<2x8x256xf32, #tpu.memory_space<vmem>>, vector<1x8x16xf32>
    %578 = vector.shape_cast %577 : vector<1x8x16xf32> to vector<8x16xf32>
    %579 = vector.shape_cast %576 : vector<8x16xf32> to vector<1x8x16xf32>
    tpu.vector_store %arg11[%c0_407, %c0_408, %c160_409], %579 {strides = array<i32>} : memref<2x8x256xf32, #tpu.memory_space<vmem>>, vector<1x8x16xf32>,
    %c0_410 = arith.constant 0 : index
    %c0_411 = arith.constant 0 : index
    %c198 = arith.constant 198 : index
    %580 = vector.load %arg17[%c0_410, %c0_411, %c198] : memref<2x8x288xf32, #tpu.memory_space<vmem>>, vector<1x8x16xf32>
    %581 = vector.shape_cast %580 : vector<1x8x16xf32> to vector<8x16xf32>
    %582 = vector.broadcast %477 : vector<8x1xf32> to vector<8x16xf32>
    %583 = arith.mulf %581, %582 : vector<8x16xf32>
    %584 = vector.broadcast %480 : vector<8x1xf32> to vector<8x16xf32>
    %585 = arith.addf %583, %584 : vector<8x16xf32>
    %c0_412 = arith.constant 0 : index
    %c0_413 = arith.constant 0 : index
    %c176_414 = arith.constant 176 : index
    %586 = vector.load %arg11[%c0_412, %c0_413, %c176_414] : memref<2x8x256xf32, #tpu.memory_space<vmem>>, vector<1x8x16xf32>
    %587 = vector.shape_cast %586 : vector<1x8x16xf32> to vector<8x16xf32>
    %588 = vector.shape_cast %585 : vector<8x16xf32> to vector<1x8x16xf32>
    tpu.vector_store %arg11[%c0_412, %c0_413, %c176_414], %588 {strides = array<i32>} : memref<2x8x256xf32, #tpu.memory_space<vmem>>, vector<1x8x16xf32>,
    %c0_415 = arith.constant 0 : index
    %c0_416 = arith.constant 0 : index
    %c216 = arith.constant 216 : index
    %589 = vector.load %arg17[%c0_415, %c0_416, %c216] : memref<2x8x288xf32, #tpu.memory_space<vmem>>, vector<1x8x16xf32>
    %590 = vector.shape_cast %589 : vector<1x8x16xf32> to vector<8x16xf32>
    %591 = vector.broadcast %477 : vector<8x1xf32> to vector<8x16xf32>
    %592 = arith.mulf %590, %591 : vector<8x16xf32>
    %593 = vector.broadcast %480 : vector<8x1xf32> to vector<8x16xf32>
    %594 = arith.addf %592, %593 : vector<8x16xf32>
    %c0_417 = arith.constant 0 : index
    %c0_418 = arith.constant 0 : index
    %c192_419 = arith.constant 192 : index
    %595 = vector.load %arg11[%c0_417, %c0_418, %c192_419] : memref<2x8x256xf32, #tpu.memory_space<vmem>>, vector<1x8x16xf32>
    %596 = vector.shape_cast %595 : vector<1x8x16xf32> to vector<8x16xf32>
    %597 = vector.shape_cast %594 : vector<8x16xf32> to vector<1x8x16xf32>
    tpu.vector_store %arg11[%c0_417, %c0_418, %c192_419], %597 {strides = array<i32>} : memref<2x8x256xf32, #tpu.memory_space<vmem>>, vector<1x8x16xf32>,
    %c0_420 = arith.constant 0 : index
    %c0_421 = arith.constant 0 : index
    %c234 = arith.constant 234 : index
    %598 = vector.load %arg17[%c0_420, %c0_421, %c234] : memref<2x8x288xf32, #tpu.memory_space<vmem>>, vector<1x8x16xf32>
    %599 = vector.shape_cast %598 : vector<1x8x16xf32> to vector<8x16xf32>
    %600 = vector.broadcast %477 : vector<8x1xf32> to vector<8x16xf32>
    %601 = arith.mulf %599, %600 : vector<8x16xf32>
    %602 = vector.broadcast %480 : vector<8x1xf32> to vector<8x16xf32>
    %603 = arith.addf %601, %602 : vector<8x16xf32>
    %c0_422 = arith.constant 0 : index
    %c0_423 = arith.constant 0 : index
    %c208_424 = arith.constant 208 : index
    %604 = vector.load %arg11[%c0_422, %c0_423, %c208_424] : memref<2x8x256xf32, #tpu.memory_space<vmem>>, vector<1x8x16xf32>
    %605 = vector.shape_cast %604 : vector<1x8x16xf32> to vector<8x16xf32>
    %606 = vector.shape_cast %603 : vector<8x16xf32> to vector<1x8x16xf32>
    tpu.vector_store %arg11[%c0_422, %c0_423, %c208_424], %606 {strides = array<i32>} : memref<2x8x256xf32, #tpu.memory_space<vmem>>, vector<1x8x16xf32>,
    %c0_425 = arith.constant 0 : index
    %c0_426 = arith.constant 0 : index
    %c252 = arith.constant 252 : index
    %607 = vector.load %arg17[%c0_425, %c0_426, %c252] : memref<2x8x288xf32, #tpu.memory_space<vmem>>, vector<1x8x16xf32>
    %608 = vector.shape_cast %607 : vector<1x8x16xf32> to vector<8x16xf32>
    %609 = vector.broadcast %477 : vector<8x1xf32> to vector<8x16xf32>
    %610 = arith.mulf %608, %609 : vector<8x16xf32>
    %611 = vector.broadcast %480 : vector<8x1xf32> to vector<8x16xf32>
    %612 = arith.addf %610, %611 : vector<8x16xf32>
    %c0_427 = arith.constant 0 : index
    %c0_428 = arith.constant 0 : index
    %c224_429 = arith.constant 224 : index
    %613 = vector.load %arg11[%c0_427, %c0_428, %c224_429] : memref<2x8x256xf32, #tpu.memory_space<vmem>>, vector<1x8x16xf32>
    %614 = vector.shape_cast %613 : vector<1x8x16xf32> to vector<8x16xf32>
    %615 = vector.shape_cast %612 : vector<8x16xf32> to vector<1x8x16xf32>
    tpu.vector_store %arg11[%c0_427, %c0_428, %c224_429], %615 {strides = array<i32>} : memref<2x8x256xf32, #tpu.memory_space<vmem>>, vector<1x8x16xf32>,
    %c0_430 = arith.constant 0 : index
    %c0_431 = arith.constant 0 : index
    %c270 = arith.constant 270 : index
    %616 = vector.load %arg17[%c0_430, %c0_431, %c270] : memref<2x8x288xf32, #tpu.memory_space<vmem>>, vector<1x8x16xf32>
    %617 = vector.shape_cast %616 : vector<1x8x16xf32> to vector<8x16xf32>
    %618 = vector.broadcast %477 : vector<8x1xf32> to vector<8x16xf32>
    %619 = arith.mulf %617, %618 : vector<8x16xf32>
    %620 = vector.broadcast %480 : vector<8x1xf32> to vector<8x16xf32>
    %621 = arith.addf %619, %620 : vector<8x16xf32>
    %c0_432 = arith.constant 0 : index
    %c0_433 = arith.constant 0 : index
    %c240_434 = arith.constant 240 : index
    %622 = vector.load %arg11[%c0_432, %c0_433, %c240_434] : memref<2x8x256xf32, #tpu.memory_space<vmem>>, vector<1x8x16xf32>
    %623 = vector.shape_cast %622 : vector<1x8x16xf32> to vector<8x16xf32>
    %624 = vector.shape_cast %621 : vector<8x16xf32> to vector<1x8x16xf32>
    tpu.vector_store %arg11[%c0_432, %c0_433, %c240_434], %624 {strides = array<i32>} : memref<2x8x256xf32, #tpu.memory_space<vmem>>, vector<1x8x16xf32>,
    %c0_435 = arith.constant 0 : index
    %c0_436 = arith.constant 0 : index
    %c0_437 = arith.constant 0 : index
    %625 = vector.load %arg11[%c0_435, %c0_436, %c0_437] : memref<2x8x256xf32, #tpu.memory_space<vmem>>, vector<1x4x256xf32>
    %626 = vector.shape_cast %625 : vector<1x4x256xf32> to vector<4x256xf32>
    %c0_438 = arith.constant 0 : index
    %c0_439 = arith.constant 0 : index
    %c0_440 = arith.constant 0 : index
    %627 = vector.load %arg1[%c0_438, %c0_439, %c0_440] : memref<2x4x256xf32, #tpu.memory_space<vmem>>, vector<1x4x256xf32>
    %628 = vector.shape_cast %627 : vector<1x4x256xf32> to vector<4x256xf32>
    %629 = arith.addf %626, %628 : vector<4x256xf32>
    %c0_441 = arith.constant 0 : index
    %c0_442 = arith.constant 0 : index
    %c0_443 = arith.constant 0 : index
    %630 = vector.load %arg11[%c0_441, %c0_442, %c0_443] : memref<2x8x256xf32, #tpu.memory_space<vmem>>, vector<1x4x256xf32>
    %631 = vector.shape_cast %630 : vector<1x4x256xf32> to vector<4x256xf32>
    %632 = vector.shape_cast %629 : vector<4x256xf32> to vector<1x4x256xf32>
    tpu.vector_store %arg11[%c0_441, %c0_442, %c0_443], %632 {strides = array<i32>} : memref<2x8x256xf32, #tpu.memory_space<vmem>>, vector<1x4x256xf32>,
    %c1_444 = arith.constant 1 : index
    %c0_445 = arith.constant 0 : index
    %c0_446 = arith.constant 0 : index
    %633 = vector.load %arg17[%c1_444, %c0_445, %c0_446] : memref<2x8x288xf32, #tpu.memory_space<vmem>>, vector<1x8x16xf32>
    %634 = vector.shape_cast %633 : vector<1x8x16xf32> to vector<8x16xf32>
    %635 = vector.broadcast %477 : vector<8x1xf32> to vector<8x16xf32>
    %636 = arith.mulf %634, %635 : vector<8x16xf32>
    %637 = vector.broadcast %480 : vector<8x1xf32> to vector<8x16xf32>
    %638 = arith.addf %636, %637 : vector<8x16xf32>
    %c1_447 = arith.constant 1 : index
    %c0_448 = arith.constant 0 : index
    %c0_449 = arith.constant 0 : index
    %639 = vector.load %arg11[%c1_447, %c0_448, %c0_449] : memref<2x8x256xf32, #tpu.memory_space<vmem>>, vector<1x8x16xf32>
    %640 = vector.shape_cast %639 : vector<1x8x16xf32> to vector<8x16xf32>
    %641 = vector.shape_cast %638 : vector<8x16xf32> to vector<1x8x16xf32>
    tpu.vector_store %arg11[%c1_447, %c0_448, %c0_449], %641 {strides = array<i32>} : memref<2x8x256xf32, #tpu.memory_space<vmem>>, vector<1x8x16xf32>,
    %c1_450 = arith.constant 1 : index
    %c0_451 = arith.constant 0 : index
    %c18_452 = arith.constant 18 : index
    %642 = vector.load %arg17[%c1_450, %c0_451, %c18_452] : memref<2x8x288xf32, #tpu.memory_space<vmem>>, vector<1x8x16xf32>
    %643 = vector.shape_cast %642 : vector<1x8x16xf32> to vector<8x16xf32>
    %644 = vector.broadcast %477 : vector<8x1xf32> to vector<8x16xf32>
    %645 = arith.mulf %643, %644 : vector<8x16xf32>
    %646 = vector.broadcast %480 : vector<8x1xf32> to vector<8x16xf32>
    %647 = arith.addf %645, %646 : vector<8x16xf32>
    %c1_453 = arith.constant 1 : index
    %c0_454 = arith.constant 0 : index
    %c16_455 = arith.constant 16 : index
    %648 = vector.load %arg11[%c1_453, %c0_454, %c16_455] : memref<2x8x256xf32, #tpu.memory_space<vmem>>, vector<1x8x16xf32>
    %649 = vector.shape_cast %648 : vector<1x8x16xf32> to vector<8x16xf32>
    %650 = vector.shape_cast %647 : vector<8x16xf32> to vector<1x8x16xf32>
    tpu.vector_store %arg11[%c1_453, %c0_454, %c16_455], %650 {strides = array<i32>} : memref<2x8x256xf32, #tpu.memory_space<vmem>>, vector<1x8x16xf32>,
    %c1_456 = arith.constant 1 : index
    %c0_457 = arith.constant 0 : index
    %c36_458 = arith.constant 36 : index
    %651 = vector.load %arg17[%c1_456, %c0_457, %c36_458] : memref<2x8x288xf32, #tpu.memory_space<vmem>>, vector<1x8x16xf32>
    %652 = vector.shape_cast %651 : vector<1x8x16xf32> to vector<8x16xf32>
    %653 = vector.broadcast %477 : vector<8x1xf32> to vector<8x16xf32>
    %654 = arith.mulf %652, %653 : vector<8x16xf32>
    %655 = vector.broadcast %480 : vector<8x1xf32> to vector<8x16xf32>
    %656 = arith.addf %654, %655 : vector<8x16xf32>
    %c1_459 = arith.constant 1 : index
    %c0_460 = arith.constant 0 : index
    %c32_461 = arith.constant 32 : index
    %657 = vector.load %arg11[%c1_459, %c0_460, %c32_461] : memref<2x8x256xf32, #tpu.memory_space<vmem>>, vector<1x8x16xf32>
    %658 = vector.shape_cast %657 : vector<1x8x16xf32> to vector<8x16xf32>
    %659 = vector.shape_cast %656 : vector<8x16xf32> to vector<1x8x16xf32>
    tpu.vector_store %arg11[%c1_459, %c0_460, %c32_461], %659 {strides = array<i32>} : memref<2x8x256xf32, #tpu.memory_space<vmem>>, vector<1x8x16xf32>,
    %c1_462 = arith.constant 1 : index
    %c0_463 = arith.constant 0 : index
    %c54_464 = arith.constant 54 : index
    %660 = vector.load %arg17[%c1_462, %c0_463, %c54_464] : memref<2x8x288xf32, #tpu.memory_space<vmem>>, vector<1x8x16xf32>
    %661 = vector.shape_cast %660 : vector<1x8x16xf32> to vector<8x16xf32>
    %662 = vector.broadcast %477 : vector<8x1xf32> to vector<8x16xf32>
    %663 = arith.mulf %661, %662 : vector<8x16xf32>
    %664 = vector.broadcast %480 : vector<8x1xf32> to vector<8x16xf32>
    %665 = arith.addf %663, %664 : vector<8x16xf32>
    %c1_465 = arith.constant 1 : index
    %c0_466 = arith.constant 0 : index
    %c48_467 = arith.constant 48 : index
    %666 = vector.load %arg11[%c1_465, %c0_466, %c48_467] : memref<2x8x256xf32, #tpu.memory_space<vmem>>, vector<1x8x16xf32>
    %667 = vector.shape_cast %666 : vector<1x8x16xf32> to vector<8x16xf32>
    %668 = vector.shape_cast %665 : vector<8x16xf32> to vector<1x8x16xf32>
    tpu.vector_store %arg11[%c1_465, %c0_466, %c48_467], %668 {strides = array<i32>} : memref<2x8x256xf32, #tpu.memory_space<vmem>>, vector<1x8x16xf32>,
    %c1_468 = arith.constant 1 : index
    %c0_469 = arith.constant 0 : index
    %c72_470 = arith.constant 72 : index
    %669 = vector.load %arg17[%c1_468, %c0_469, %c72_470] : memref<2x8x288xf32, #tpu.memory_space<vmem>>, vector<1x8x16xf32>
    %670 = vector.shape_cast %669 : vector<1x8x16xf32> to vector<8x16xf32>
    %671 = vector.broadcast %477 : vector<8x1xf32> to vector<8x16xf32>
    %672 = arith.mulf %670, %671 : vector<8x16xf32>
    %673 = vector.broadcast %480 : vector<8x1xf32> to vector<8x16xf32>
    %674 = arith.addf %672, %673 : vector<8x16xf32>
    %c1_471 = arith.constant 1 : index
    %c0_472 = arith.constant 0 : index
    %c64_473 = arith.constant 64 : index
    %675 = vector.load %arg11[%c1_471, %c0_472, %c64_473] : memref<2x8x256xf32, #tpu.memory_space<vmem>>, vector<1x8x16xf32>
    %676 = vector.shape_cast %675 : vector<1x8x16xf32> to vector<8x16xf32>
    %677 = vector.shape_cast %674 : vector<8x16xf32> to vector<1x8x16xf32>
    tpu.vector_store %arg11[%c1_471, %c0_472, %c64_473], %677 {strides = array<i32>} : memref<2x8x256xf32, #tpu.memory_space<vmem>>, vector<1x8x16xf32>,
    %c1_474 = arith.constant 1 : index
    %c0_475 = arith.constant 0 : index
    %c90_476 = arith.constant 90 : index
    %678 = vector.load %arg17[%c1_474, %c0_475, %c90_476] : memref<2x8x288xf32, #tpu.memory_space<vmem>>, vector<1x8x16xf32>
    %679 = vector.shape_cast %678 : vector<1x8x16xf32> to vector<8x16xf32>
    %680 = vector.broadcast %477 : vector<8x1xf32> to vector<8x16xf32>
    %681 = arith.mulf %679, %680 : vector<8x16xf32>
    %682 = vector.broadcast %480 : vector<8x1xf32> to vector<8x16xf32>
    %683 = arith.addf %681, %682 : vector<8x16xf32>
    %c1_477 = arith.constant 1 : index
    %c0_478 = arith.constant 0 : index
    %c80_479 = arith.constant 80 : index
    %684 = vector.load %arg11[%c1_477, %c0_478, %c80_479] : memref<2x8x256xf32, #tpu.memory_space<vmem>>, vector<1x8x16xf32>
    %685 = vector.shape_cast %684 : vector<1x8x16xf32> to vector<8x16xf32>
    %686 = vector.shape_cast %683 : vector<8x16xf32> to vector<1x8x16xf32>
    tpu.vector_store %arg11[%c1_477, %c0_478, %c80_479], %686 {strides = array<i32>} : memref<2x8x256xf32, #tpu.memory_space<vmem>>, vector<1x8x16xf32>,
    %c1_480 = arith.constant 1 : index
    %c0_481 = arith.constant 0 : index
    %c108_482 = arith.constant 108 : index
    %687 = vector.load %arg17[%c1_480, %c0_481, %c108_482] : memref<2x8x288xf32, #tpu.memory_space<vmem>>, vector<1x8x16xf32>
    %688 = vector.shape_cast %687 : vector<1x8x16xf32> to vector<8x16xf32>
    %689 = vector.broadcast %477 : vector<8x1xf32> to vector<8x16xf32>
    %690 = arith.mulf %688, %689 : vector<8x16xf32>
    %691 = vector.broadcast %480 : vector<8x1xf32> to vector<8x16xf32>
    %692 = arith.addf %690, %691 : vector<8x16xf32>
    %c1_483 = arith.constant 1 : index
    %c0_484 = arith.constant 0 : index
    %c96_485 = arith.constant 96 : index
    %693 = vector.load %arg11[%c1_483, %c0_484, %c96_485] : memref<2x8x256xf32, #tpu.memory_space<vmem>>, vector<1x8x16xf32>
    %694 = vector.shape_cast %693 : vector<1x8x16xf32> to vector<8x16xf32>
    %695 = vector.shape_cast %692 : vector<8x16xf32> to vector<1x8x16xf32>
    tpu.vector_store %arg11[%c1_483, %c0_484, %c96_485], %695 {strides = array<i32>} : memref<2x8x256xf32, #tpu.memory_space<vmem>>, vector<1x8x16xf32>,
    %c1_486 = arith.constant 1 : index
    %c0_487 = arith.constant 0 : index
    %c126_488 = arith.constant 126 : index
    %696 = vector.load %arg17[%c1_486, %c0_487, %c126_488] : memref<2x8x288xf32, #tpu.memory_space<vmem>>, vector<1x8x16xf32>
    %697 = vector.shape_cast %696 : vector<1x8x16xf32> to vector<8x16xf32>
    %698 = vector.broadcast %477 : vector<8x1xf32> to vector<8x16xf32>
    %699 = arith.mulf %697, %698 : vector<8x16xf32>
    %700 = vector.broadcast %480 : vector<8x1xf32> to vector<8x16xf32>
    %701 = arith.addf %699, %700 : vector<8x16xf32>
    %c1_489 = arith.constant 1 : index
    %c0_490 = arith.constant 0 : index
    %c112_491 = arith.constant 112 : index
    %702 = vector.load %arg11[%c1_489, %c0_490, %c112_491] : memref<2x8x256xf32, #tpu.memory_space<vmem>>, vector<1x8x16xf32>
    %703 = vector.shape_cast %702 : vector<1x8x16xf32> to vector<8x16xf32>
    %704 = vector.shape_cast %701 : vector<8x16xf32> to vector<1x8x16xf32>
    tpu.vector_store %arg11[%c1_489, %c0_490, %c112_491], %704 {strides = array<i32>} : memref<2x8x256xf32, #tpu.memory_space<vmem>>, vector<1x8x16xf32>,
    %c1_492 = arith.constant 1 : index
    %c0_493 = arith.constant 0 : index
    %c144_494 = arith.constant 144 : index
    %705 = vector.load %arg17[%c1_492, %c0_493, %c144_494] : memref<2x8x288xf32, #tpu.memory_space<vmem>>, vector<1x8x16xf32>
    %706 = vector.shape_cast %705 : vector<1x8x16xf32> to vector<8x16xf32>
    %707 = vector.broadcast %477 : vector<8x1xf32> to vector<8x16xf32>
    %708 = arith.mulf %706, %707 : vector<8x16xf32>
    %709 = vector.broadcast %480 : vector<8x1xf32> to vector<8x16xf32>
    %710 = arith.addf %708, %709 : vector<8x16xf32>
    %c1_495 = arith.constant 1 : index
    %c0_496 = arith.constant 0 : index
    %c128_497 = arith.constant 128 : index
    %711 = vector.load %arg11[%c1_495, %c0_496, %c128_497] : memref<2x8x256xf32, #tpu.memory_space<vmem>>, vector<1x8x16xf32>
    %712 = vector.shape_cast %711 : vector<1x8x16xf32> to vector<8x16xf32>
    %713 = vector.shape_cast %710 : vector<8x16xf32> to vector<1x8x16xf32>
    tpu.vector_store %arg11[%c1_495, %c0_496, %c128_497], %713 {strides = array<i32>} : memref<2x8x256xf32, #tpu.memory_space<vmem>>, vector<1x8x16xf32>,
    %c1_498 = arith.constant 1 : index
    %c0_499 = arith.constant 0 : index
    %c162_500 = arith.constant 162 : index
    %714 = vector.load %arg17[%c1_498, %c0_499, %c162_500] : memref<2x8x288xf32, #tpu.memory_space<vmem>>, vector<1x8x16xf32>
    %715 = vector.shape_cast %714 : vector<1x8x16xf32> to vector<8x16xf32>
    %716 = vector.broadcast %477 : vector<8x1xf32> to vector<8x16xf32>
    %717 = arith.mulf %715, %716 : vector<8x16xf32>
    %718 = vector.broadcast %480 : vector<8x1xf32> to vector<8x16xf32>
    %719 = arith.addf %717, %718 : vector<8x16xf32>
    %c1_501 = arith.constant 1 : index
    %c0_502 = arith.constant 0 : index
    %c144_503 = arith.constant 144 : index
    %720 = vector.load %arg11[%c1_501, %c0_502, %c144_503] : memref<2x8x256xf32, #tpu.memory_space<vmem>>, vector<1x8x16xf32>
    %721 = vector.shape_cast %720 : vector<1x8x16xf32> to vector<8x16xf32>
    %722 = vector.shape_cast %719 : vector<8x16xf32> to vector<1x8x16xf32>
    tpu.vector_store %arg11[%c1_501, %c0_502, %c144_503], %722 {strides = array<i32>} : memref<2x8x256xf32, #tpu.memory_space<vmem>>, vector<1x8x16xf32>,
    %c1_504 = arith.constant 1 : index
    %c0_505 = arith.constant 0 : index
    %c180_506 = arith.constant 180 : index
    %723 = vector.load %arg17[%c1_504, %c0_505, %c180_506] : memref<2x8x288xf32, #tpu.memory_space<vmem>>, vector<1x8x16xf32>
    %724 = vector.shape_cast %723 : vector<1x8x16xf32> to vector<8x16xf32>
    %725 = vector.broadcast %477 : vector<8x1xf32> to vector<8x16xf32>
    %726 = arith.mulf %724, %725 : vector<8x16xf32>
    %727 = vector.broadcast %480 : vector<8x1xf32> to vector<8x16xf32>
    %728 = arith.addf %726, %727 : vector<8x16xf32>
    %c1_507 = arith.constant 1 : index
    %c0_508 = arith.constant 0 : index
    %c160_509 = arith.constant 160 : index
    %729 = vector.load %arg11[%c1_507, %c0_508, %c160_509] : memref<2x8x256xf32, #tpu.memory_space<vmem>>, vector<1x8x16xf32>
    %730 = vector.shape_cast %729 : vector<1x8x16xf32> to vector<8x16xf32>
    %731 = vector.shape_cast %728 : vector<8x16xf32> to vector<1x8x16xf32>
    tpu.vector_store %arg11[%c1_507, %c0_508, %c160_509], %731 {strides = array<i32>} : memref<2x8x256xf32, #tpu.memory_space<vmem>>, vector<1x8x16xf32>,
    %c1_510 = arith.constant 1 : index
    %c0_511 = arith.constant 0 : index
    %c198_512 = arith.constant 198 : index
    %732 = vector.load %arg17[%c1_510, %c0_511, %c198_512] : memref<2x8x288xf32, #tpu.memory_space<vmem>>, vector<1x8x16xf32>
    %733 = vector.shape_cast %732 : vector<1x8x16xf32> to vector<8x16xf32>
    %734 = vector.broadcast %477 : vector<8x1xf32> to vector<8x16xf32>
    %735 = arith.mulf %733, %734 : vector<8x16xf32>
    %736 = vector.broadcast %480 : vector<8x1xf32> to vector<8x16xf32>
    %737 = arith.addf %735, %736 : vector<8x16xf32>
    %c1_513 = arith.constant 1 : index
    %c0_514 = arith.constant 0 : index
    %c176_515 = arith.constant 176 : index
    %738 = vector.load %arg11[%c1_513, %c0_514, %c176_515] : memref<2x8x256xf32, #tpu.memory_space<vmem>>, vector<1x8x16xf32>
    %739 = vector.shape_cast %738 : vector<1x8x16xf32> to vector<8x16xf32>
    %740 = vector.shape_cast %737 : vector<8x16xf32> to vector<1x8x16xf32>
    tpu.vector_store %arg11[%c1_513, %c0_514, %c176_515], %740 {strides = array<i32>} : memref<2x8x256xf32, #tpu.memory_space<vmem>>, vector<1x8x16xf32>,
    %c1_516 = arith.constant 1 : index
    %c0_517 = arith.constant 0 : index
    %c216_518 = arith.constant 216 : index
    %741 = vector.load %arg17[%c1_516, %c0_517, %c216_518] : memref<2x8x288xf32, #tpu.memory_space<vmem>>, vector<1x8x16xf32>
    %742 = vector.shape_cast %741 : vector<1x8x16xf32> to vector<8x16xf32>
    %743 = vector.broadcast %477 : vector<8x1xf32> to vector<8x16xf32>
    %744 = arith.mulf %742, %743 : vector<8x16xf32>
    %745 = vector.broadcast %480 : vector<8x1xf32> to vector<8x16xf32>
    %746 = arith.addf %744, %745 : vector<8x16xf32>
    %c1_519 = arith.constant 1 : index
    %c0_520 = arith.constant 0 : index
    %c192_521 = arith.constant 192 : index
    %747 = vector.load %arg11[%c1_519, %c0_520, %c192_521] : memref<2x8x256xf32, #tpu.memory_space<vmem>>, vector<1x8x16xf32>
    %748 = vector.shape_cast %747 : vector<1x8x16xf32> to vector<8x16xf32>
    %749 = vector.shape_cast %746 : vector<8x16xf32> to vector<1x8x16xf32>
    tpu.vector_store %arg11[%c1_519, %c0_520, %c192_521], %749 {strides = array<i32>} : memref<2x8x256xf32, #tpu.memory_space<vmem>>, vector<1x8x16xf32>,
    %c1_522 = arith.constant 1 : index
    %c0_523 = arith.constant 0 : index
    %c234_524 = arith.constant 234 : index
    %750 = vector.load %arg17[%c1_522, %c0_523, %c234_524] : memref<2x8x288xf32, #tpu.memory_space<vmem>>, vector<1x8x16xf32>
    %751 = vector.shape_cast %750 : vector<1x8x16xf32> to vector<8x16xf32>
    %752 = vector.broadcast %477 : vector<8x1xf32> to vector<8x16xf32>
    %753 = arith.mulf %751, %752 : vector<8x16xf32>
    %754 = vector.broadcast %480 : vector<8x1xf32> to vector<8x16xf32>
    %755 = arith.addf %753, %754 : vector<8x16xf32>
    %c1_525 = arith.constant 1 : index
    %c0_526 = arith.constant 0 : index
    %c208_527 = arith.constant 208 : index
    %756 = vector.load %arg11[%c1_525, %c0_526, %c208_527] : memref<2x8x256xf32, #tpu.memory_space<vmem>>, vector<1x8x16xf32>
    %757 = vector.shape_cast %756 : vector<1x8x16xf32> to vector<8x16xf32>
    %758 = vector.shape_cast %755 : vector<8x16xf32> to vector<1x8x16xf32>
    tpu.vector_store %arg11[%c1_525, %c0_526, %c208_527], %758 {strides = array<i32>} : memref<2x8x256xf32, #tpu.memory_space<vmem>>, vector<1x8x16xf32>,
    %c1_528 = arith.constant 1 : index
    %c0_529 = arith.constant 0 : index
    %c252_530 = arith.constant 252 : index
    %759 = vector.load %arg17[%c1_528, %c0_529, %c252_530] : memref<2x8x288xf32, #tpu.memory_space<vmem>>, vector<1x8x16xf32>
    %760 = vector.shape_cast %759 : vector<1x8x16xf32> to vector<8x16xf32>
    %761 = vector.broadcast %477 : vector<8x1xf32> to vector<8x16xf32>
    %762 = arith.mulf %760, %761 : vector<8x16xf32>
    %763 = vector.broadcast %480 : vector<8x1xf32> to vector<8x16xf32>
    %764 = arith.addf %762, %763 : vector<8x16xf32>
    %c1_531 = arith.constant 1 : index
    %c0_532 = arith.constant 0 : index
    %c224_533 = arith.constant 224 : index
    %765 = vector.load %arg11[%c1_531, %c0_532, %c224_533] : memref<2x8x256xf32, #tpu.memory_space<vmem>>, vector<1x8x16xf32>
    %766 = vector.shape_cast %765 : vector<1x8x16xf32> to vector<8x16xf32>
    %767 = vector.shape_cast %764 : vector<8x16xf32> to vector<1x8x16xf32>
    tpu.vector_store %arg11[%c1_531, %c0_532, %c224_533], %767 {strides = array<i32>} : memref<2x8x256xf32, #tpu.memory_space<vmem>>, vector<1x8x16xf32>,
    %c1_534 = arith.constant 1 : index
    %c0_535 = arith.constant 0 : index
    %c270_536 = arith.constant 270 : index
    %768 = vector.load %arg17[%c1_534, %c0_535, %c270_536] : memref<2x8x288xf32, #tpu.memory_space<vmem>>, vector<1x8x16xf32>
    %769 = vector.shape_cast %768 : vector<1x8x16xf32> to vector<8x16xf32>
    %770 = vector.broadcast %477 : vector<8x1xf32> to vector<8x16xf32>
    %771 = arith.mulf %769, %770 : vector<8x16xf32>
    %772 = vector.broadcast %480 : vector<8x1xf32> to vector<8x16xf32>
    %773 = arith.addf %771, %772 : vector<8x16xf32>
    %c1_537 = arith.constant 1 : index
    %c0_538 = arith.constant 0 : index
    %c240_539 = arith.constant 240 : index
    %774 = vector.load %arg11[%c1_537, %c0_538, %c240_539] : memref<2x8x256xf32, #tpu.memory_space<vmem>>, vector<1x8x16xf32>
    %775 = vector.shape_cast %774 : vector<1x8x16xf32> to vector<8x16xf32>
    %776 = vector.shape_cast %773 : vector<8x16xf32> to vector<1x8x16xf32>
    tpu.vector_store %arg11[%c1_537, %c0_538, %c240_539], %776 {strides = array<i32>} : memref<2x8x256xf32, #tpu.memory_space<vmem>>, vector<1x8x16xf32>,
    %c1_540 = arith.constant 1 : index
    %c0_541 = arith.constant 0 : index
    %c0_542 = arith.constant 0 : index
    %777 = vector.load %arg11[%c1_540, %c0_541, %c0_542] : memref<2x8x256xf32, #tpu.memory_space<vmem>>, vector<1x4x256xf32>
    %778 = vector.shape_cast %777 : vector<1x4x256xf32> to vector<4x256xf32>
    %c1_543 = arith.constant 1 : index
    %c0_544 = arith.constant 0 : index
    %c0_545 = arith.constant 0 : index
    %779 = vector.load %arg1[%c1_543, %c0_544, %c0_545] : memref<2x4x256xf32, #tpu.memory_space<vmem>>, vector<1x4x256xf32>
    %780 = vector.shape_cast %779 : vector<1x4x256xf32> to vector<4x256xf32>
    %781 = arith.addf %778, %780 : vector<4x256xf32>
    %c1_546 = arith.constant 1 : index
    %c0_547 = arith.constant 0 : index
    %c0_548 = arith.constant 0 : index
    %782 = vector.load %arg11[%c1_546, %c0_547, %c0_548] : memref<2x8x256xf32, #tpu.memory_space<vmem>>, vector<1x4x256xf32>
    %783 = vector.shape_cast %782 : vector<1x4x256xf32> to vector<4x256xf32>
    %784 = vector.shape_cast %781 : vector<4x256xf32> to vector<1x4x256xf32>
    tpu.vector_store %arg11[%c1_546, %c0_547, %c0_548], %784 {strides = array<i32>} : memref<2x8x256xf32, #tpu.memory_space<vmem>>, vector<1x4x256xf32>,
    return
  }
  func.func @transform_0(%arg0: i32) -> (i32, i32, i32) {
    %c0_i32 = arith.constant 0 : i32
    %c0_i32_0 = arith.constant 0 : i32
    %c0_i32_1 = arith.constant 0 : i32
    %c0_i32_2 = arith.constant 0 : i32
    return %c0_i32, %c0_i32_0, %c0_i32_1 : i32, i32, i32
  }
  func.func @transform_1(%arg0: i32) -> (i32, i32) {
    %c0_i32 = arith.constant 0 : i32
    %c0_i32_0 = arith.constant 0 : i32
    %c0_i32_1 = arith.constant 0 : i32
    return %c0_i32, %c0_i32_0 : i32, i32
  }
  func.func @transform_2(%arg0: i32) -> (i32, i32) {
    %c0_i32 = arith.constant 0 : i32
    %c0_i32_0 = arith.constant 0 : i32
    %c0_i32_1 = arith.constant 0 : i32
    return %c0_i32, %c0_i32_0 : i32, i32
  }
  func.func @transform_3(%arg0: i32) -> (i32, i32) {
    %c0_i32 = arith.constant 0 : i32
    %c0_i32_0 = arith.constant 0 : i32
    %c0_i32_1 = arith.constant 0 : i32
    return %c0_i32, %c0_i32_0 : i32, i32
  }
  func.func @transform_4(%arg0: i32) -> (i32, i32) {
    %c0_i32 = arith.constant 0 : i32
    %c0_i32_0 = arith.constant 0 : i32
    %c0_i32_1 = arith.constant 0 : i32
    return %c0_i32, %c0_i32_0 : i32, i32
  }
  func.func @transform_5(%arg0: i32) -> (i32, i32) {
    %c0_i32 = arith.constant 0 : i32
    %c0_i32_0 = arith.constant 0 : i32
    %c0_i32_1 = arith.constant 0 : i32
    return %c0_i32, %c0_i32_0 : i32, i32
  }
  func.func @transform_6(%arg0: i32) -> (i32, i32) {
    %c0_i32 = arith.constant 0 : i32
    %c0_i32_0 = arith.constant 0 : i32
    %c0_i32_1 = arith.constant 0 : i32
    return %c0_i32, %c0_i32_0 : i32, i32
  }
  func.func @transform_7(%arg0: i32) -> (i32, i32) {
    %c0_i32 = arith.constant 0 : i32
    %c0_i32_0 = arith.constant 0 : i32
    %c0_i32_1 = arith.constant 0 : i32
    return %c0_i32, %c0_i32_0 : i32, i32
  }
  func.func @transform_8(%arg0: i32) -> (i32, i32) {
    %c0_i32 = arith.constant 0 : i32
    %c0_i32_0 = arith.constant 0 : i32
    %c0_i32_1 = arith.constant 0 : i32
    return %c0_i32, %c0_i32_0 : i32, i32
  }
  func.func @transform_9(%arg0: i32) -> (i32, i32) {
    %c0_i32 = arith.constant 0 : i32
    %c0_i32_0 = arith.constant 0 : i32
    %c0_i32_1 = arith.constant 0 : i32
    return %c0_i32, %c0_i32_0 : i32, i32
  }
  func.func @transform_10(%arg0: i32) -> (i32, i32, i32) {
    %c0_i32 = arith.constant 0 : i32
    %c0_i32_0 = arith.constant 0 : i32
    %c0_i32_1 = arith.constant 0 : i32
    %c0_i32_2 = arith.constant 0 : i32
    return %c0_i32, %c0_i32_0, %c0_i32_1 : i32, i32, i32
  }
}

</mosaic_0001>

<llo_original>
// kernel: basic_block_forward.1
$region0: #{basic_block_forward.1}
  #allocation0 [shape = 'u32[]', space=smem, size = 0x4, offset = 0x4, fixed_abs, tag = 'smem constant byte address 0x4 - core index']
  #allocation1 [shape = 'u32[72,128]{1,0:T(1,128)}', space=vmem, size = 0x9000, scoped, tag = 'internal scratch']
  #allocation2 [shape = 'bf16[4,342]{1,0:T(4,128)(2,1)}', space=vmem, size = 0xc00, scoped, tag = 'scratch operand']
  #allocation3 [shape = 'bf16[8,342]{1,0:T(8,128)(2,1)}', space=vmem, size = 0x1800, scoped, tag = 'scratch operand']
  #allocation4 [shape = 'bf16[36,288]{1,0:T(8,128)(2,1)}', space=vmem, size = 0x7800, scoped, tag = 'scratch operand']
  #allocation5 [shape = 'bf16[72,288]{1,0:T(8,128)(2,1)}', space=vmem, size = 0xd800, scoped, tag = 'scratch operand']
  #allocation6 [shape = 'f32[2,8,288]{2,1,0:T(8,128)}', space=vmem, size = 0x6000, scoped, tag = 'scratch operand']
  #allocation7 [shape = 'f32[2,8,288]{2,1,0:T(8,128)}', space=vmem, size = 0x6000, scoped, tag = 'scratch operand']
  %s0 = inlined_call_operand.vmem [shape: f32[2,4,256], index: 0, kind: input, shape index: {}]
  %s1 = inlined_call_operand.vmem [shape: f32[1,288], index: 1, kind: input, shape index: {}]
  %s2 = inlined_call_operand.vmem [shape: bf16[8,36], index: 2, kind: input, shape index: {}]
  %s3 = inlined_call_operand.vmem [shape: bf16[8,72], index: 3, kind: input, shape index: {}]
  %s4 = inlined_call_operand.vmem [shape: f32[4,1], index: 4, kind: input, shape index: {}]
  %s5 = inlined_call_operand.vmem [shape: f32[4,1], index: 5, kind: input, shape index: {}]
  %s6 = inlined_call_operand.vmem [shape: f32[8,1], index: 6, kind: input, shape index: {}]
  %s7 = inlined_call_operand.vmem [shape: f32[8,1], index: 7, kind: input, shape index: {}]
  %s8 = inlined_call_operand.vmem [shape: f32[8,1], index: 8, kind: input, shape index: {}]
  %s9 = inlined_call_operand.vmem [shape: f32[8,1], index: 9, kind: input, shape index: {}]
  %s10 = inlined_call_operand.vmem [shape: f32[2,8,256], index: 10, kind: output, shape index: {}]
  %s11 = sld [smem:[#allocation0]]
  $region50: #{basic_block_forward.1} parent=0
    _
  %s13 = ssub.s32 1, %s11
  %s14 = scalar_select 0, %s13, %s11
  // Predicated region
  $region2: #{basic_block_forward.1} parent=0 // pred_check
    _
  $region3: #{basic_block_forward.1} parent=0 // pred_check_branch
    %16 = sbr.rel (0) target = $region5
  $region4: #{basic_block_forward.1} parent=0 // pred_region
    _
  $region5: #{basic_block_forward.1} parent=0 // pred_fallthru
    _
  // Predicated region
  $region6: #{basic_block_forward.1} parent=0 // pred_check
    _
  $region7: #{basic_block_forward.1} parent=0 // pred_check_branch
    %18 = sbr.rel (0) target = $region9
  $region8: #{basic_block_forward.1} parent=0 // pred_region
    _
  $region9: #{basic_block_forward.1} parent=0 // pred_fallthru
    _
  // Predicated region
  $region10: #{basic_block_forward.1} parent=0 // pred_check
    _
  $region11: #{basic_block_forward.1} parent=0 // pred_check_branch
    %20 = sbr.rel (0) target = $region13
  $region12: #{basic_block_forward.1} parent=0 // pred_region
    _
  $region13: #{basic_block_forward.1} parent=0 // pred_fallthru
    _
  // Predicated region
  $region14: #{basic_block_forward.1} parent=0 // pred_check
    _
  $region15: #{basic_block_forward.1} parent=0 // pred_check_branch
    %22 = sbr.rel (0) target = $region17
  $region16: #{basic_block_forward.1} parent=0 // pred_region
    _
  $region17: #{basic_block_forward.1} parent=0 // pred_fallthru
    _
  // Predicated region
  $region18: #{basic_block_forward.1} parent=0 // pred_check
    _
  $region19: #{basic_block_forward.1} parent=0 // pred_check_branch
    %24 = sbr.rel (0) target = $region21
  $region20: #{basic_block_forward.1} parent=0 // pred_region
    _
  $region21: #{basic_block_forward.1} parent=0 // pred_fallthru
    _
  // Predicated region
  $region22: #{basic_block_forward.1} parent=0 // pred_check
    _
  $region23: #{basic_block_forward.1} parent=0 // pred_check_branch
    %26 = sbr.rel (0) target = $region25
  $region24: #{basic_block_forward.1} parent=0 // pred_region
    _
  $region25: #{basic_block_forward.1} parent=0 // pred_fallthru
    _
  // Predicated region
  $region26: #{basic_block_forward.1} parent=0 // pred_check
    _
  $region27: #{basic_block_forward.1} parent=0 // pred_check_branch
    %28 = sbr.rel (0) target = $region29
  $region28: #{basic_block_forward.1} parent=0 // pred_region
    _
  $region29: #{basic_block_forward.1} parent=0 // pred_fallthru
    _
  // Predicated region
  $region30: #{basic_block_forward.1} parent=0 // pred_check
    _
  $region31: #{basic_block_forward.1} parent=0 // pred_check_branch
    %30 = sbr.rel (0) target = $region33
  $region32: #{basic_block_forward.1} parent=0 // pred_region
    _
  $region33: #{basic_block_forward.1} parent=0 // pred_fallthru
    _
  // Predicated region
  $region34: #{basic_block_forward.1} parent=0 // pred_check
    _
  $region35: #{basic_block_forward.1} parent=0 // pred_check_branch
    %32 = sbr.rel (0) target = $region37
  $region36: #{basic_block_forward.1} parent=0 // pred_region
    _
  $region37: #{basic_block_forward.1} parent=0 // pred_fallthru
    _
  // Predicated region
  $region38: #{basic_block_forward.1} parent=0 // pred_check
    _
  $region39: #{basic_block_forward.1} parent=0 // pred_check_branch
    %34 = sbr.rel (0) target = $region41
  $region40: #{basic_block_forward.1} parent=0 // pred_region
    _
  $region41: #{basic_block_forward.1} parent=0 // pred_fallthru
    _
  %vm36 = vcmask 1041408
  %vm37 = vcmask 1043458
  %vm38 = vmor %vm37, %vm36
  %vm39 = vcmask 701444
  %vm40 = vmor %vm39, %vm38
  %41 = vst.msk [vmem:[#allocation2] sm:$0x3f] %vm40, 0
  %42 = vst [vmem:[#allocation3] sm:$0xff] 0
  %vm43 = vcmask 699392
  %44 = vst.msk [vmem:[#allocation3 + $0x8] sm:$0xf] %vm43, 0
  %v45 = vld [vmem:[%s1] sm:$0x7]
  %v46 = vld [vmem:[%s0] sm:$0xff]
  %48 = vst [vmem:[#allocation1] ss:$2 sm:$0xff] %v46
  %v49 = vld.sshfl [vmem:[#allocation1] sm:$0xff pattern:$0x75316420]
  %v50 = vld.sshfl [vmem:[#allocation1 + $0x8] sm:$0xff pattern:$0x75316420]
  %vm53 = vcmask 1043456
  %v54 = vsel %vm53, %v49, 0.0
  %v55 = vsel %vm53, %v50, 0.0
  %v56 = vadd.f32 %v54, %v55
  %57 = vadd.xlane.f32.xlu0 %v56
  %v58 = vpop.xlane.xlu0 %57
  %v59 = vadd.f32 %v58, 0.0
  %v60 = vmul.f32 %v46, %v46
  %62 = vst [vmem:[#allocation1] ss:$2 sm:$0xff] %v60
  %v63 = vld.sshfl [vmem:[#allocation1] sm:$0xff pattern:$0x75316420]
  %v64 = vld.sshfl [vmem:[#allocation1 + $0x8] sm:$0xff pattern:$0x75316420]
  %v67 = vsel %vm53, %v63, 0.0
  %v68 = vsel %vm53, %v64, 0.0
  %v69 = vadd.f32 %v67, %v68
  %70 = vadd.xlane.f32.xlu0 %v69
  %v71 = vpop.xlane.xlu0 %70
  %v72 = vadd.f32 %v71, 0.0
  %s73 = scalar_lea.vmem %s0, 8
  %v74 = vld [vmem:[%s73] sm:$0xff]
  %76 = vst [vmem:[#allocation1] ss:$2 sm:$0xff] %v74
  %v77 = vld.sshfl [vmem:[#allocation1] sm:$0xff pattern:$0x75316420]
  %v78 = vld.sshfl [vmem:[#allocation1 + $0x8] sm:$0xff pattern:$0x75316420]
  %v81 = vsel %vm53, %v77, 0.0
  %v82 = vsel %vm53, %v78, 0.0
  %v83 = vadd.f32 %v81, %v82
  %84 = vadd.xlane.f32.xlu0 %v83
  %v85 = vpop.xlane.xlu0 %84
  %v86 = vadd.f32 %v59, %v85
  %v87 = vmul.f32 %v74, %v74
  %89 = vst [vmem:[#allocation1] ss:$2 sm:$0xff] %v87
  %v90 = vld.sshfl [vmem:[#allocation1] sm:$0xff pattern:$0x75316420]
  %v91 = vld.sshfl [vmem:[#allocation1 + $0x8] sm:$0xff pattern:$0x75316420]
  %v94 = vsel %vm53, %v90, 0.0
  %v95 = vsel %vm53, %v91, 0.0
  %v96 = vadd.f32 %v94, %v95
  %97 = vadd.xlane.f32.xlu0 %v96
  %v98 = vpop.xlane.xlu0 %97
  %v99 = vadd.f32 %v72, %v98
  %v100 = vmul.f32 %v86, 0.001953125
  %v101 = vmul.f32 %v99, 0.001953125
  %v102 = vmul.f32 %v100, %v100
  %v103 = vsub.f32 %v101, %v102
  %v104 = vld [vmem:[%s4] sm:$0xf]
  %v105 = vadd.f32 %v103, 1e-05
  %v106 = vrsqrt.pop %v105
  %v107 = vmul.f32 %v106, %v105
  %v108 = vmul.f32 %v107, %v106
  %v109 = vmul.f32 0.5, %v108
  %v110 = vsub.f32 1.5, %v109
  %v111 = vmul.f32 %v106, %v110
  %vm112 = vweird.f32 %v105
  %vm113 = vweird.f32 %v106
  %vm114 = vmor %vm112, %vm113
  %v115 = vsel %vm114, %v106, %v111
  %v116 = vmul.f32 %v104, %v115
  %v117 = vld [vmem:[%s5] sm:$0xf]
  %v118 = vmul.f32 %v100, %v116
  %v119 = vsub.f32 %v117, %v118
  %v120 = vld [vmem:[%s2] sm:$0xf]
  %v121 = vld [vmem:[%s0] sm:$0xf]
  %123 = vset.pattern.permute.xlu0 0
  %124 = vperm.xlu0 %123, %v116
  %v125 = vpop.permute.xlu0 %124
  %v127 = vmul.f32 %v121, %v125
  %129 = vset.pattern.permute.xlu0 0
  %130 = vperm.xlu0 %129, %v119
  %v131 = vpop.permute.xlu0 %130
  %v133 = vadd.f32 %v127, %v131
  %v134 = vpack.c.bf16 %v133, %v133
  %v136 = vrot.slane %v134, 2
  %v139 = vsel %vm36, %v134, %v136
  %141 = vrot.lane.b32.xlu0 %v139, 19
  %v142 = vpop.permute.xlu0 %141
  %vm144 = vcmask 279704
  %145 = vst.msk [vmem:[#allocation2] sm:$0x3] %vm144, %v142
  %v146 = vld [vmem:[%s0] sm:$0xf]
  %v147 = vmul.f32 %v146, %v125
  %v148 = vadd.f32 %v147, %v131
  %v149 = vpack.c.bf16 %v148, %v148
  %v151 = vrot.slane %v149, 2
  %v154 = vsel %vm36, %v149, %v151
  %156 = vrot.lane.b32.xlu0 %v154, 21
  %v157 = vpop.permute.xlu0 %156
  %vm159 = vcmask 427304
  %160 = vst.msk [vmem:[#allocation2] sm:$0x3] %vm159, %v157
  %v161 = vld [vmem:[%s0] sm:$0xf]
  %v162 = vmul.f32 %v161, %v125
  %v163 = vadd.f32 %v162, %v131
  %v164 = vpack.c.bf16 %v163, %v163
  %v166 = vrot.slane %v164, 2
  %v169 = vsel %vm36, %v164, %v166
  %171 = vrot.lane.b32.xlu0 %v169, 23
  %v172 = vpop.permute.xlu0 %171
  %vm174 = vcmask 574904
  %175 = vst.msk [vmem:[#allocation2] sm:$0x3] %vm174, %v172
  %v176 = vld [vmem:[%s0] sm:$0xf]
  %v177 = vmul.f32 %v176, %v125
  %v178 = vadd.f32 %v177, %v131
  %v179 = vpack.c.bf16 %v178, %v178
  %v181 = vrot.slane %v179, 2
  %v184 = vsel %vm36, %v179, %v181
  %186 = vrot.lane.b32.xlu0 %v184, 25
  %v187 = vpop.permute.xlu0 %186
  %vm189 = vcmask 722504
  %190 = vst.msk [vmem:[#allocation2] sm:$0x3] %vm189, %v187
  %v191 = vld [vmem:[%s0] sm:$0xf]
  %v192 = vmul.f32 %v191, %v125
  %v193 = vadd.f32 %v192, %v131
  %v194 = vpack.c.bf16 %v193, %v193
  %v196 = vrot.slane %v194, 2
  %v199 = vsel %vm36, %v194, %v196
  %201 = vrot.lane.b32.xlu0 %v199, 27
  %v202 = vpop.permute.xlu0 %201
  %vm204 = vcmask 870104
  %205 = vst.msk [vmem:[#allocation2] sm:$0x3] %vm204, %v202
  %v206 = vld [vmem:[%s0] sm:$0xf]
  %v207 = vmul.f32 %v206, %v125
  %v208 = vadd.f32 %v207, %v131
  %v209 = vpack.c.bf16 %v208, %v208
  %v211 = vrot.slane %v209, 2
  %v214 = vsel %vm36, %v209, %v211
  %216 = vrot.lane.b32.xlu0 %v214, 29
  %v217 = vpop.permute.xlu0 %216
  %vm219 = vcmask 1017704
  %220 = vst.msk [vmem:[#allocation2] sm:$0x3] %vm219, %v217
  %v221 = vld [vmem:[%s0] sm:$0xf]
  %v222 = vmul.f32 %v221, %v125
  %v223 = vadd.f32 %v222, %v131
  %v224 = vpack.c.bf16 %v223, %v223
  %v226 = vrot.slane %v224, 2
  %v229 = vsel %vm36, %v224, %v226
  %231 = vrot.lane.b32.xlu0 %v229, 31
  %v232 = vpop.permute.xlu0 %231
  %v233 = vrot.slane %v232, 6
  %vm234 = vcmask 252928
  %v235 = vsel %vm234, %v233, %v232
  %vm237 = vcmask 1042424
  %vm238 = vcmask 117762
  %vm239 = vmor %vm238, %vm237
  %240 = vst.msk [vmem:[#allocation2] sm:$0xf] %vm239, %v235
  %v241 = vld [vmem:[%s0] sm:$0xf]
  %v242 = vmul.f32 %v241, %v125
  %v243 = vadd.f32 %v242, %v131
  %v244 = vpack.c.bf16 %v243, %v243
  %v246 = vrot.slane %v244, 2
  %v249 = vsel %vm36, %v244, %v246
  %251 = vrot.lane.b32.xlu0 %v249, 33
  %v252 = vpop.permute.xlu0 %251
  %vm254 = vcmask 263304
  %255 = vst.msk [vmem:[#allocation2 + $0x2] sm:$0x3] %vm254, %v252
  %v256 = vld [vmem:[%s0 + $0x4] sm:$0xf]
  %v257 = vmul.f32 %v256, %v125
  %v258 = vadd.f32 %v257, %v131
  %v259 = vpack.c.bf16 %v258, %v258
  %v261 = vrot.slane %v259, 2
  %v264 = vsel %vm36, %v259, %v261
  %266 = vrot.lane.b32.xlu0 %v264, 35
  %v267 = vpop.permute.xlu0 %266
  %vm269 = vcmask 410904
  %270 = vst.msk [vmem:[#allocation2 + $0x2] sm:$0x3] %vm269, %v267
  %v271 = vld [vmem:[%s0 + $0x4] sm:$0xf]
  %v272 = vmul.f32 %v271, %v125
  %v273 = vadd.f32 %v272, %v131
  %v274 = vpack.c.bf16 %v273, %v273
  %v276 = vrot.slane %v274, 2
  %v279 = vsel %vm36, %v274, %v276
  %281 = vrot.lane.b32.xlu0 %v279, 37
  %v282 = vpop.permute.xlu0 %281
  %vm284 = vcmask 558504
  %285 = vst.msk [vmem:[#allocation2 + $0x2] sm:$0x3] %vm284, %v282
  %v286 = vld [vmem:[%s0 + $0x4] sm:$0xf]
  %v287 = vmul.f32 %v286, %v125
  %v288 = vadd.f32 %v287, %v131
  %v289 = vpack.c.bf16 %v288, %v288
  %v291 = vrot.slane %v289, 2
  %v294 = vsel %vm36, %v289, %v291
  %296 = vrot.lane.b32.xlu0 %v294, 39
  %v297 = vpop.permute.xlu0 %296
  %vm299 = vcmask 706104
  %300 = vst.msk [vmem:[#allocation2 + $0x2] sm:$0x3] %vm299, %v297
  %v301 = vld [vmem:[%s0 + $0x4] sm:$0xf]
  %v302 = vmul.f32 %v301, %v125
  %v303 = vadd.f32 %v302, %v131
  %v304 = vpack.c.bf16 %v303, %v303
  %v306 = vrot.slane %v304, 2
  %v309 = vsel %vm36, %v304, %v306
  %311 = vrot.lane.b32.xlu0 %v309, 41
  %v312 = vpop.permute.xlu0 %311
  %vm314 = vcmask 853704
  %315 = vst.msk [vmem:[#allocation2 + $0x2] sm:$0x3] %vm314, %v312
  %v316 = vld [vmem:[%s0 + $0x4] sm:$0xf]
  %v317 = vmul.f32 %v316, %v125
  %v318 = vadd.f32 %v317, %v131
  %v319 = vpack.c.bf16 %v318, %v318
  %v321 = vrot.slane %v319, 2
  %v324 = vsel %vm36, %v319, %v321
  %326 = vrot.lane.b32.xlu0 %v324, 43
  %v327 = vpop.permute.xlu0 %326
  %vm329 = vcmask 1001304
  %330 = vst.msk [vmem:[#allocation2 + $0x2] sm:$0x3] %vm329, %v327
  %v331 = vld [vmem:[%s0 + $0x4] sm:$0xf]
  %v332 = vmul.f32 %v331, %v125
  %v333 = vadd.f32 %v332, %v131
  %v334 = vpack.c.bf16 %v333, %v333
  %v336 = vrot.slane %v334, 2
  %v339 = vsel %vm36, %v334, %v336
  %341 = vrot.lane.b32.xlu0 %v339, 45
  %v342 = vpop.permute.xlu0 %341
  %v343 = vrot.slane %v342, 6
  %vm344 = vcmask 367616
  %v345 = vsel %vm344, %v343, %v342
  %vm347 = vcmask 1042408
  %vm348 = vcmask 101378
  %vm349 = vmor %vm348, %vm347
  %350 = vst.msk [vmem:[#allocation2 + $0x2] sm:$0xf] %vm349, %v345
  %v351 = vld [vmem:[%s0 + $0x4] sm:$0xf]
  %v352 = vmul.f32 %v351, %v125
  %v353 = vadd.f32 %v352, %v131
  %v354 = vpack.c.bf16 %v353, %v353
  %v356 = vrot.slane %v354, 2
  %v359 = vsel %vm36, %v354, %v356
  %361 = vrot.lane.b32.xlu0 %v359, 47
  %v362 = vpop.permute.xlu0 %361
  %vm364 = vcmask 246904
  %365 = vst.msk [vmem:[#allocation2 + $0x4] sm:$0x3] %vm364, %v362
  %v366 = vld [vmem:[%s0 + $0x4] sm:$0xf]
  %v367 = vmul.f32 %v366, %v125
  %v368 = vadd.f32 %v367, %v131
  %v369 = vpack.c.bf16 %v368, %v368
  %v371 = vrot.slane %v369, 2
  %v374 = vsel %vm36, %v369, %v371
  %376 = vrot.lane.b32.xlu0 %v374, 49
  %v377 = vpop.permute.xlu0 %376
  %vm379 = vcmask 394504
  %380 = vst.msk [vmem:[#allocation2 + $0x4] sm:$0x3] %vm379, %v377
  %v381 = vld [vmem:[#allocation2] sm:$0x3f]
  %383 = vst [vmem:[#allocation1] ss:$2 sm:$0xff] %v381
  %v384 = vld.sshfl [vmem:[#allocation1] sm:$0xff pattern:$0x75643120]
  %v385 = vld.sshfl [vmem:[#allocation1 + $0x8] sm:$0xff pattern:$0x75643120]
  %388 = vst [vmem:[#allocation4] sm:$0x33] %v384
  %vm389 = vcmask 254976
  %390 = vst.msk [vmem:[#allocation4 + $0x8] sm:$0x3] %vm389, %v385
  %v391 = vld [vmem:[#allocation2] sm:$0x3f]
  %s393 = scalar_lea.vmem [#allocation1], 1
  %394 = vst [vmem:[%s393] ss:$2 sm:$0xff] %v391
  %v395 = vld.sshfl [vmem:[#allocation1] sm:$0xff pattern:$0x75643120]
  %v397 = vld.sshfl [vmem:[#allocation1 + $0x8] sm:$0xff pattern:$0x75643120]
  %399 = vrot.lane.b32.xlu0 %v395, 127
  %v400 = vpop.permute.xlu0 %399
  %401 = vrot.lane.b32.xlu0 %v397, 127
  %v402 = vpop.permute.xlu0 %401
  %v403 = vrot.slane %v400, 4
  %v404 = vrot.slane %v402, 4
  %vm405 = vcmask 1043456
  %v406 = vsel %vm405, %v403, %v404
  %vm407 = vcmask 1039360
  %v408 = vsel %vm407, %v400, %v406
  %411 = vst [vmem:[#allocation4] sm:$0xcc] %v408
  %vm412 = vcmask 257026
  %413 = vst.msk [vmem:[#allocation4 + $0x8] sm:$0xc] %vm412, %v402
  %v414 = vld [vmem:[#allocation2] sm:$0x3f]
  %416 = vst [vmem:[#allocation1] ss:$2 sm:$0xff] %v414
  %v417 = vld.sshfl [vmem:[#allocation1] sm:$0xff pattern:$0x75643120]
  %v419 = vld.sshfl [vmem:[#allocation1 + $0x8] sm:$0xff pattern:$0x75643120]
  %421 = vrot.lane.b32.xlu0 %v417, 126
  %v422 = vpop.permute.xlu0 %421
  %423 = vrot.lane.b32.xlu0 %v419, 126
  %v424 = vpop.permute.xlu0 %423
  %v425 = vrot.slane %v422, 4
  %v426 = vrot.slane %v424, 4
  %v427 = vsel %vm405, %v425, %v426
  %vm428 = vcmask 1031168
  %v429 = vsel %vm428, %v422, %v427
  %432 = vst [vmem:[#allocation4 + $0xc] sm:$0x33] %v429
  %433 = vst.msk [vmem:[#allocation4 + $0x14] sm:$0x3] %vm389, %v424
  %v434 = vld [vmem:[#allocation2] sm:$0x3f]
  %s436 = scalar_lea.vmem [#allocation1], 1
  %437 = vst [vmem:[%s436] ss:$2 sm:$0xff] %v434
  %v438 = vld.sshfl [vmem:[#allocation1] sm:$0xff pattern:$0x75643120]
  %v440 = vld.sshfl [vmem:[#allocation1 + $0x8] sm:$0xff pattern:$0x75643120]
  %442 = vrot.lane.b32.xlu0 %v438, 110
  %v443 = vpop.permute.xlu0 %442
  %444 = vrot.lane.b32.xlu0 %v440, 110
  %v445 = vpop.permute.xlu0 %444
  %v446 = vrot.slane %v443, 4
  %v447 = vrot.slane %v445, 4
  %v448 = vsel %vm405, %v446, %v447
  %vm449 = vcmask 900096
  %v450 = vsel %vm449, %v443, %v448
  %453 = vst [vmem:[#allocation4 + $0xc] sm:$0xcc] %v450
  %454 = vst.msk [vmem:[#allocation4 + $0x14] sm:$0xc] %vm412, %v445
  %v455 = vld [vmem:[#allocation2] sm:$0x3f]
  %457 = vst [vmem:[#allocation1] ss:$2 sm:$0xff] %v455
  %v458 = vld.sshfl [vmem:[#allocation1] sm:$0xff pattern:$0x75643120]
  %v460 = vld.sshfl [vmem:[#allocation1 + $0x8] sm:$0xff pattern:$0x75643120]
  %462 = vrot.lane.b32.xlu0 %v458, 109
  %v463 = vpop.permute.xlu0 %462
  %464 = vrot.lane.b32.xlu0 %v460, 109
  %v465 = vpop.permute.xlu0 %464
  %v466 = vrot.slane %v463, 4
  %v467 = vrot.slane %v465, 4
  %v468 = vsel %vm405, %v466, %v467
  %vm469 = vcmask 891904
  %v470 = vsel %vm469, %v463, %v468
  %473 = vst [vmem:[#allocation4 + $0x18] sm:$0x33] %v470
  %474 = vst.msk [vmem:[#allocation4 + $0x20] sm:$0x3] %vm389, %v465
  %v475 = vld [vmem:[#allocation2] sm:$0x3f]
  %s477 = scalar_lea.vmem [#allocation1], 1
  %478 = vst [vmem:[%s477] ss:$2 sm:$0xff] %v475
  %v479 = vld.sshfl [vmem:[#allocation1] sm:$0xff pattern:$0x75643120]
  %v481 = vld.sshfl [vmem:[#allocation1 + $0x8] sm:$0xff pattern:$0x75643120]
  %483 = vrot.lane.b32.xlu0 %v479, 108
  %v484 = vpop.permute.xlu0 %483
  %485 = vrot.lane.b32.xlu0 %v481, 108
  %v486 = vpop.permute.xlu0 %485
  %v487 = vrot.slane %v484, 4
  %v488 = vrot.slane %v486, 4
  %v489 = vsel %vm405, %v487, %v488
  %vm490 = vcmask 883712
  %v491 = vsel %vm490, %v484, %v489
  %494 = vst [vmem:[#allocation4 + $0x18] sm:$0xcc] %v491
  %495 = vst.msk [vmem:[#allocation4 + $0x20] sm:$0xc] %vm412, %v486
  %v496 = vld [vmem:[#allocation2] sm:$0x3f]
  %498 = vst [vmem:[#allocation1] ss:$2 sm:$0xff] %v496
  %v499 = vld.sshfl [vmem:[#allocation1] sm:$0xff pattern:$0x75643120]
  %v501 = vld.sshfl [vmem:[#allocation1 + $0x8] sm:$0xff pattern:$0x75643120]
  %503 = vrot.lane.b32.xlu0 %v499, 92
  %v504 = vpop.permute.xlu0 %503
  %505 = vrot.lane.b32.xlu0 %v501, 92
  %v506 = vpop.permute.xlu0 %505
  %v507 = vrot.slane %v504, 4
  %v508 = vrot.slane %v506, 4
  %v509 = vsel %vm405, %v507, %v508
  %vm510 = vcmask 752640
  %v511 = vsel %vm510, %v504, %v509
  %514 = vst [vmem:[#allocation4 + $0x24] sm:$0x33] %v511
  %515 = vst.msk [vmem:[#allocation4 + $0x2c] sm:$0x3] %vm389, %v506
  %v516 = vld [vmem:[#allocation2] sm:$0x3f]
  %s518 = scalar_lea.vmem [#allocation1], 1
  %519 = vst [vmem:[%s518] ss:$2 sm:$0xff] %v516
  %v520 = vld.sshfl [vmem:[#allocation1] sm:$0xff pattern:$0x75643120]
  %v522 = vld.sshfl [vmem:[#allocation1 + $0x8] sm:$0xff pattern:$0x75643120]
  %524 = vrot.lane.b32.xlu0 %v520, 91
  %v525 = vpop.permute.xlu0 %524
  %526 = vrot.lane.b32.xlu0 %v522, 91
  %v527 = vpop.permute.xlu0 %526
  %v528 = vrot.slane %v525, 4
  %v529 = vrot.slane %v527, 4
  %v530 = vsel %vm405, %v528, %v529
  %vm531 = vcmask 744448
  %v532 = vsel %vm531, %v525, %v530
  %535 = vst [vmem:[#allocation4 + $0x24] sm:$0xcc] %v532
  %536 = vst.msk [vmem:[#allocation4 + $0x2c] sm:$0xc] %vm412, %v527
  %v537 = vld [vmem:[#allocation2] sm:$0x3f]
  %539 = vst [vmem:[#allocation1] ss:$2 sm:$0xff] %v537
  %v540 = vld.sshfl [vmem:[#allocation1] sm:$0xff pattern:$0x75643120]
  %v542 = vld.sshfl [vmem:[#allocation1 + $0x8] sm:$0xff pattern:$0x75643120]
  %544 = vrot.lane.b32.xlu0 %v540, 90
  %v545 = vpop.permute.xlu0 %544
  %546 = vrot.lane.b32.xlu0 %v542, 90
  %v547 = vpop.permute.xlu0 %546
  %v548 = vrot.slane %v545, 4
  %v549 = vrot.slane %v547, 4
  %v550 = vsel %vm405, %v548, %v549
  %vm551 = vcmask 736256
  %v552 = vsel %vm551, %v545, %v550
  %555 = vst [vmem:[#allocation4 + $0x30] sm:$0x33] %v552
  %556 = vst.msk [vmem:[#allocation4 + $0x38] sm:$0x3] %vm389, %v547
  %v557 = vld [vmem:[#allocation4] sm:$0xff]
  %v558 = vld [vmem:[#allocation4 + $0x8] sm:$0xf]
  %v559 = vld [vmem:[#allocation4 + $0xc] sm:$0xff]
  %v560 = vld [vmem:[#allocation4 + $0x14] sm:$0xf]
  %v561 = vld [vmem:[#allocation4 + $0x18] sm:$0xff]
  %v562 = vld [vmem:[#allocation4 + $0x20] sm:$0xf]
  %v563 = vld [vmem:[#allocation4 + $0x24] sm:$0xff]
  %v564 = vld [vmem:[#allocation4 + $0x2c] sm:$0xf]
  %v565 = vld [vmem:[#allocation4 + $0x30] sm:$0x33]
  %v566 = vld [vmem:[#allocation4 + $0x38] sm:$0x3]
  %v577 = vunpack.c.l.b16 %v557
  %v578 = vunpack.c.h.b16 %v557
  %v579 = vunpack.c.l.b16 %v558
  %v580 = vunpack.c.l.b16 %v559
  %v581 = vunpack.c.h.b16 %v559
  %v582 = vunpack.c.l.b16 %v560
  %v583 = vunpack.c.l.b16 %v561
  %v584 = vunpack.c.h.b16 %v561
  %v585 = vunpack.c.l.b16 %v562
  %v586 = vunpack.c.l.b16 %v563
  %v587 = vunpack.c.h.b16 %v563
  %v588 = vunpack.c.l.b16 %v564
  %v589 = vunpack.c.l.b16 %v565
  %v590 = vunpack.c.h.b16 %v565
  %v591 = vunpack.c.l.b16 %v566
  %v592 = vpack.c.b16 %v580, %v577
  %v593 = vpack.c.b16 %v581, %v578
  %v594 = vpack.c.b16 %v582, %v579
  %v595 = vpack.c.b16 %v586, %v583
  %v596 = vpack.c.b16 %v587, %v584
  %v597 = vpack.c.b16 %v588, %v585
  %v598 = vpack.c.b16 %v589, %v589
  %v599 = vpack.c.b16 %v590, %v590
  %v600 = vpack.c.b16 %v591, %v591
  %vm607 = vcmask 293888
  %v609 = vsel %vm607, %v120, 0
  %v612 = vsel %vm36, %v598, 0
  %v615 = vsel %vm36, %v599, 0
  %v618 = vsel %vm36, %v600, 0
  %620 = vmatpush.bf16.msra.mxu0 0
  %621 = vmatpush.bf16.msra.mxu0 0
  %622 = vmatpush.bf16.msra.mxu0 0
  %623 = vmatpush.bf16.msra.mxu0 0
  %624 = vmatpush.bf16.msra.mxu0 0
  %625 = vmatpush.bf16.msra.mxu0 %v612
  %626 = vmatpush.bf16.msra.mxu0 %v595
  %627 = vmatpush.bf16.msra.mxu0 %v592
  %628 = vmatmul.bf16.gmra.mxu0 %v609
  %v629 = vpop.f32.mrf.mxu0
  %v630 = vadd.f32 0.0, %v629
  %v631 = vpop.f32.mrf.mxu0
  %632 = vdwg.mxu0
  %633 = vmatpush.bf16.msra.mxu0 0
  %634 = vmatpush.bf16.msra.mxu0 0
  %635 = vmatpush.bf16.msra.mxu0 0
  %636 = vmatpush.bf16.msra.mxu0 0
  %637 = vmatpush.bf16.msra.mxu0 0
  %638 = vmatpush.bf16.msra.mxu0 %v615
  %639 = vmatpush.bf16.msra.mxu0 %v596
  %640 = vmatpush.bf16.msra.mxu0 %v593
  %641 = vmatmul.bf16.gmra.mxu0 %v609
  %v642 = vpop.f32.mrf.mxu0
  %v643 = vadd.f32 0.0, %v642
  %v644 = vpop.f32.mrf.mxu0
  %645 = vdwg.mxu0
  %646 = vmatpush.bf16.msra.mxu0 0
  %647 = vmatpush.bf16.msra.mxu0 0
  %648 = vmatpush.bf16.msra.mxu0 0
  %649 = vmatpush.bf16.msra.mxu0 0
  %650 = vmatpush.bf16.msra.mxu0 0
  %651 = vmatpush.bf16.msra.mxu0 %v618
  %652 = vmatpush.bf16.msra.mxu0 %v597
  %653 = vmatpush.bf16.msra.mxu0 %v594
  %654 = vmatmul.bf16.gmra.mxu0 %v609
  %v655 = vpop.f32.mrf.mxu0
  %v656 = vadd.f32 0.0, %v655
  %v657 = vpop.f32.mrf.mxu0
  %658 = vdwg.mxu0
  %659 = vst [vmem:[#allocation6] sm:$0xff] %v630
  %660 = vst [vmem:[#allocation6 + $0x8] sm:$0xff] %v643
  %vm661 = vcmask 261120
  %662 = vst.msk [vmem:[#allocation6 + $0x10] sm:$0xff] %vm661, %v656
  %v664 = vperm.slane %v45, 0
  %v665 = vperm.slane %v45, 1
  %v666 = vperm.slane %v45, 2
  %v670 = vmul.f32 %v630, %v664
  %v671 = vmul.f32 %v643, %v665
  %v672 = vmul.f32 %v656, %v666
  %v673 = vadd.f32 %v670, %v671
  %v674 = vsel %vm661, %v672, 0.0
  %v675 = vadd.f32 %v673, %v674
  %676 = vadd.xlane.f32.xlu0 %v675
  %v677 = vpop.xlane.xlu0 %676
  %v678 = vadd.f32 %v677, 0.0
  %v679 = vmul.f32 %v670, %v670
  %v680 = vmul.f32 %v671, %v671
  %v681 = vmul.f32 %v672, %v672
  %v682 = vadd.f32 %v679, %v680
  %v683 = vsel %vm661, %v681, 0.0
  %v684 = vadd.f32 %v682, %v683
  %685 = vadd.xlane.f32.xlu0 %v684
  %v686 = vpop.xlane.xlu0 %685
  %v687 = vadd.f32 %v686, 0.0
  %v688 = vld [vmem:[%s73] sm:$0xf]
  %v689 = vmul.f32 %v688, %v125
  %v690 = vadd.f32 %v689, %v131
  %v691 = vpack.c.bf16 %v690, %v690
  %v693 = vrot.slane %v691, 2
  %v696 = vsel %vm36, %v691, %v693
  %698 = vrot.lane.b32.xlu0 %v696, 19
  %v699 = vpop.permute.xlu0 %698
  %701 = vst.msk [vmem:[#allocation2] sm:$0x3] %vm144, %v699
  %v702 = vld [vmem:[%s73] sm:$0xf]
  %v703 = vmul.f32 %v702, %v125
  %v704 = vadd.f32 %v703, %v131
  %v705 = vpack.c.bf16 %v704, %v704
  %v707 = vrot.slane %v705, 2
  %v710 = vsel %vm36, %v705, %v707
  %712 = vrot.lane.b32.xlu0 %v710, 21
  %v713 = vpop.permute.xlu0 %712
  %715 = vst.msk [vmem:[#allocation2] sm:$0x3] %vm159, %v713
  %v716 = vld [vmem:[%s73] sm:$0xf]
  %v717 = vmul.f32 %v716, %v125
  %v718 = vadd.f32 %v717, %v131
  %v719 = vpack.c.bf16 %v718, %v718
  %v721 = vrot.slane %v719, 2
  %v724 = vsel %vm36, %v719, %v721
  %726 = vrot.lane.b32.xlu0 %v724, 23
  %v727 = vpop.permute.xlu0 %726
  %729 = vst.msk [vmem:[#allocation2] sm:$0x3] %vm174, %v727
  %v730 = vld [vmem:[%s73] sm:$0xf]
  %v731 = vmul.f32 %v730, %v125
  %v732 = vadd.f32 %v731, %v131
  %v733 = vpack.c.bf16 %v732, %v732
  %v735 = vrot.slane %v733, 2
  %v738 = vsel %vm36, %v733, %v735
  %740 = vrot.lane.b32.xlu0 %v738, 25
  %v741 = vpop.permute.xlu0 %740
  %743 = vst.msk [vmem:[#allocation2] sm:$0x3] %vm189, %v741
  %v744 = vld [vmem:[%s73] sm:$0xf]
  %v745 = vmul.f32 %v744, %v125
  %v746 = vadd.f32 %v745, %v131
  %v747 = vpack.c.bf16 %v746, %v746
  %v749 = vrot.slane %v747, 2
  %v752 = vsel %vm36, %v747, %v749
  %754 = vrot.lane.b32.xlu0 %v752, 27
  %v755 = vpop.permute.xlu0 %754
  %757 = vst.msk [vmem:[#allocation2] sm:$0x3] %vm204, %v755
  %v758 = vld [vmem:[%s73] sm:$0xf]
  %v759 = vmul.f32 %v758, %v125
  %v760 = vadd.f32 %v759, %v131
  %v761 = vpack.c.bf16 %v760, %v760
  %v763 = vrot.slane %v761, 2
  %v766 = vsel %vm36, %v761, %v763
  %768 = vrot.lane.b32.xlu0 %v766, 29
  %v769 = vpop.permute.xlu0 %768
  %771 = vst.msk [vmem:[#allocation2] sm:$0x3] %vm219, %v769
  %v772 = vld [vmem:[%s73] sm:$0xf]
  %v773 = vmul.f32 %v772, %v125
  %v774 = vadd.f32 %v773, %v131
  %v775 = vpack.c.bf16 %v774, %v774
  %v777 = vrot.slane %v775, 2
  %v780 = vsel %vm36, %v775, %v777
  %782 = vrot.lane.b32.xlu0 %v780, 31
  %v783 = vpop.permute.xlu0 %782
  %v784 = vrot.slane %v783, 6
  %v785 = vsel %vm234, %v784, %v783
  %787 = vst.msk [vmem:[#allocation2] sm:$0xf] %vm239, %v785
  %v788 = vld [vmem:[%s73] sm:$0xf]
  %v789 = vmul.f32 %v788, %v125
  %v790 = vadd.f32 %v789, %v131
  %v791 = vpack.c.bf16 %v790, %v790
  %v793 = vrot.slane %v791, 2
  %v796 = vsel %vm36, %v791, %v793
  %798 = vrot.lane.b32.xlu0 %v796, 33
  %v799 = vpop.permute.xlu0 %798
  %801 = vst.msk [vmem:[#allocation2 + $0x2] sm:$0x3] %vm254, %v799
  %v802 = vld [vmem:[%s73 + $0x4] sm:$0xf]
  %v803 = vmul.f32 %v802, %v125
  %v804 = vadd.f32 %v803, %v131
  %v805 = vpack.c.bf16 %v804, %v804
  %v807 = vrot.slane %v805, 2
  %v810 = vsel %vm36, %v805, %v807
  %812 = vrot.lane.b32.xlu0 %v810, 35
  %v813 = vpop.permute.xlu0 %812
  %815 = vst.msk [vmem:[#allocation2 + $0x2] sm:$0x3] %vm269, %v813
  %v816 = vld [vmem:[%s73 + $0x4] sm:$0xf]
  %v817 = vmul.f32 %v816, %v125
  %v818 = vadd.f32 %v817, %v131
  %v819 = vpack.c.bf16 %v818, %v818
  %v821 = vrot.slane %v819, 2
  %v824 = vsel %vm36, %v819, %v821
  %826 = vrot.lane.b32.xlu0 %v824, 37
  %v827 = vpop.permute.xlu0 %826
  %829 = vst.msk [vmem:[#allocation2 + $0x2] sm:$0x3] %vm284, %v827
  %v830 = vld [vmem:[%s73 + $0x4] sm:$0xf]
  %v831 = vmul.f32 %v830, %v125
  %v832 = vadd.f32 %v831, %v131
  %v833 = vpack.c.bf16 %v832, %v832
  %v835 = vrot.slane %v833, 2
  %v838 = vsel %vm36, %v833, %v835
  %840 = vrot.lane.b32.xlu0 %v838, 39
  %v841 = vpop.permute.xlu0 %840
  %843 = vst.msk [vmem:[#allocation2 + $0x2] sm:$0x3] %vm299, %v841
  %v844 = vld [vmem:[%s73 + $0x4] sm:$0xf]
  %v845 = vmul.f32 %v844, %v125
  %v846 = vadd.f32 %v845, %v131
  %v847 = vpack.c.bf16 %v846, %v846
  %v849 = vrot.slane %v847, 2
  %v852 = vsel %vm36, %v847, %v849
  %854 = vrot.lane.b32.xlu0 %v852, 41
  %v855 = vpop.permute.xlu0 %854
  %857 = vst.msk [vmem:[#allocation2 + $0x2] sm:$0x3] %vm314, %v855
  %v858 = vld [vmem:[%s73 + $0x4] sm:$0xf]
  %v859 = vmul.f32 %v858, %v125
  %v860 = vadd.f32 %v859, %v131
  %v861 = vpack.c.bf16 %v860, %v860
  %v863 = vrot.slane %v861, 2
  %v866 = vsel %vm36, %v861, %v863
  %868 = vrot.lane.b32.xlu0 %v866, 43
  %v869 = vpop.permute.xlu0 %868
  %871 = vst.msk [vmem:[#allocation2 + $0x2] sm:$0x3] %vm329, %v869
  %v872 = vld [vmem:[%s73 + $0x4] sm:$0xf]
  %v873 = vmul.f32 %v872, %v125
  %v874 = vadd.f32 %v873, %v131
  %v875 = vpack.c.bf16 %v874, %v874
  %v877 = vrot.slane %v875, 2
  %v880 = vsel %vm36, %v875, %v877
  %882 = vrot.lane.b32.xlu0 %v880, 45
  %v883 = vpop.permute.xlu0 %882
  %v884 = vrot.slane %v883, 6
  %v885 = vsel %vm344, %v884, %v883
  %887 = vst.msk [vmem:[#allocation2 + $0x2] sm:$0xf] %vm349, %v885
  %v888 = vld [vmem:[%s73 + $0x4] sm:$0xf]
  %v889 = vmul.f32 %v888, %v125
  %v890 = vadd.f32 %v889, %v131
  %v891 = vpack.c.bf16 %v890, %v890
  %v893 = vrot.slane %v891, 2
  %v896 = vsel %vm36, %v891, %v893
  %898 = vrot.lane.b32.xlu0 %v896, 47
  %v899 = vpop.permute.xlu0 %898
  %901 = vst.msk [vmem:[#allocation2 + $0x4] sm:$0x3] %vm364, %v899
  %v902 = vld [vmem:[%s73 + $0x4] sm:$0xf]
  %v903 = vmul.f32 %v902, %v125
  %v904 = vadd.f32 %v903, %v131
  %v905 = vpack.c.bf16 %v904, %v904
  %v907 = vrot.slane %v905, 2
  %v910 = vsel %vm36, %v905, %v907
  %912 = vrot.lane.b32.xlu0 %v910, 49
  %v913 = vpop.permute.xlu0 %912
  %915 = vst.msk [vmem:[#allocation2 + $0x4] sm:$0x3] %vm379, %v913
  %v916 = vld [vmem:[#allocation2] sm:$0x3f]
  %918 = vst [vmem:[#allocation1] ss:$2 sm:$0xff] %v916
  %v919 = vld.sshfl [vmem:[#allocation1] sm:$0xff pattern:$0x75643120]
  %v920 = vld.sshfl [vmem:[#allocation1 + $0x8] sm:$0xff pattern:$0x75643120]
  %923 = vst [vmem:[#allocation4] sm:$0x33] %v919
  %924 = vst.msk [vmem:[#allocation4 + $0x8] sm:$0x3] %vm389, %v920
  %v925 = vld [vmem:[#allocation2] sm:$0x3f]
  %s927 = scalar_lea.vmem [#allocation1], 1
  %928 = vst [vmem:[%s927] ss:$2 sm:$0xff] %v925
  %v929 = vld.sshfl [vmem:[#allocation1] sm:$0xff pattern:$0x75643120]
  %v931 = vld.sshfl [vmem:[#allocation1 + $0x8] sm:$0xff pattern:$0x75643120]
  %933 = vrot.lane.b32.xlu0 %v929, 127
  %v934 = vpop.permute.xlu0 %933
  %935 = vrot.lane.b32.xlu0 %v931, 127
  %v936 = vpop.permute.xlu0 %935
  %v937 = vrot.slane %v934, 4
  %v938 = vrot.slane %v936, 4
  %v939 = vsel %vm405, %v937, %v938
  %v940 = vsel %vm407, %v934, %v939
  %943 = vst [vmem:[#allocation4] sm:$0xcc] %v940
  %944 = vst.msk [vmem:[#allocation4 + $0x8] sm:$0xc] %vm412, %v936
  %v945 = vld [vmem:[#allocation2] sm:$0x3f]
  %947 = vst [vmem:[#allocation1] ss:$2 sm:$0xff] %v945
  %v948 = vld.sshfl [vmem:[#allocation1] sm:$0xff pattern:$0x75643120]
  %v950 = vld.sshfl [vmem:[#allocation1 + $0x8] sm:$0xff pattern:$0x75643120]
  %952 = vrot.lane.b32.xlu0 %v948, 126
  %v953 = vpop.permute.xlu0 %952
  %954 = vrot.lane.b32.xlu0 %v950, 126
  %v955 = vpop.permute.xlu0 %954
  %v956 = vrot.slane %v953, 4
  %v957 = vrot.slane %v955, 4
  %v958 = vsel %vm405, %v956, %v957
  %v959 = vsel %vm428, %v953, %v958
  %962 = vst [vmem:[#allocation4 + $0xc] sm:$0x33] %v959
  %963 = vst.msk [vmem:[#allocation4 + $0x14] sm:$0x3] %vm389, %v955
  %v964 = vld [vmem:[#allocation2] sm:$0x3f]
  %s966 = scalar_lea.vmem [#allocation1], 1
  %967 = vst [vmem:[%s966] ss:$2 sm:$0xff] %v964
  %v968 = vld.sshfl [vmem:[#allocation1] sm:$0xff pattern:$0x75643120]
  %v970 = vld.sshfl [vmem:[#allocation1 + $0x8] sm:$0xff pattern:$0x75643120]
  %972 = vrot.lane.b32.xlu0 %v968, 110
  %v973 = vpop.permute.xlu0 %972
  %974 = vrot.lane.b32.xlu0 %v970, 110
  %v975 = vpop.permute.xlu0 %974
  %v976 = vrot.slane %v973, 4
  %v977 = vrot.slane %v975, 4
  %v978 = vsel %vm405, %v976, %v977
  %v979 = vsel %vm449, %v973, %v978
  %982 = vst [vmem:[#allocation4 + $0xc] sm:$0xcc] %v979
  %983 = vst.msk [vmem:[#allocation4 + $0x14] sm:$0xc] %vm412, %v975
  %v984 = vld [vmem:[#allocation2] sm:$0x3f]
  %986 = vst [vmem:[#allocation1] ss:$2 sm:$0xff] %v984
  %v987 = vld.sshfl [vmem:[#allocation1] sm:$0xff pattern:$0x75643120]
  %v989 = vld.sshfl [vmem:[#allocation1 + $0x8] sm:$0xff pattern:$0x75643120]
  %991 = vrot.lane.b32.xlu0 %v987, 109
  %v992 = vpop.permute.xlu0 %991
  %993 = vrot.lane.b32.xlu0 %v989, 109
  %v994 = vpop.permute.xlu0 %993
  %v995 = vrot.slane %v992, 4
  %v996 = vrot.slane %v994, 4
  %v997 = vsel %vm405, %v995, %v996
  %v998 = vsel %vm469, %v992, %v997
  %1001 = vst [vmem:[#allocation4 + $0x18] sm:$0x33] %v998
  %1002 = vst.msk [vmem:[#allocation4 + $0x20] sm:$0x3] %vm389, %v994
  %v1003 = vld [vmem:[#allocation2] sm:$0x3f]
  %s1005 = scalar_lea.vmem [#allocation1], 1
  %1006 = vst [vmem:[%s1005] ss:$2 sm:$0xff] %v1003
  %v1007 = vld.sshfl [vmem:[#allocation1] sm:$0xff pattern:$0x75643120]
  %v1009 = vld.sshfl [vmem:[#allocation1 + $0x8] sm:$0xff pattern:$0x75643120]
  %1011 = vrot.lane.b32.xlu0 %v1007, 108
  %v1012 = vpop.permute.xlu0 %1011
  %1013 = vrot.lane.b32.xlu0 %v1009, 108
  %v1014 = vpop.permute.xlu0 %1013
  %v1015 = vrot.slane %v1012, 4
  %v1016 = vrot.slane %v1014, 4
  %v1017 = vsel %vm405, %v1015, %v1016
  %v1018 = vsel %vm490, %v1012, %v1017
  %1021 = vst [vmem:[#allocation4 + $0x18] sm:$0xcc] %v1018
  %1022 = vst.msk [vmem:[#allocation4 + $0x20] sm:$0xc] %vm412, %v1014
  %v1023 = vld [vmem:[#allocation2] sm:$0x3f]
  %1025 = vst [vmem:[#allocation1] ss:$2 sm:$0xff] %v1023
  %v1026 = vld.sshfl [vmem:[#allocation1] sm:$0xff pattern:$0x75643120]
  %v1028 = vld.sshfl [vmem:[#allocation1 + $0x8] sm:$0xff pattern:$0x75643120]
  %1030 = vrot.lane.b32.xlu0 %v1026, 92
  %v1031 = vpop.permute.xlu0 %1030
  %1032 = vrot.lane.b32.xlu0 %v1028, 92
  %v1033 = vpop.permute.xlu0 %1032
  %v1034 = vrot.slane %v1031, 4
  %v1035 = vrot.slane %v1033, 4
  %v1036 = vsel %vm405, %v1034, %v1035
  %v1037 = vsel %vm510, %v1031, %v1036
  %1040 = vst [vmem:[#allocation4 + $0x24] sm:$0x33] %v1037
  %1041 = vst.msk [vmem:[#allocation4 + $0x2c] sm:$0x3] %vm389, %v1033
  %v1042 = vld [vmem:[#allocation2] sm:$0x3f]
  %s1044 = scalar_lea.vmem [#allocation1], 1
  %1045 = vst [vmem:[%s1044] ss:$2 sm:$0xff] %v1042
  %v1046 = vld.sshfl [vmem:[#allocation1] sm:$0xff pattern:$0x75643120]
  %v1048 = vld.sshfl [vmem:[#allocation1 + $0x8] sm:$0xff pattern:$0x75643120]
  %1050 = vrot.lane.b32.xlu0 %v1046, 91
  %v1051 = vpop.permute.xlu0 %1050
  %1052 = vrot.lane.b32.xlu0 %v1048, 91
  %v1053 = vpop.permute.xlu0 %1052
  %v1054 = vrot.slane %v1051, 4
  %v1055 = vrot.slane %v1053, 4
  %v1056 = vsel %vm405, %v1054, %v1055
  %v1057 = vsel %vm531, %v1051, %v1056
  %1060 = vst [vmem:[#allocation4 + $0x24] sm:$0xcc] %v1057
  %1061 = vst.msk [vmem:[#allocation4 + $0x2c] sm:$0xc] %vm412, %v1053
  %v1062 = vld [vmem:[#allocation2] sm:$0x3f]
  %1064 = vst [vmem:[#allocation1] ss:$2 sm:$0xff] %v1062
  %v1065 = vld.sshfl [vmem:[#allocation1] sm:$0xff pattern:$0x75643120]
  %v1067 = vld.sshfl [vmem:[#allocation1 + $0x8] sm:$0xff pattern:$0x75643120]
  %1069 = vrot.lane.b32.xlu0 %v1065, 90
  %v1070 = vpop.permute.xlu0 %1069
  %1071 = vrot.lane.b32.xlu0 %v1067, 90
  %v1072 = vpop.permute.xlu0 %1071
  %v1073 = vrot.slane %v1070, 4
  %v1074 = vrot.slane %v1072, 4
  %v1075 = vsel %vm405, %v1073, %v1074
  %v1076 = vsel %vm551, %v1070, %v1075
  %1079 = vst [vmem:[#allocation4 + $0x30] sm:$0x33] %v1076
  %1080 = vst.msk [vmem:[#allocation4 + $0x38] sm:$0x3] %vm389, %v1072
  %v1081 = vld [vmem:[#allocation4] sm:$0xff]
  %v1082 = vld [vmem:[#allocation4 + $0x8] sm:$0xf]
  %v1083 = vld [vmem:[#allocation4 + $0xc] sm:$0xff]
  %v1084 = vld [vmem:[#allocation4 + $0x14] sm:$0xf]
  %v1085 = vld [vmem:[#allocation4 + $0x18] sm:$0xff]
  %v1086 = vld [vmem:[#allocation4 + $0x20] sm:$0xf]
  %v1087 = vld [vmem:[#allocation4 + $0x24] sm:$0xff]
  %v1088 = vld [vmem:[#allocation4 + $0x2c] sm:$0xf]
  %v1089 = vld [vmem:[#allocation4 + $0x30] sm:$0x33]
  %v1090 = vld [vmem:[#allocation4 + $0x38] sm:$0x3]
  %v1101 = vunpack.c.l.b16 %v1081
  %v1102 = vunpack.c.h.b16 %v1081
  %v1103 = vunpack.c.l.b16 %v1082
  %v1104 = vunpack.c.l.b16 %v1083
  %v1105 = vunpack.c.h.b16 %v1083
  %v1106 = vunpack.c.l.b16 %v1084
  %v1107 = vunpack.c.l.b16 %v1085
  %v1108 = vunpack.c.h.b16 %v1085
  %v1109 = vunpack.c.l.b16 %v1086
  %v1110 = vunpack.c.l.b16 %v1087
  %v1111 = vunpack.c.h.b16 %v1087
  %v1112 = vunpack.c.l.b16 %v1088
  %v1113 = vunpack.c.l.b16 %v1089
  %v1114 = vunpack.c.h.b16 %v1089
  %v1115 = vunpack.c.l.b16 %v1090
  %v1116 = vpack.c.b16 %v1104, %v1101
  %v1117 = vpack.c.b16 %v1105, %v1102
  %v1118 = vpack.c.b16 %v1106, %v1103
  %v1119 = vpack.c.b16 %v1110, %v1107
  %v1120 = vpack.c.b16 %v1111, %v1108
  %v1121 = vpack.c.b16 %v1112, %v1109
  %v1122 = vpack.c.b16 %v1113, %v1113
  %v1123 = vpack.c.b16 %v1114, %v1114
  %v1124 = vpack.c.b16 %v1115, %v1115
  %v1132 = vsel %vm36, %v1122, 0
  %v1135 = vsel %vm36, %v1123, 0
  %v1138 = vsel %vm36, %v1124, 0
  %1140 = vmatpush.bf16.msra.mxu0 0
  %1141 = vmatpush.bf16.msra.mxu0 0
  %1142 = vmatpush.bf16.msra.mxu0 0
  %1143 = vmatpush.bf16.msra.mxu0 0
  %1144 = vmatpush.bf16.msra.mxu0 0
  %1145 = vmatpush.bf16.msra.mxu0 %v1132
  %1146 = vmatpush.bf16.msra.mxu0 %v1119
  %1147 = vmatpush.bf16.msra.mxu0 %v1116
  %1148 = vmatmul.bf16.gmra.mxu0 %v609
  %v1149 = vpop.f32.mrf.mxu0
  %v1150 = vadd.f32 0.0, %v1149
  %v1151 = vpop.f32.mrf.mxu0
  %1152 = vdwg.mxu0
  %1153 = vmatpush.bf16.msra.mxu0 0
  %1154 = vmatpush.bf16.msra.mxu0 0
  %1155 = vmatpush.bf16.msra.mxu0 0
  %1156 = vmatpush.bf16.msra.mxu0 0
  %1157 = vmatpush.bf16.msra.mxu0 0
  %1158 = vmatpush.bf16.msra.mxu0 %v1135
  %1159 = vmatpush.bf16.msra.mxu0 %v1120
  %1160 = vmatpush.bf16.msra.mxu0 %v1117
  %1161 = vmatmul.bf16.gmra.mxu0 %v609
  %v1162 = vpop.f32.mrf.mxu0
  %v1163 = vadd.f32 0.0, %v1162
  %v1164 = vpop.f32.mrf.mxu0
  %1165 = vdwg.mxu0
  %1166 = vmatpush.bf16.msra.mxu0 0
  %1167 = vmatpush.bf16.msra.mxu0 0
  %1168 = vmatpush.bf16.msra.mxu0 0
  %1169 = vmatpush.bf16.msra.mxu0 0
  %1170 = vmatpush.bf16.msra.mxu0 0
  %1171 = vmatpush.bf16.msra.mxu0 %v1138
  %1172 = vmatpush.bf16.msra.mxu0 %v1121
  %1173 = vmatpush.bf16.msra.mxu0 %v1118
  %1174 = vmatmul.bf16.gmra.mxu0 %v609
  %v1175 = vpop.f32.mrf.mxu0
  %v1176 = vadd.f32 0.0, %v1175
  %v1177 = vpop.f32.mrf.mxu0
  %1178 = vdwg.mxu0
  %s1179 = scalar_lea.vmem [#allocation6], 24
  %1180 = vst [vmem:[%s1179] sm:$0xff] %v1150
  %1181 = vst [vmem:[%s1179 + $0x8] sm:$0xff] %v1163
  %1182 = vst.msk [vmem:[%s1179 + $0x10] sm:$0xff] %vm661, %v1176
  %v1183 = vmul.f32 %v1150, %v664
  %v1184 = vmul.f32 %v1163, %v665
  %v1185 = vmul.f32 %v1176, %v666
  %v1186 = vadd.f32 %v1183, %v1184
  %v1187 = vsel %vm661, %v1185, 0.0
  %v1188 = vadd.f32 %v1186, %v1187
  %1189 = vadd.xlane.f32.xlu0 %v1188
  %v1190 = vpop.xlane.xlu0 %1189
  %v1191 = vadd.f32 %v678, %v1190
  %v1192 = vmul.f32 %v1183, %v1183
  %v1193 = vmul.f32 %v1184, %v1184
  %v1194 = vmul.f32 %v1185, %v1185
  %v1195 = vadd.f32 %v1192, %v1193
  %v1196 = vsel %vm661, %v1194, 0.0
  %v1197 = vadd.f32 %v1195, %v1196
  %1198 = vadd.xlane.f32.xlu0 %v1197
  %v1199 = vpop.xlane.xlu0 %1198
  %v1200 = vadd.f32 %v687, %v1199
  %v1201 = vmul.f32 %v1191, 0.001953125
  %v1202 = vmul.f32 %v1200, 0.001953125
  %v1203 = vmul.f32 %v1201, %v1201
  %v1204 = vsub.f32 %v1202, %v1203
  %v1205 = vld [vmem:[%s6] sm:$0xff]
  %v1206 = vadd.f32 %v1204, 1e-05
  %v1207 = vrsqrt.pop %v1206
  %v1208 = vmul.f32 %v1207, %v1206
  %v1209 = vmul.f32 %v1208, %v1207
  %v1210 = vmul.f32 0.5, %v1209
  %v1211 = vsub.f32 1.5, %v1210
  %v1212 = vmul.f32 %v1207, %v1211
  %vm1213 = vweird.f32 %v1206
  %vm1214 = vweird.f32 %v1207
  %vm1215 = vmor %vm1213, %vm1214
  %v1216 = vsel %vm1215, %v1207, %v1212
  %v1217 = vmul.f32 %v1205, %v1216
  %v1218 = vld [vmem:[%s7] sm:$0xff]
  %v1219 = vmul.f32 %v1201, %v1217
  %v1220 = vsub.f32 %v1218, %v1219
  %v1221 = vld [vmem:[%s3] sm:$0xf]
  %v1222 = vld [vmem:[#allocation6] sm:$0xff]
  %v1223 = vld [vmem:[#allocation6 + $0x8] sm:$0xff]
  %v1224 = vld [vmem:[#allocation6 + $0x10] sm:$0xff]
  %1226 = vset.pattern.permute.xlu0 0
  %1227 = vperm.xlu0 %1226, %v1217
  %v1228 = vpop.permute.xlu0 %1227
  %v1230 = vmul.f32 %v1222, %v1228
  %v1231 = vmul.f32 %v1223, %v1228
  %v1232 = vmul.f32 %v1224, %v1228
  %1234 = vset.pattern.permute.xlu0 0
  %1235 = vperm.xlu0 %1234, %v1220
  %v1236 = vpop.permute.xlu0 %1235
  %v1238 = vadd.f32 %v1230, %v1236
  %v1239 = vadd.f32 %v1231, %v1236
  %v1240 = vadd.f32 %v1232, %v1236
  %v1241 = vmax.f32 %v1238, 0.0
  %v1242 = vmax.f32 %v1239, 0.0
  %v1243 = vmax.f32 %v1240, 0.0
  %v1244 = vmul.f32 %v1241, %v664
  %v1245 = vmul.f32 %v1242, %v665
  %v1246 = vmul.f32 %v1243, %v666
  %v1247 = vpack.c.bf16 %v1245, %v1244
  %v1248 = vpack.c.bf16 %v1246, %v1246
  %1251 = vrot.lane.b32.xlu0 %v1247, 19
  %v1252 = vpop.permute.xlu0 %1251
  %1253 = vrot.lane.b32.xlu0 %v1248, 19
  %v1254 = vpop.permute.xlu0 %1253
  %v1255 = vrot.slane %v1252, 4
  %vm1256 = vcmask 154624
  %v1257 = vsel %vm1256, %v1255, %v1252
  %v1258 = vsel %vm1256, %v1255, %v1254
  %vm1261 = vcmask 1043608
  %vm1262 = vcmask 1047556
  %vm1263 = vmor %vm1262, %vm1261
  %1264 = vst.msk [vmem:[#allocation3] sm:$0xff] %vm1263, %v1257
  %vm1265 = vcmask 412672
  %1266 = vst.msk [vmem:[#allocation3 + $0x8] sm:$0xf] %vm1265, %v1258
  %v1267 = vld [vmem:[#allocation3] sm:$0xff]
  %v1268 = vld [vmem:[#allocation3 + $0x8] sm:$0xf]
  %1269 = vst [vmem:[#allocation5] sm:$0xff] %v1267
  %vm1270 = vcmask 257024
  %1271 = vst.msk [vmem:[#allocation5 + $0x8] sm:$0xf] %vm1270, %v1268
  %v1272 = vld [vmem:[#allocation3] sm:$0xff]
  %v1273 = vld [vmem:[#allocation3 + $0x8] sm:$0xf]
  %1276 = vrot.lane.b32.xlu0 %v1272, 127
  %v1277 = vpop.permute.xlu0 %1276
  %1278 = vrot.lane.b32.xlu0 %v1273, 127
  %v1279 = vpop.permute.xlu0 %1278
  %v1280 = vrot.slane %v1277, 4
  %v1281 = vrot.slane %v1279, 4
  %v1282 = vsel %vm405, %v1280, %v1281
  %v1283 = vsel %vm407, %v1277, %v1282
  %1286 = vst [vmem:[#allocation5 + $0xc] sm:$0xff] %v1283
  %1287 = vst.msk [vmem:[#allocation5 + $0x14] sm:$0xf] %vm1270, %v1279
  %v1288 = vld [vmem:[#allocation3] sm:$0xff]
  %v1289 = vld [vmem:[#allocation3 + $0x8] sm:$0xf]
  %1292 = vrot.lane.b32.xlu0 %v1288, 126
  %v1293 = vpop.permute.xlu0 %1292
  %1294 = vrot.lane.b32.xlu0 %v1289, 126
  %v1295 = vpop.permute.xlu0 %1294
  %v1296 = vrot.slane %v1293, 4
  %v1297 = vrot.slane %v1295, 4
  %v1298 = vsel %vm405, %v1296, %v1297
  %v1299 = vsel %vm428, %v1293, %v1298
  %1302 = vst [vmem:[#allocation5 + $0x18] sm:$0xff] %v1299
  %1303 = vst.msk [vmem:[#allocation5 + $0x20] sm:$0xf] %vm1270, %v1295
  %v1304 = vld [vmem:[#allocation3] sm:$0xff]
  %v1305 = vld [vmem:[#allocation3 + $0x8] sm:$0xf]
  %1308 = vrot.lane.b32.xlu0 %v1304, 110
  %v1309 = vpop.permute.xlu0 %1308
  %1310 = vrot.lane.b32.xlu0 %v1305, 110
  %v1311 = vpop.permute.xlu0 %1310
  %v1312 = vrot.slane %v1309, 4
  %v1313 = vrot.slane %v1311, 4
  %v1314 = vsel %vm405, %v1312, %v1313
  %v1315 = vsel %vm449, %v1309, %v1314
  %1318 = vst [vmem:[#allocation5 + $0x24] sm:$0xff] %v1315
  %1319 = vst.msk [vmem:[#allocation5 + $0x2c] sm:$0xf] %vm1270, %v1311
  %v1320 = vld [vmem:[#allocation3] sm:$0xff]
  %v1321 = vld [vmem:[#allocation3 + $0x8] sm:$0xf]
  %1324 = vrot.lane.b32.xlu0 %v1320, 109
  %v1325 = vpop.permute.xlu0 %1324
  %1326 = vrot.lane.b32.xlu0 %v1321, 109
  %v1327 = vpop.permute.xlu0 %1326
  %v1328 = vrot.slane %v1325, 4
  %v1329 = vrot.slane %v1327, 4
  %v1330 = vsel %vm405, %v1328, %v1329
  %v1331 = vsel %vm469, %v1325, %v1330
  %1334 = vst [vmem:[#allocation5 + $0x30] sm:$0xff] %v1331
  %1335 = vst.msk [vmem:[#allocation5 + $0x38] sm:$0xf] %vm1270, %v1327
  %v1336 = vld [vmem:[#allocation3] sm:$0xff]
  %v1337 = vld [vmem:[#allocation3 + $0x8] sm:$0xf]
  %1340 = vrot.lane.b32.xlu0 %v1336, 108
  %v1341 = vpop.permute.xlu0 %1340
  %1342 = vrot.lane.b32.xlu0 %v1337, 108
  %v1343 = vpop.permute.xlu0 %1342
  %v1344 = vrot.slane %v1341, 4
  %v1345 = vrot.slane %v1343, 4
  %v1346 = vsel %vm405, %v1344, %v1345
  %v1347 = vsel %vm490, %v1341, %v1346
  %1350 = vst [vmem:[#allocation5 + $0x3c] sm:$0xff] %v1347
  %1351 = vst.msk [vmem:[#allocation5 + $0x44] sm:$0xf] %vm1270, %v1343
  %v1352 = vld [vmem:[#allocation3] sm:$0xff]
  %v1353 = vld [vmem:[#allocation3 + $0x8] sm:$0xf]
  %1356 = vrot.lane.b32.xlu0 %v1352, 92
  %v1357 = vpop.permute.xlu0 %1356
  %1358 = vrot.lane.b32.xlu0 %v1353, 92
  %v1359 = vpop.permute.xlu0 %1358
  %v1360 = vrot.slane %v1357, 4
  %v1361 = vrot.slane %v1359, 4
  %v1362 = vsel %vm405, %v1360, %v1361
  %v1363 = vsel %vm510, %v1357, %v1362
  %1366 = vst [vmem:[#allocation5 + $0x48] sm:$0xff] %v1363
  %1367 = vst.msk [vmem:[#allocation5 + $0x50] sm:$0xf] %vm1270, %v1359
  %v1368 = vld [vmem:[#allocation3] sm:$0xff]
  %v1369 = vld [vmem:[#allocation3 + $0x8] sm:$0xf]
  %1372 = vrot.lane.b32.xlu0 %v1368, 91
  %v1373 = vpop.permute.xlu0 %1372
  %1374 = vrot.lane.b32.xlu0 %v1369, 91
  %v1375 = vpop.permute.xlu0 %1374
  %v1376 = vrot.slane %v1373, 4
  %v1377 = vrot.slane %v1375, 4
  %v1378 = vsel %vm405, %v1376, %v1377
  %v1379 = vsel %vm531, %v1373, %v1378
  %1382 = vst [vmem:[#allocation5 + $0x54] sm:$0xff] %v1379
  %1383 = vst.msk [vmem:[#allocation5 + $0x5c] sm:$0xf] %vm1270, %v1375
  %v1384 = vld [vmem:[#allocation3] sm:$0xff]
  %v1385 = vld [vmem:[#allocation3 + $0x8] sm:$0xf]
  %1388 = vrot.lane.b32.xlu0 %v1384, 90
  %v1389 = vpop.permute.xlu0 %1388
  %1390 = vrot.lane.b32.xlu0 %v1385, 90
  %v1391 = vpop.permute.xlu0 %1390
  %v1392 = vrot.slane %v1389, 4
  %v1393 = vrot.slane %v1391, 4
  %v1394 = vsel %vm405, %v1392, %v1393
  %v1395 = vsel %vm551, %v1389, %v1394
  %1398 = vst [vmem:[#allocation5 + $0x60] sm:$0xff] %v1395
  %1399 = vst.msk [vmem:[#allocation5 + $0x68] sm:$0xf] %vm1270, %v1391
  %v1400 = vld [vmem:[#allocation5] sm:$0xff]
  %v1401 = vld [vmem:[#allocation5 + $0x8] sm:$0xf]
  %v1402 = vld [vmem:[#allocation5 + $0xc] sm:$0xff]
  %v1403 = vld [vmem:[#allocation5 + $0x14] sm:$0xf]
  %v1404 = vld [vmem:[#allocation5 + $0x18] sm:$0xff]
  %v1405 = vld [vmem:[#allocation5 + $0x20] sm:$0xf]
  %v1406 = vld [vmem:[#allocation5 + $0x24] sm:$0xff]
  %v1407 = vld [vmem:[#allocation5 + $0x2c] sm:$0xf]
  %v1408 = vld [vmem:[#allocation5 + $0x30] sm:$0xff]
  %v1409 = vld [vmem:[#allocation5 + $0x38] sm:$0xf]
  %v1410 = vld [vmem:[#allocation5 + $0x3c] sm:$0xff]
  %v1411 = vld [vmem:[#allocation5 + $0x44] sm:$0xf]
  %v1412 = vld [vmem:[#allocation5 + $0x48] sm:$0xff]
  %v1413 = vld [vmem:[#allocation5 + $0x50] sm:$0xf]
  %v1414 = vld [vmem:[#allocation5 + $0x54] sm:$0xff]
  %v1415 = vld [vmem:[#allocation5 + $0x5c] sm:$0xf]
  %v1416 = vld [vmem:[#allocation5 + $0x60] sm:$0xff]
  %v1417 = vld [vmem:[#allocation5 + $0x68] sm:$0xf]
  %v1436 = vunpack.c.l.b16 %v1400
  %v1437 = vunpack.c.h.b16 %v1400
  %v1438 = vunpack.c.l.b16 %v1401
  %v1439 = vunpack.c.l.b16 %v1402
  %v1440 = vunpack.c.h.b16 %v1402
  %v1441 = vunpack.c.l.b16 %v1403
  %v1442 = vunpack.c.l.b16 %v1404
  %v1443 = vunpack.c.h.b16 %v1404
  %v1444 = vunpack.c.l.b16 %v1405
  %v1445 = vunpack.c.l.b16 %v1406
  %v1446 = vunpack.c.h.b16 %v1406
  %v1447 = vunpack.c.l.b16 %v1407
  %v1448 = vunpack.c.l.b16 %v1408
  %v1449 = vunpack.c.h.b16 %v1408
  %v1450 = vunpack.c.l.b16 %v1409
  %v1451 = vunpack.c.l.b16 %v1410
  %v1452 = vunpack.c.h.b16 %v1410
  %v1453 = vunpack.c.l.b16 %v1411
  %v1454 = vunpack.c.l.b16 %v1412
  %v1455 = vunpack.c.h.b16 %v1412
  %v1456 = vunpack.c.l.b16 %v1413
  %v1457 = vunpack.c.l.b16 %v1414
  %v1458 = vunpack.c.h.b16 %v1414
  %v1459 = vunpack.c.l.b16 %v1415
  %v1460 = vunpack.c.l.b16 %v1416
  %v1461 = vunpack.c.h.b16 %v1416
  %v1462 = vunpack.c.l.b16 %v1417
  %v1463 = vpack.c.b16 %v1439, %v1436
  %v1464 = vpack.c.b16 %v1440, %v1437
  %v1465 = vpack.c.b16 %v1441, %v1438
  %v1466 = vpack.c.b16 %v1445, %v1442
  %v1467 = vpack.c.b16 %v1446, %v1443
  %v1468 = vpack.c.b16 %v1447, %v1444
  %v1469 = vpack.c.b16 %v1451, %v1448
  %v1470 = vpack.c.b16 %v1452, %v1449
  %v1471 = vpack.c.b16 %v1453, %v1450
  %v1472 = vpack.c.b16 %v1457, %v1454
  %v1473 = vpack.c.b16 %v1458, %v1455
  %v1474 = vpack.c.b16 %v1459, %v1456
  %v1475 = vpack.c.b16 %v1460, %v1460
  %v1476 = vpack.c.b16 %v1461, %v1461
  %v1477 = vpack.c.b16 %v1462, %v1462
  %vm1490 = vcmask 588800
  %v1492 = vsel %vm1490, %v1221, 0
  %v1495 = vsel %vm53, %v1475, 0
  %v1498 = vsel %vm53, %v1476, 0
  %v1501 = vsel %vm53, %v1477, 0
  %1503 = vmatpush.bf16.msra.mxu0 0
  %1504 = vmatpush.bf16.msra.mxu0 0
  %1505 = vmatpush.bf16.msra.mxu0 0
  %1506 = vmatpush.bf16.msra.mxu0 %v1495
  %1507 = vmatpush.bf16.msra.mxu0 %v1472
  %1508 = vmatpush.bf16.msra.mxu0 %v1469
  %1509 = vmatpush.bf16.msra.mxu0 %v1466
  %1510 = vmatpush.bf16.msra.mxu0 %v1463
  %1511 = vmatmul.bf16.gmra.mxu0 %v1492
  %v1512 = vpop.f32.mrf.mxu0
  %v1513 = vadd.f32 0.0, %v1512
  %v1514 = vpop.f32.mrf.mxu0
  %1515 = vdwg.mxu0
  %1516 = vmatpush.bf16.msra.mxu0 0
  %1517 = vmatpush.bf16.msra.mxu0 0
  %1518 = vmatpush.bf16.msra.mxu0 0
  %1519 = vmatpush.bf16.msra.mxu0 %v1498
  %1520 = vmatpush.bf16.msra.mxu0 %v1473
  %1521 = vmatpush.bf16.msra.mxu0 %v1470
  %1522 = vmatpush.bf16.msra.mxu0 %v1467
  %1523 = vmatpush.bf16.msra.mxu0 %v1464
  %1524 = vmatmul.bf16.gmra.mxu0 %v1492
  %v1525 = vpop.f32.mrf.mxu0
  %v1526 = vadd.f32 0.0, %v1525
  %v1527 = vpop.f32.mrf.mxu0
  %1528 = vdwg.mxu0
  %1529 = vmatpush.bf16.msra.mxu0 0
  %1530 = vmatpush.bf16.msra.mxu0 0
  %1531 = vmatpush.bf16.msra.mxu0 0
  %1532 = vmatpush.bf16.msra.mxu0 %v1501
  %1533 = vmatpush.bf16.msra.mxu0 %v1474
  %1534 = vmatpush.bf16.msra.mxu0 %v1471
  %1535 = vmatpush.bf16.msra.mxu0 %v1468
  %1536 = vmatpush.bf16.msra.mxu0 %v1465
  %1537 = vmatmul.bf16.gmra.mxu0 %v1492
  %v1538 = vpop.f32.mrf.mxu0
  %v1539 = vadd.f32 0.0, %v1538
  %v1540 = vpop.f32.mrf.mxu0
  %1541 = vdwg.mxu0
  %1542 = vst [vmem:[#allocation7] sm:$0xff] %v1513
  %1543 = vst [vmem:[#allocation7 + $0x8] sm:$0xff] %v1526
  %1544 = vst.msk [vmem:[#allocation7 + $0x10] sm:$0xff] %vm661, %v1539
  %v1545 = vmul.f32 %v1513, %v664
  %v1546 = vmul.f32 %v1526, %v665
  %v1547 = vmul.f32 %v1539, %v666
  %v1548 = vadd.f32 %v1545, %v1546
  %v1549 = vsel %vm661, %v1547, 0.0
  %v1550 = vadd.f32 %v1548, %v1549
  %1551 = vadd.xlane.f32.xlu0 %v1550
  %v1552 = vpop.xlane.xlu0 %1551
  %v1553 = vadd.f32 %v1552, 0.0
  %v1554 = vmul.f32 %v1545, %v1545
  %v1555 = vmul.f32 %v1546, %v1546
  %v1556 = vmul.f32 %v1547, %v1547
  %v1557 = vadd.f32 %v1554, %v1555
  %v1558 = vsel %vm661, %v1556, 0.0
  %v1559 = vadd.f32 %v1557, %v1558
  %1560 = vadd.xlane.f32.xlu0 %v1559
  %v1561 = vpop.xlane.xlu0 %1560
  %v1562 = vadd.f32 %v1561, 0.0
  %v1563 = vld [vmem:[%s1179] sm:$0xff]
  %v1564 = vld [vmem:[%s1179 + $0x8] sm:$0xff]
  %v1565 = vld [vmem:[%s1179 + $0x10] sm:$0xff]
  %v1566 = vmul.f32 %v1563, %v1228
  %v1567 = vmul.f32 %v1564, %v1228
  %v1568 = vmul.f32 %v1565, %v1228
  %v1569 = vadd.f32 %v1566, %v1236
  %v1570 = vadd.f32 %v1567, %v1236
  %v1571 = vadd.f32 %v1568, %v1236
  %v1572 = vmax.f32 %v1569, 0.0
  %v1573 = vmax.f32 %v1570, 0.0
  %v1574 = vmax.f32 %v1571, 0.0
  %v1575 = vmul.f32 %v1572, %v664
  %v1576 = vmul.f32 %v1573, %v665
  %v1577 = vmul.f32 %v1574, %v666
  %v1578 = vpack.c.bf16 %v1576, %v1575
  %v1579 = vpack.c.bf16 %v1577, %v1577
  %1582 = vrot.lane.b32.xlu0 %v1578, 19
  %v1583 = vpop.permute.xlu0 %1582
  %1584 = vrot.lane.b32.xlu0 %v1579, 19
  %v1585 = vpop.permute.xlu0 %1584
  %v1586 = vrot.slane %v1583, 4
  %v1587 = vsel %vm1256, %v1586, %v1583
  %v1588 = vsel %vm1256, %v1586, %v1585
  %1591 = vst.msk [vmem:[#allocation3] sm:$0xff] %vm1263, %v1587
  %1592 = vst.msk [vmem:[#allocation3 + $0x8] sm:$0xf] %vm1265, %v1588
  %v1593 = vld [vmem:[#allocation3] sm:$0xff]
  %v1594 = vld [vmem:[#allocation3 + $0x8] sm:$0xf]
  %1595 = vst [vmem:[#allocation5] sm:$0xff] %v1593
  %1596 = vst.msk [vmem:[#allocation5 + $0x8] sm:$0xf] %vm1270, %v1594
  %v1597 = vld [vmem:[#allocation3] sm:$0xff]
  %v1598 = vld [vmem:[#allocation3 + $0x8] sm:$0xf]
  %1601 = vrot.lane.b32.xlu0 %v1597, 127
  %v1602 = vpop.permute.xlu0 %1601
  %1603 = vrot.lane.b32.xlu0 %v1598, 127
  %v1604 = vpop.permute.xlu0 %1603
  %v1605 = vrot.slane %v1602, 4
  %v1606 = vrot.slane %v1604, 4
  %v1607 = vsel %vm405, %v1605, %v1606
  %v1608 = vsel %vm407, %v1602, %v1607
  %1611 = vst [vmem:[#allocation5 + $0xc] sm:$0xff] %v1608
  %1612 = vst.msk [vmem:[#allocation5 + $0x14] sm:$0xf] %vm1270, %v1604
  %v1613 = vld [vmem:[#allocation3] sm:$0xff]
  %v1614 = vld [vmem:[#allocation3 + $0x8] sm:$0xf]
  %1617 = vrot.lane.b32.xlu0 %v1613, 126
  %v1618 = vpop.permute.xlu0 %1617
  %1619 = vrot.lane.b32.xlu0 %v1614, 126
  %v1620 = vpop.permute.xlu0 %1619
  %v1621 = vrot.slane %v1618, 4
  %v1622 = vrot.slane %v1620, 4
  %v1623 = vsel %vm405, %v1621, %v1622
  %v1624 = vsel %vm428, %v1618, %v1623
  %1627 = vst [vmem:[#allocation5 + $0x18] sm:$0xff] %v1624
  %1628 = vst.msk [vmem:[#allocation5 + $0x20] sm:$0xf] %vm1270, %v1620
  %v1629 = vld [vmem:[#allocation3] sm:$0xff]
  %v1630 = vld [vmem:[#allocation3 + $0x8] sm:$0xf]
  %1633 = vrot.lane.b32.xlu0 %v1629, 110
  %v1634 = vpop.permute.xlu0 %1633
  %1635 = vrot.lane.b32.xlu0 %v1630, 110
  %v1636 = vpop.permute.xlu0 %1635
  %v1637 = vrot.slane %v1634, 4
  %v1638 = vrot.slane %v1636, 4
  %v1639 = vsel %vm405, %v1637, %v1638
  %v1640 = vsel %vm449, %v1634, %v1639
  %1643 = vst [vmem:[#allocation5 + $0x24] sm:$0xff] %v1640
  %1644 = vst.msk [vmem:[#allocation5 + $0x2c] sm:$0xf] %vm1270, %v1636
  %v1645 = vld [vmem:[#allocation3] sm:$0xff]
  %v1646 = vld [vmem:[#allocation3 + $0x8] sm:$0xf]
  %1649 = vrot.lane.b32.xlu0 %v1645, 109
  %v1650 = vpop.permute.xlu0 %1649
  %1651 = vrot.lane.b32.xlu0 %v1646, 109
  %v1652 = vpop.permute.xlu0 %1651
  %v1653 = vrot.slane %v1650, 4
  %v1654 = vrot.slane %v1652, 4
  %v1655 = vsel %vm405, %v1653, %v1654
  %v1656 = vsel %vm469, %v1650, %v1655
  %1659 = vst [vmem:[#allocation5 + $0x30] sm:$0xff] %v1656
  %1660 = vst.msk [vmem:[#allocation5 + $0x38] sm:$0xf] %vm1270, %v1652
  %v1661 = vld [vmem:[#allocation3] sm:$0xff]
  %v1662 = vld [vmem:[#allocation3 + $0x8] sm:$0xf]
  %1665 = vrot.lane.b32.xlu0 %v1661, 108
  %v1666 = vpop.permute.xlu0 %1665
  %1667 = vrot.lane.b32.xlu0 %v1662, 108
  %v1668 = vpop.permute.xlu0 %1667
  %v1669 = vrot.slane %v1666, 4
  %v1670 = vrot.slane %v1668, 4
  %v1671 = vsel %vm405, %v1669, %v1670
  %v1672 = vsel %vm490, %v1666, %v1671
  %1675 = vst [vmem:[#allocation5 + $0x3c] sm:$0xff] %v1672
  %1676 = vst.msk [vmem:[#allocation5 + $0x44] sm:$0xf] %vm1270, %v1668
  %v1677 = vld [vmem:[#allocation3] sm:$0xff]
  %v1678 = vld [vmem:[#allocation3 + $0x8] sm:$0xf]
  %1681 = vrot.lane.b32.xlu0 %v1677, 92
  %v1682 = vpop.permute.xlu0 %1681
  %1683 = vrot.lane.b32.xlu0 %v1678, 92
  %v1684 = vpop.permute.xlu0 %1683
  %v1685 = vrot.slane %v1682, 4
  %v1686 = vrot.slane %v1684, 4
  %v1687 = vsel %vm405, %v1685, %v1686
  %v1688 = vsel %vm510, %v1682, %v1687
  %1691 = vst [vmem:[#allocation5 + $0x48] sm:$0xff] %v1688
  %1692 = vst.msk [vmem:[#allocation5 + $0x50] sm:$0xf] %vm1270, %v1684
  %v1693 = vld [vmem:[#allocation3] sm:$0xff]
  %v1694 = vld [vmem:[#allocation3 + $0x8] sm:$0xf]
  %1697 = vrot.lane.b32.xlu0 %v1693, 91
  %v1698 = vpop.permute.xlu0 %1697
  %1699 = vrot.lane.b32.xlu0 %v1694, 91
  %v1700 = vpop.permute.xlu0 %1699
  %v1701 = vrot.slane %v1698, 4
  %v1702 = vrot.slane %v1700, 4
  %v1703 = vsel %vm405, %v1701, %v1702
  %v1704 = vsel %vm531, %v1698, %v1703
  %1707 = vst [vmem:[#allocation5 + $0x54] sm:$0xff] %v1704
  %1708 = vst.msk [vmem:[#allocation5 + $0x5c] sm:$0xf] %vm1270, %v1700
  %v1709 = vld [vmem:[#allocation3] sm:$0xff]
  %v1710 = vld [vmem:[#allocation3 + $0x8] sm:$0xf]
  %1713 = vrot.lane.b32.xlu0 %v1709, 90
  %v1714 = vpop.permute.xlu0 %1713
  %1715 = vrot.lane.b32.xlu0 %v1710, 90
  %v1716 = vpop.permute.xlu0 %1715
  %v1717 = vrot.slane %v1714, 4
  %v1718 = vrot.slane %v1716, 4
  %v1719 = vsel %vm405, %v1717, %v1718
  %v1720 = vsel %vm551, %v1714, %v1719
  %1723 = vst [vmem:[#allocation5 + $0x60] sm:$0xff] %v1720
  %1724 = vst.msk [vmem:[#allocation5 + $0x68] sm:$0xf] %vm1270, %v1716
  %v1725 = vld [vmem:[#allocation5] sm:$0xff]
  %v1726 = vld [vmem:[#allocation5 + $0x8] sm:$0xf]
  %v1727 = vld [vmem:[#allocation5 + $0xc] sm:$0xff]
  %v1728 = vld [vmem:[#allocation5 + $0x14] sm:$0xf]
  %v1729 = vld [vmem:[#allocation5 + $0x18] sm:$0xff]
  %v1730 = vld [vmem:[#allocation5 + $0x20] sm:$0xf]
  %v1731 = vld [vmem:[#allocation5 + $0x24] sm:$0xff]
  %v1732 = vld [vmem:[#allocation5 + $0x2c] sm:$0xf]
  %v1733 = vld [vmem:[#allocation5 + $0x30] sm:$0xff]
  %v1734 = vld [vmem:[#allocation5 + $0x38] sm:$0xf]
  %v1735 = vld [vmem:[#allocation5 + $0x3c] sm:$0xff]
  %v1736 = vld [vmem:[#allocation5 + $0x44] sm:$0xf]
  %v1737 = vld [vmem:[#allocation5 + $0x48] sm:$0xff]
  %v1738 = vld [vmem:[#allocation5 + $0x50] sm:$0xf]
  %v1739 = vld [vmem:[#allocation5 + $0x54] sm:$0xff]
  %v1740 = vld [vmem:[#allocation5 + $0x5c] sm:$0xf]
  %v1741 = vld [vmem:[#allocation5 + $0x60] sm:$0xff]
  %v1742 = vld [vmem:[#allocation5 + $0x68] sm:$0xf]
  %v1761 = vunpack.c.l.b16 %v1725
  %v1762 = vunpack.c.h.b16 %v1725
  %v1763 = vunpack.c.l.b16 %v1726
  %v1764 = vunpack.c.l.b16 %v1727
  %v1765 = vunpack.c.h.b16 %v1727
  %v1766 = vunpack.c.l.b16 %v1728
  %v1767 = vunpack.c.l.b16 %v1729
  %v1768 = vunpack.c.h.b16 %v1729
  %v1769 = vunpack.c.l.b16 %v1730
  %v1770 = vunpack.c.l.b16 %v1731
  %v1771 = vunpack.c.h.b16 %v1731
  %v1772 = vunpack.c.l.b16 %v1732
  %v1773 = vunpack.c.l.b16 %v1733
  %v1774 = vunpack.c.h.b16 %v1733
  %v1775 = vunpack.c.l.b16 %v1734
  %v1776 = vunpack.c.l.b16 %v1735
  %v1777 = vunpack.c.h.b16 %v1735
  %v1778 = vunpack.c.l.b16 %v1736
  %v1779 = vunpack.c.l.b16 %v1737
  %v1780 = vunpack.c.h.b16 %v1737
  %v1781 = vunpack.c.l.b16 %v1738
  %v1782 = vunpack.c.l.b16 %v1739
  %v1783 = vunpack.c.h.b16 %v1739
  %v1784 = vunpack.c.l.b16 %v1740
  %v1785 = vunpack.c.l.b16 %v1741
  %v1786 = vunpack.c.h.b16 %v1741
  %v1787 = vunpack.c.l.b16 %v1742
  %v1788 = vpack.c.b16 %v1764, %v1761
  %v1789 = vpack.c.b16 %v1765, %v1762
  %v1790 = vpack.c.b16 %v1766, %v1763
  %v1791 = vpack.c.b16 %v1770, %v1767
  %v1792 = vpack.c.b16 %v1771, %v1768
  %v1793 = vpack.c.b16 %v1772, %v1769
  %v1794 = vpack.c.b16 %v1776, %v1773
  %v1795 = vpack.c.b16 %v1777, %v1774
  %v1796 = vpack.c.b16 %v1778, %v1775
  %v1797 = vpack.c.b16 %v1782, %v1779
  %v1798 = vpack.c.b16 %v1783, %v1780
  %v1799 = vpack.c.b16 %v1784, %v1781
  %v1800 = vpack.c.b16 %v1785, %v1785
  %v1801 = vpack.c.b16 %v1786, %v1786
  %v1802 = vpack.c.b16 %v1787, %v1787
  %v1816 = vsel %vm53, %v1800, 0
  %v1819 = vsel %vm53, %v1801, 0
  %v1822 = vsel %vm53, %v1802, 0
  %1824 = vmatpush.bf16.msra.mxu0 0
  %1825 = vmatpush.bf16.msra.mxu0 0
  %1826 = vmatpush.bf16.msra.mxu0 0
  %1827 = vmatpush.bf16.msra.mxu0 %v1816
  %1828 = vmatpush.bf16.msra.mxu0 %v1797
  %1829 = vmatpush.bf16.msra.mxu0 %v1794
  %1830 = vmatpush.bf16.msra.mxu0 %v1791
  %1831 = vmatpush.bf16.msra.mxu0 %v1788
  %1832 = vmatmul.bf16.gmra.mxu0 %v1492
  %v1833 = vpop.f32.mrf.mxu0
  %v1834 = vadd.f32 0.0, %v1833
  %v1835 = vpop.f32.mrf.mxu0
  %1836 = vdwg.mxu0
  %1837 = vmatpush.bf16.msra.mxu0 0
  %1838 = vmatpush.bf16.msra.mxu0 0
  %1839 = vmatpush.bf16.msra.mxu0 0
  %1840 = vmatpush.bf16.msra.mxu0 %v1819
  %1841 = vmatpush.bf16.msra.mxu0 %v1798
  %1842 = vmatpush.bf16.msra.mxu0 %v1795
  %1843 = vmatpush.bf16.msra.mxu0 %v1792
  %1844 = vmatpush.bf16.msra.mxu0 %v1789
  %1845 = vmatmul.bf16.gmra.mxu0 %v1492
  %v1846 = vpop.f32.mrf.mxu0
  %v1847 = vadd.f32 0.0, %v1846
  %v1848 = vpop.f32.mrf.mxu0
  %1849 = vdwg.mxu0
  %1850 = vmatpush.bf16.msra.mxu0 0
  %1851 = vmatpush.bf16.msra.mxu0 0
  %1852 = vmatpush.bf16.msra.mxu0 0
  %1853 = vmatpush.bf16.msra.mxu0 %v1822
  %1854 = vmatpush.bf16.msra.mxu0 %v1799
  %1855 = vmatpush.bf16.msra.mxu0 %v1796
  %1856 = vmatpush.bf16.msra.mxu0 %v1793
  %1857 = vmatpush.bf16.msra.mxu0 %v1790
  %1858 = vmatmul.bf16.gmra.mxu0 %v1492
  %v1859 = vpop.f32.mrf.mxu0
  %v1860 = vadd.f32 0.0, %v1859
  %v1861 = vpop.f32.mrf.mxu0
  %1862 = vdwg.mxu0
  %s1863 = scalar_lea.vmem [#allocation7], 24
  %1864 = vst [vmem:[%s1863] sm:$0xff] %v1834
  %1865 = vst [vmem:[%s1863 + $0x8] sm:$0xff] %v1847
  %1866 = vst.msk [vmem:[%s1863 + $0x10] sm:$0xff] %vm661, %v1860
  %v1867 = vmul.f32 %v1834, %v664
  %v1868 = vmul.f32 %v1847, %v665
  %v1869 = vmul.f32 %v1860, %v666
  %v1870 = vadd.f32 %v1867, %v1868
  %v1871 = vsel %vm661, %v1869, 0.0
  %v1872 = vadd.f32 %v1870, %v1871
  %1873 = vadd.xlane.f32.xlu0 %v1872
  %v1874 = vpop.xlane.xlu0 %1873
  %v1875 = vadd.f32 %v1553, %v1874
  %v1876 = vmul.f32 %v1867, %v1867
  %v1877 = vmul.f32 %v1868, %v1868
  %v1878 = vmul.f32 %v1869, %v1869
  %v1879 = vadd.f32 %v1876, %v1877
  %v1880 = vsel %vm661, %v1878, 0.0
  %v1881 = vadd.f32 %v1879, %v1880
  %1882 = vadd.xlane.f32.xlu0 %v1881
  %v1883 = vpop.xlane.xlu0 %1882
  %v1884 = vadd.f32 %v1562, %v1883
  %v1885 = vmul.f32 %v1875, 0.001953125
  %v1886 = vmul.f32 %v1884, 0.001953125
  %v1887 = vmul.f32 %v1885, %v1885
  %v1888 = vsub.f32 %v1886, %v1887
  %v1889 = vld [vmem:[%s8] sm:$0xff]
  %v1890 = vadd.f32 %v1888, 1e-05
  %v1891 = vrsqrt.pop %v1890
  %v1892 = vmul.f32 %v1891, %v1890
  %v1893 = vmul.f32 %v1892, %v1891
  %v1894 = vmul.f32 0.5, %v1893
  %v1895 = vsub.f32 1.5, %v1894
  %v1896 = vmul.f32 %v1891, %v1895
  %vm1897 = vweird.f32 %v1890
  %vm1898 = vweird.f32 %v1891
  %vm1899 = vmor %vm1897, %vm1898
  %v1900 = vsel %vm1899, %v1891, %v1896
  %v1901 = vmul.f32 %v1889, %v1900
  %v1902 = vld [vmem:[%s9] sm:$0xff]
  %v1903 = vmul.f32 %v1885, %v1901
  %v1904 = vsub.f32 %v1902, %v1903
  %v1905 = vld [vmem:[#allocation7] sm:$0xff]
  %1907 = vset.pattern.permute.xlu0 0
  %1908 = vperm.xlu0 %1907, %v1901
  %v1909 = vpop.permute.xlu0 %1908
  %v1911 = vmul.f32 %v1905, %v1909
  %1913 = vset.pattern.permute.xlu0 0
  %1914 = vperm.xlu0 %1913, %v1904
  %v1915 = vpop.permute.xlu0 %1914
  %v1917 = vadd.f32 %v1911, %v1915
  %vm1918 = vcmask 130048
  %1919 = vst.msk [vmem:[%s10] sm:$0xff] %vm1918, %v1917
  %v1920 = vld [vmem:[#allocation7] sm:$0xff]
  %v1921 = vmul.f32 %v1920, %v1909
  %v1922 = vadd.f32 %v1921, %v1915
  %1924 = vrot.lane.b32.xlu0 %v1922, 126
  %v1925 = vpop.permute.xlu0 %1924
  %vm1927 = vcmask 261248
  %1928 = vst.msk [vmem:[%s10] sm:$0xff] %vm1927, %v1925
  %v1929 = vld [vmem:[#allocation7] sm:$0xff]
  %v1930 = vmul.f32 %v1929, %v1909
  %v1931 = vadd.f32 %v1930, %v1915
  %1933 = vrot.lane.b32.xlu0 %v1931, 124
  %v1934 = vpop.permute.xlu0 %1933
  %vm1936 = vcmask 392448
  %1937 = vst.msk [vmem:[%s10] sm:$0xff] %vm1936, %v1934
  %v1938 = vld [vmem:[#allocation7] sm:$0xff]
  %v1939 = vmul.f32 %v1938, %v1909
  %v1940 = vadd.f32 %v1939, %v1915
  %1942 = vrot.lane.b32.xlu0 %v1940, 122
  %v1943 = vpop.permute.xlu0 %1942
  %vm1945 = vcmask 523648
  %1946 = vst.msk [vmem:[%s10] sm:$0xff] %vm1945, %v1943
  %v1947 = vld [vmem:[#allocation7] sm:$0xff]
  %v1948 = vmul.f32 %v1947, %v1909
  %v1949 = vadd.f32 %v1948, %v1915
  %1951 = vrot.lane.b32.xlu0 %v1949, 120
  %v1952 = vpop.permute.xlu0 %1951
  %vm1954 = vcmask 654848
  %1955 = vst.msk [vmem:[%s10] sm:$0xff] %vm1954, %v1952
  %v1956 = vld [vmem:[#allocation7] sm:$0xff]
  %v1957 = vmul.f32 %v1956, %v1909
  %v1958 = vadd.f32 %v1957, %v1915
  %1960 = vrot.lane.b32.xlu0 %v1958, 118
  %v1961 = vpop.permute.xlu0 %1960
  %vm1963 = vcmask 786048
  %1964 = vst.msk [vmem:[%s10] sm:$0xff] %vm1963, %v1961
  %v1965 = vld [vmem:[#allocation7] sm:$0xff]
  %v1966 = vmul.f32 %v1965, %v1909
  %v1967 = vadd.f32 %v1966, %v1915
  %1969 = vrot.lane.b32.xlu0 %v1967, 116
  %v1970 = vpop.permute.xlu0 %1969
  %vm1972 = vcmask 917248
  %1973 = vst.msk [vmem:[%s10] sm:$0xff] %vm1972, %v1970
  %v1974 = vld [vmem:[#allocation7] sm:$0xff]
  %v1975 = vld [vmem:[#allocation7 + $0x8] sm:$0xff]
  %v1976 = vmul.f32 %v1974, %v1909
  %v1977 = vmul.f32 %v1975, %v1909
  %v1978 = vadd.f32 %v1976, %v1915
  %v1979 = vadd.f32 %v1977, %v1915
  %1982 = vrot.lane.b32.xlu0 %v1978, 114
  %v1983 = vpop.permute.xlu0 %1982
  %1984 = vrot.lane.b32.xlu0 %v1979, 114
  %v1985 = vpop.permute.xlu0 %1984
  %vm1986 = vcmask 932864
  %v1987 = vsel %vm1986, %v1983, %v1985
  %vm1989 = vcmask 1048448
  %1990 = vst.msk [vmem:[%s10] sm:$0xff] %vm1989, %v1987
  %v1991 = vld [vmem:[#allocation7 + $0x8] sm:$0xff]
  %v1992 = vmul.f32 %v1991, %v1909
  %v1993 = vadd.f32 %v1992, %v1915
  %1995 = vrot.lane.b32.xlu0 %v1993, 112
  %v1996 = vpop.permute.xlu0 %1995
  %1998 = vst.msk [vmem:[%s10 + $0x8] sm:$0xff] %vm1918, %v1996
  %v1999 = vld [vmem:[#allocation7 + $0x8] sm:$0xff]
  %v2000 = vmul.f32 %v1999, %v1909
  %v2001 = vadd.f32 %v2000, %v1915
  %2003 = vrot.lane.b32.xlu0 %v2001, 110
  %v2004 = vpop.permute.xlu0 %2003
  %2006 = vst.msk [vmem:[%s10 + $0x8] sm:$0xff] %vm1927, %v2004
  %v2007 = vld [vmem:[#allocation7 + $0x8] sm:$0xff]
  %v2008 = vmul.f32 %v2007, %v1909
  %v2009 = vadd.f32 %v2008, %v1915
  %2011 = vrot.lane.b32.xlu0 %v2009, 108
  %v2012 = vpop.permute.xlu0 %2011
  %2014 = vst.msk [vmem:[%s10 + $0x8] sm:$0xff] %vm1936, %v2012
  %v2015 = vld [vmem:[#allocation7 + $0x8] sm:$0xff]
  %v2016 = vmul.f32 %v2015, %v1909
  %v2017 = vadd.f32 %v2016, %v1915
  %2019 = vrot.lane.b32.xlu0 %v2017, 106
  %v2020 = vpop.permute.xlu0 %2019
  %2022 = vst.msk [vmem:[%s10 + $0x8] sm:$0xff] %vm1945, %v2020
  %v2023 = vld [vmem:[#allocation7 + $0x8] sm:$0xff]
  %v2024 = vmul.f32 %v2023, %v1909
  %v2025 = vadd.f32 %v2024, %v1915
  %2027 = vrot.lane.b32.xlu0 %v2025, 104
  %v2028 = vpop.permute.xlu0 %2027
  %2030 = vst.msk [vmem:[%s10 + $0x8] sm:$0xff] %vm1954, %v2028
  %v2031 = vld [vmem:[#allocation7 + $0x8] sm:$0xff]
  %v2032 = vmul.f32 %v2031, %v1909
  %v2033 = vadd.f32 %v2032, %v1915
  %2035 = vrot.lane.b32.xlu0 %v2033, 102
  %v2036 = vpop.permute.xlu0 %2035
  %2038 = vst.msk [vmem:[%s10 + $0x8] sm:$0xff] %vm1963, %v2036
  %v2039 = vld [vmem:[#allocation7 + $0x8] sm:$0xff]
  %v2040 = vld [vmem:[#allocation7 + $0x10] sm:$0xff]
  %v2041 = vmul.f32 %v2039, %v1909
  %v2042 = vmul.f32 %v2040, %v1909
  %v2043 = vadd.f32 %v2041, %v1915
  %v2044 = vadd.f32 %v2042, %v1915
  %2047 = vrot.lane.b32.xlu0 %v2043, 100
  %v2048 = vpop.permute.xlu0 %2047
  %2049 = vrot.lane.b32.xlu0 %v2044, 100
  %v2050 = vpop.permute.xlu0 %2049
  %vm2051 = vcmask 818176
  %v2052 = vsel %vm2051, %v2048, %v2050
  %2054 = vst.msk [vmem:[%s10 + $0x8] sm:$0xff] %vm1972, %v2052
  %v2055 = vld [vmem:[#allocation7 + $0x10] sm:$0xff]
  %v2056 = vmul.f32 %v2055, %v1909
  %v2057 = vadd.f32 %v2056, %v1915
  %2059 = vrot.lane.b32.xlu0 %v2057, 98
  %v2060 = vpop.permute.xlu0 %2059
  %2062 = vst.msk [vmem:[%s10 + $0x8] sm:$0xff] %vm1989, %v2060
  %v2063 = vld [vmem:[%s10] sm:$0xf]
  %v2064 = vld [vmem:[%s10 + $0x8] sm:$0xf]
  %v2065 = vld [vmem:[%s0] sm:$0xff]
  %2067 = vst [vmem:[#allocation1] ss:$2 sm:$0xff] %v2065
  %v2068 = vld.sshfl [vmem:[#allocation1] sm:$0xff pattern:$0x75316420]
  %v2069 = vld.sshfl [vmem:[#allocation1 + $0x8] sm:$0xff pattern:$0x75316420]
  %v2072 = vadd.f32 %v2063, %v2068
  %v2073 = vadd.f32 %v2064, %v2069
  %2074 = vst [vmem:[%s10] sm:$0xf] %v2072
  %2075 = vst [vmem:[%s10 + $0x8] sm:$0xf] %v2073
  %v2076 = vld [vmem:[%s1863] sm:$0xff]
  %v2077 = vmul.f32 %v2076, %v1909
  %v2078 = vadd.f32 %v2077, %v1915
  %s2079 = scalar_lea.vmem %s10, 16
  %2080 = vst.msk [vmem:[%s2079] sm:$0xff] %vm1918, %v2078
  %v2081 = vld [vmem:[%s1863] sm:$0xff]
  %v2082 = vmul.f32 %v2081, %v1909
  %v2083 = vadd.f32 %v2082, %v1915
  %2085 = vrot.lane.b32.xlu0 %v2083, 126
  %v2086 = vpop.permute.xlu0 %2085
  %2088 = vst.msk [vmem:[%s2079] sm:$0xff] %vm1927, %v2086
  %v2089 = vld [vmem:[%s1863] sm:$0xff]
  %v2090 = vmul.f32 %v2089, %v1909
  %v2091 = vadd.f32 %v2090, %v1915
  %2093 = vrot.lane.b32.xlu0 %v2091, 124
  %v2094 = vpop.permute.xlu0 %2093
  %2096 = vst.msk [vmem:[%s2079] sm:$0xff] %vm1936, %v2094
  %v2097 = vld [vmem:[%s1863] sm:$0xff]
  %v2098 = vmul.f32 %v2097, %v1909
  %v2099 = vadd.f32 %v2098, %v1915
  %2101 = vrot.lane.b32.xlu0 %v2099, 122
  %v2102 = vpop.permute.xlu0 %2101
  %2104 = vst.msk [vmem:[%s2079] sm:$0xff] %vm1945, %v2102
  %v2105 = vld [vmem:[%s1863] sm:$0xff]
  %v2106 = vmul.f32 %v2105, %v1909
  %v2107 = vadd.f32 %v2106, %v1915
  %2109 = vrot.lane.b32.xlu0 %v2107, 120
  %v2110 = vpop.permute.xlu0 %2109
  %2112 = vst.msk [vmem:[%s2079] sm:$0xff] %vm1954, %v2110
  %v2113 = vld [vmem:[%s1863] sm:$0xff]
  %v2114 = vmul.f32 %v2113, %v1909
  %v2115 = vadd.f32 %v2114, %v1915
  %2117 = vrot.lane.b32.xlu0 %v2115, 118
  %v2118 = vpop.permute.xlu0 %2117
  %2120 = vst.msk [vmem:[%s2079] sm:$0xff] %vm1963, %v2118
  %v2121 = vld [vmem:[%s1863] sm:$0xff]
  %v2122 = vmul.f32 %v2121, %v1909
  %v2123 = vadd.f32 %v2122, %v1915
  %2125 = vrot.lane.b32.xlu0 %v2123, 116
  %v2126 = vpop.permute.xlu0 %2125
  %2128 = vst.msk [vmem:[%s2079] sm:$0xff] %vm1972, %v2126
  %v2129 = vld [vmem:[%s1863] sm:$0xff]
  %v2130 = vld [vmem:[%s1863 + $0x8] sm:$0xff]
  %v2131 = vmul.f32 %v2129, %v1909
  %v2132 = vmul.f32 %v2130, %v1909
  %v2133 = vadd.f32 %v2131, %v1915
  %v2134 = vadd.f32 %v2132, %v1915
  %2137 = vrot.lane.b32.xlu0 %v2133, 114
  %v2138 = vpop.permute.xlu0 %2137
  %2139 = vrot.lane.b32.xlu0 %v2134, 114
  %v2140 = vpop.permute.xlu0 %2139
  %v2141 = vsel %vm1986, %v2138, %v2140
  %2143 = vst.msk [vmem:[%s2079] sm:$0xff] %vm1989, %v2141
  %v2144 = vld [vmem:[%s1863 + $0x8] sm:$0xff]
  %v2145 = vmul.f32 %v2144, %v1909
  %v2146 = vadd.f32 %v2145, %v1915
  %2148 = vrot.lane.b32.xlu0 %v2146, 112
  %v2149 = vpop.permute.xlu0 %2148
  %2151 = vst.msk [vmem:[%s2079 + $0x8] sm:$0xff] %vm1918, %v2149
  %v2152 = vld [vmem:[%s1863 + $0x8] sm:$0xff]
  %v2153 = vmul.f32 %v2152, %v1909
  %v2154 = vadd.f32 %v2153, %v1915
  %2156 = vrot.lane.b32.xlu0 %v2154, 110
  %v2157 = vpop.permute.xlu0 %2156
  %2159 = vst.msk [vmem:[%s2079 + $0x8] sm:$0xff] %vm1927, %v2157
  %v2160 = vld [vmem:[%s1863 + $0x8] sm:$0xff]
  %v2161 = vmul.f32 %v2160, %v1909
  %v2162 = vadd.f32 %v2161, %v1915
  %2164 = vrot.lane.b32.xlu0 %v2162, 108
  %v2165 = vpop.permute.xlu0 %2164
  %2167 = vst.msk [vmem:[%s2079 + $0x8] sm:$0xff] %vm1936, %v2165
  %v2168 = vld [vmem:[%s1863 + $0x8] sm:$0xff]
  %v2169 = vmul.f32 %v2168, %v1909
  %v2170 = vadd.f32 %v2169, %v1915
  %2172 = vrot.lane.b32.xlu0 %v2170, 106
  %v2173 = vpop.permute.xlu0 %2172
  %2175 = vst.msk [vmem:[%s2079 + $0x8] sm:$0xff] %vm1945, %v2173
  %v2176 = vld [vmem:[%s1863 + $0x8] sm:$0xff]
  %v2177 = vmul.f32 %v2176, %v1909
  %v2178 = vadd.f32 %v2177, %v1915
  %2180 = vrot.lane.b32.xlu0 %v2178, 104
  %v2181 = vpop.permute.xlu0 %2180
  %2183 = vst.msk [vmem:[%s2079 + $0x8] sm:$0xff] %vm1954, %v2181
  %v2184 = vld [vmem:[%s1863 + $0x8] sm:$0xff]
  %v2185 = vmul.f32 %v2184, %v1909
  %v2186 = vadd.f32 %v2185, %v1915
  %2188 = vrot.lane.b32.xlu0 %v2186, 102
  %v2189 = vpop.permute.xlu0 %2188
  %2191 = vst.msk [vmem:[%s2079 + $0x8] sm:$0xff] %vm1963, %v2189
  %v2192 = vld [vmem:[%s1863 + $0x8] sm:$0xff]
  %v2193 = vld [vmem:[%s1863 + $0x10] sm:$0xff]
  %v2194 = vmul.f32 %v2192, %v1909
  %v2195 = vmul.f32 %v2193, %v1909
  %v2196 = vadd.f32 %v2194, %v1915
  %v2197 = vadd.f32 %v2195, %v1915
  %2200 = vrot.lane.b32.xlu0 %v2196, 100
  %v2201 = vpop.permute.xlu0 %2200
  %2202 = vrot.lane.b32.xlu0 %v2197, 100
  %v2203 = vpop.permute.xlu0 %2202
  %v2204 = vsel %vm2051, %v2201, %v2203
  %2206 = vst.msk [vmem:[%s2079 + $0x8] sm:$0xff] %vm1972, %v2204
  %v2207 = vld [vmem:[%s1863 + $0x10] sm:$0xff]
  %v2208 = vmul.f32 %v2207, %v1909
  %v2209 = vadd.f32 %v2208, %v1915
  %2211 = vrot.lane.b32.xlu0 %v2209, 98
  %v2212 = vpop.permute.xlu0 %2211
  %2214 = vst.msk [vmem:[%s2079 + $0x8] sm:$0xff] %vm1989, %v2212
  %v2215 = vld [vmem:[%s2079] sm:$0xf]
  %v2216 = vld [vmem:[%s2079 + $0x8] sm:$0xf]
  %v2217 = vld [vmem:[%s73] sm:$0xff]
  %2219 = vst [vmem:[#allocation1] ss:$2 sm:$0xff] %v2217
  %v2220 = vld.sshfl [vmem:[#allocation1] sm:$0xff pattern:$0x75316420]
  %v2221 = vld.sshfl [vmem:[#allocation1 + $0x8] sm:$0xff pattern:$0x75316420]
  %v2224 = vadd.f32 %v2215, %v2220
  %v2225 = vadd.f32 %v2216, %v2221
  %2226 = vst [vmem:[%s2079] sm:$0xf] %v2224
  %2227 = vst [vmem:[%s2079 + $0x8] sm:$0xf] %v2225
  // Predicated region
  $region42: #{basic_block_forward.1} parent=0 // pred_check
    _
  $region43: #{basic_block_forward.1} parent=0 // pred_check_branch
    %2229 = sbr.rel (0) target = $region45
  $region44: #{basic_block_forward.1} parent=0 // pred_region
    _
  $region45: #{basic_block_forward.1} parent=0 // pred_fallthru
    _
  // Predicated region
  $region46: #{basic_block_forward.1} parent=0 // pred_check
    _
  $region47: #{basic_block_forward.1} parent=0 // pred_check_branch
    %2231 = sbr.rel (0) target = $region49
  $region48: #{basic_block_forward.1} parent=0 // pred_region
    _
  $region49: #{basic_block_forward.1} parent=0 // pred_fallthru
    _

</llo_original>
